<compile_context>
chip_gen: v7x
topology: tpu7x:2x2x1
jax: 0.10.0
libtpu: 0.0.40
codegen_flags: <defaults>
</compile_context>

<pallas_src>
import functools

import jax
import jax.numpy as jnp
from jax import lax
from jax.experimental import pallas as pl
from jax.experimental.pallas import tpu as pltpu

EPS = 1e-5


def basic_block_kernel(x_ref, w1_ref, w2_ref, bn_ref, out_ref, *, H, W):
    C, S = x_ref.shape
    x = x_ref[...]                                 # (C, S), lane-dense

    # Lane index -> (h, w) of the pixel within its image.  H, W are powers
    # of two here, so the decode is two single-op VPU bit ops.  The batch
    # index is the outermost factor of the lane axis, so circular wrap-around
    # across image/batch boundaries coincides with the h-edge masks.
    s_idx = lax.broadcasted_iota(jnp.int32, (1, S), 1)
    if (W & (W - 1)) == 0 and (H & (H - 1)) == 0:
        w_idx = s_idx & (W - 1)
        h_idx = (s_idx >> (W.bit_length() - 1)) & (H - 1)
    else:
        w_idx = s_idx % W
        h_idx = (s_idx // W) % H

    # One lane-only boundary mask per 3x3 tap (shared by both convs).
    taps = []
    for ky in range(3):
        for kx in range(3):
            dy, dx = ky - 1, kx - 1
            conds = []
            if dy > 0:
                conds.append(h_idx < H - dy)
            elif dy < 0:
                conds.append(h_idx >= -dy)
            if dx > 0:
                conds.append(w_idx < W - dx)
            elif dx < 0:
                conds.append(w_idx >= -dx)
            mask = None
            for c in conds:
                mask = c if mask is None else (mask & c)
            taps.append((ky * 3 + kx, dy * W + dx, mask))

    inv_s = 1.0 / S

    def conv_bn(act, w_ref, gamma, beta):
        # 9 accumulated per-tap MXU dots; the lane shift is one XLU rotation
        # and the tap mask zeroes reads outside the H x W image.
        acc = None
        for t, off, mask in taps:
            slab = act if off == 0 else pltpu.roll(act, (-off) % S, axis=1)
            if mask is not None:
                slab = jnp.where(mask, slab, 0.0)
            y_t = jnp.dot(w_ref[t], slab, preferred_element_type=jnp.float32)
            acc = y_t if acc is None else acc + y_t
        # TODO(synk): on v7x, accumulate the 9 taps in a single MRB address
        # (pltpu.matmul_* explicit driving) instead of VPU adds.
        # Train-mode BatchNorm (biased variance), folded into one FMA pass.
        mean = jnp.sum(acc, axis=1, keepdims=True) * inv_s
        var = jnp.sum(acc * acc, axis=1, keepdims=True) * inv_s - mean * mean
        var = jnp.maximum(var, 0.0)            # guard one-pass cancellation
        scale = lax.rsqrt(var + EPS) * gamma
        shift = beta - mean * scale
        return acc * scale + shift

    g1 = bn_ref[:, 0:1]
    b1 = bn_ref[:, 1:2]
    g2 = bn_ref[:, 2:3]
    b2 = bn_ref[:, 3:4]

    # conv1 + bn1 + relu (channel shuffle pre-folded into w1 / g1 / b1).
    y = jnp.maximum(conv_bn(x, w1_ref, g1, b1), 0.0)
    # conv2 + bn2 + residual + relu (downsample=None -> identity = x).
    y = conv_bn(y, w2_ref, g2, b2)
    out_ref[...] = jnp.maximum(y + x, 0.0)


def _grouped_weight_to_taps(w_oihw, groups, out_perm=None):
    """PyTorch grouped conv3x3 weight (Cout, Cin//groups, 3, 3) -> stack of 9
    dense per-tap matrices (9, Cout, Cin) with the group block-diagonal
    structure expanded.  `out_perm` optionally permutes output channels
    (used to fold the channel shuffle into conv1)."""
    Cout, Cin_g, KH, KW = w_oihw.shape
    Cin = Cin_g * groups
    Cout_g = Cout // groups
    dense = jnp.zeros((Cout, Cin, KH, KW), jnp.float32)
    for g in range(groups):
        dense = dense.at[g * Cout_g:(g + 1) * Cout_g,
                         g * Cin_g:(g + 1) * Cin_g].set(
            w_oihw[g * Cout_g:(g + 1) * Cout_g].astype(jnp.float32))
    if out_perm is not None:
        dense = dense[out_perm]
    # (Cout, Cin, ky, kx) -> (ky*3+kx, Cout, Cin)
    return dense.transpose(2, 3, 0, 1).reshape(KH * KW, Cout, Cin)


def basic_block_forward(x_nchw, params, *, groups, groups2):
    w1, g1, b1 = params["w1"], params["g1"], params["b1"]
    w2, g2, b2 = params["w2"], params["g2"], params["b2"]

    B, Cin, H, W = x_nchw.shape
    C = w1.shape[0]
    assert Cin == C, "downsample=None requires inplanes == planes"
    S = B * H * W

    # Channel shuffle (view/transpose/view) is a fixed permutation of conv1's
    # output channels: fold it into w1 / bn1 at trace time.
    perm = jnp.array(
        [j * groups2 + i for i in range(groups2) for j in range(C // groups2)],
        jnp.int32)

    w1taps = _grouped_weight_to_taps(w1, groups, out_perm=perm)   # (9, C, C)
    w2taps = _grouped_weight_to_taps(w2, groups2)                 # (9, C, C)
    bn = jnp.stack([g1[perm], b1[perm], g2, b2], axis=1).astype(jnp.float32)

    # Lane-dense layout: channels on sublanes, flat spatial on lanes.
    x_flat = jnp.transpose(x_nchw.astype(jnp.float32),
                           (1, 0, 2, 3)).reshape(C, S)

    kernel = functools.partial(basic_block_kernel, H=H, W=W)
    vmem = lambda: pl.BlockSpec(memory_space=pltpu.MemorySpace.VMEM)

    # Whole problem (< 1 MiB) fits in VMEM -> single invocation, no grid.
    out_flat = pl.pallas_call(
        kernel,
        out_shape=jax.ShapeDtypeStruct((C, S), jnp.float32),
        in_specs=[vmem(), vmem(), vmem(), vmem()],
        out_specs=vmem(),
    )(x_flat, w1taps, w2taps, bn)

    return jnp.transpose(out_flat.reshape(C, B, H, W), (1, 0, 2, 3))


def ref_forward(x, params, *, groups, groups2):
    """Pure-JAX reference of BasicBlock.forward (NCHW, train-mode BN)."""
    w1, g1, b1 = params["w1"], params["g1"], params["b1"]
    w2, g2, b2 = params["w2"], params["g2"], params["b2"]

    def conv(z, w, fg):
        return lax.conv_general_dilated(
            z, w, (1, 1), ((1, 1), (1, 1)), feature_group_count=fg,
            dimension_numbers=("NCHW", "OIHW", "NCHW"))

    def bn(z, g, b):
        m = z.mean(axis=(0, 2, 3), keepdims=True)
        v = ((z - m) ** 2).mean(axis=(0, 2, 3), keepdims=True)
        return (z - m) / jnp.sqrt(v + EPS) * g.reshape(1, -1, 1, 1) \
            + b.reshape(1, -1, 1, 1)

    y = jnp.maximum(bn(conv(x, w1, groups), g1, b1), 0.0)
    B, C, H, W = y.shape
    y = y.reshape(B, C // groups2, groups2, H, W).transpose(0, 2, 1, 3, 4)
    y = y.reshape(B, C, H, W)
    y = bn(conv(y, w2, groups2), g2, b2)
    return jnp.maximum(y + x, 0.0)


if __name__ == "__main__":
    inplanes = planes = 8
    groups = 2
    groups2 = planes // groups  # = 4
    B, H, W = 2, 16, 16

    key = jax.random.PRNGKey(0)
    ks = jax.random.split(key, 7)
    x = jax.random.normal(ks[0], (B, inplanes, H, W), jnp.float32)
    params = dict(
        w1=0.1 * jax.random.normal(ks[1], (planes, inplanes // groups, 3, 3),
                                   jnp.float32),
        g1=1.0 + 0.1 * jax.random.normal(ks[2], (planes,), jnp.float32),
        b1=0.1 * jax.random.normal(ks[3], (planes,), jnp.float32),
        w2=0.1 * jax.random.normal(ks[4], (planes, planes // groups2, 3, 3),
                                   jnp.float32),
        g2=1.0 + 0.1 * jax.random.normal(ks[5], (planes,), jnp.float32),
        b2=0.1 * jax.random.normal(ks[6], (planes,), jnp.float32),
    )

    out = jax.block_until_ready(
        basic_block_forward(x, params, groups=groups, groups2=groups2))
    ref = ref_forward(x, params, groups=groups, groups2=groups2)

    assert out.shape == (B, planes, H, W), out.shape
    max_err = float(jnp.max(jnp.abs(out - ref)))
    assert jnp.allclose(out, ref, atol=1e-4, rtol=1e-4), max_err
    print("KERNEL_OK")
</pallas_src>

<mosaic_0001>
module attributes {stable_mosaic.version = 11 : i64} {
  func.func @basic_block_kernel(%arg0: memref<8x512xf32, #tpu.memory_space<vmem>>, %arg1: memref<9x8x8xf32, #tpu.memory_space<vmem>>, %arg2: memref<9x8x8xf32, #tpu.memory_space<vmem>>, %arg3: memref<8x4xf32, #tpu.memory_space<vmem>>, %arg4: memref<8x512xf32, #tpu.memory_space<vmem>>) attributes {dimension_semantics = [], scalar_prefetch = 0 : i64, scratch_operands = 0 : i64, tpu.core_type = #tpu.core_type<tc>} {
    %c0 = arith.constant 0 : index
    %c0_0 = arith.constant 0 : index
    %0 = vector.load %arg0[%c0, %c0_0] : memref<8x512xf32, #tpu.memory_space<vmem>>, vector<8x512xf32>
    %1 = tpu.iota {dimensions = array<i32: 1>} : vector<1x512xi32>
    %c15_i32 = arith.constant 15 : i32
    %2 = vector.broadcast %c15_i32 : i32 to vector<1x512xi32>
    %3 = arith.andi %1, %2 : vector<1x512xi32>
    %c4_i32 = arith.constant 4 : i32
    %4 = vector.broadcast %c4_i32 : i32 to vector<1x512xi32>
    %5 = arith.shrsi %1, %4 : vector<1x512xi32>
    %c15_i32_1 = arith.constant 15 : i32
    %6 = vector.broadcast %c15_i32_1 : i32 to vector<1x512xi32>
    %7 = arith.andi %5, %6 : vector<1x512xi32>
    %c1_i32 = arith.constant 1 : i32
    %8 = vector.broadcast %c1_i32 : i32 to vector<1x512xi32>
    %9 = arith.cmpi sge, %7, %8 : vector<1x512xi32>
    %c1_i32_2 = arith.constant 1 : i32
    %10 = vector.broadcast %c1_i32_2 : i32 to vector<1x512xi32>
    %11 = arith.cmpi sge, %3, %10 : vector<1x512xi32>
    %12 = arith.andi %9, %11 : vector<1x512xi1>
    %c1_i32_3 = arith.constant 1 : i32
    %13 = vector.broadcast %c1_i32_3 : i32 to vector<1x512xi32>
    %14 = arith.cmpi sge, %7, %13 : vector<1x512xi32>
    %c1_i32_4 = arith.constant 1 : i32
    %15 = vector.broadcast %c1_i32_4 : i32 to vector<1x512xi32>
    %16 = arith.cmpi sge, %7, %15 : vector<1x512xi32>
    %c15_i32_5 = arith.constant 15 : i32
    %17 = vector.broadcast %c15_i32_5 : i32 to vector<1x512xi32>
    %18 = arith.cmpi slt, %3, %17 : vector<1x512xi32>
    %19 = arith.andi %16, %18 : vector<1x512xi1>
    %c1_i32_6 = arith.constant 1 : i32
    %20 = vector.broadcast %c1_i32_6 : i32 to vector<1x512xi32>
    %21 = arith.cmpi sge, %3, %20 : vector<1x512xi32>
    %c15_i32_7 = arith.constant 15 : i32
    %22 = vector.broadcast %c15_i32_7 : i32 to vector<1x512xi32>
    %23 = arith.cmpi slt, %3, %22 : vector<1x512xi32>
    %c15_i32_8 = arith.constant 15 : i32
    %24 = vector.broadcast %c15_i32_8 : i32 to vector<1x512xi32>
    %25 = arith.cmpi slt, %7, %24 : vector<1x512xi32>
    %c1_i32_9 = arith.constant 1 : i32
    %26 = vector.broadcast %c1_i32_9 : i32 to vector<1x512xi32>
    %27 = arith.cmpi sge, %3, %26 : vector<1x512xi32>
    %28 = arith.andi %25, %27 : vector<1x512xi1>
    %c15_i32_10 = arith.constant 15 : i32
    %29 = vector.broadcast %c15_i32_10 : i32 to vector<1x512xi32>
    %30 = arith.cmpi slt, %7, %29 : vector<1x512xi32>
    %c15_i32_11 = arith.constant 15 : i32
    %31 = vector.broadcast %c15_i32_11 : i32 to vector<1x512xi32>
    %32 = arith.cmpi slt, %7, %31 : vector<1x512xi32>
    %c15_i32_12 = arith.constant 15 : i32
    %33 = vector.broadcast %c15_i32_12 : i32 to vector<1x512xi32>
    %34 = arith.cmpi slt, %3, %33 : vector<1x512xi32>
    %35 = arith.andi %32, %34 : vector<1x512xi1>
    %c0_13 = arith.constant 0 : index
    %c0_14 = arith.constant 0 : index
    %36 = vector.load %arg3[%c0_13, %c0_14] : memref<8x4xf32, #tpu.memory_space<vmem>>, vector<8x1xf32>
    %c0_15 = arith.constant 0 : index
    %c1 = arith.constant 1 : index
    %37 = vector.load %arg3[%c0_15, %c1] : memref<8x4xf32, #tpu.memory_space<vmem>>, vector<8x1xf32>
    %c0_16 = arith.constant 0 : index
    %c2 = arith.constant 2 : index
    %38 = vector.load %arg3[%c0_16, %c2] : memref<8x4xf32, #tpu.memory_space<vmem>>, vector<8x1xf32>
    %c0_17 = arith.constant 0 : index
    %c3 = arith.constant 3 : index
    %39 = vector.load %arg3[%c0_17, %c3] : memref<8x4xf32, #tpu.memory_space<vmem>>, vector<8x1xf32>
    %c17_i32 = arith.constant 17 : i32
    %40 = tpu.dynamic_rotate %0 by %c17_i32 dim 1 : vector<8x512xf32>, i32 -> vector<8x512xf32>
    %cst = arith.constant 0.000000e+00 : f32
    %41 = vector.shape_cast %12 : vector<1x512xi1> to vector<1x512xi1>
    %42 = vector.broadcast %41 : vector<1x512xi1> to vector<8x512xi1>
    %43 = vector.broadcast %cst : f32 to vector<8x512xf32>
    %44 = arith.select %42, %40, %43 : vector<8x512xi1>, vector<8x512xf32>
    %c0_18 = arith.constant 0 : index
    %c0_19 = arith.constant 0 : index
    %c0_20 = arith.constant 0 : index
    %45 = vector.load %arg1[%c0_18, %c0_19, %c0_20] : memref<9x8x8xf32, #tpu.memory_space<vmem>>, vector<1x8x8xf32>
    %46 = vector.shape_cast %45 : vector<1x8x8xf32> to vector<8x8xf32>
    %cst_21 = arith.constant dense<0.000000e+00> : vector<8x512xf32>
    %47 = tpu.matmul %46, %44, %cst_21 {dimension_numbers = #tpu.dot_dimension_numbers<[1], [0], [0], [1], [0, 0, 1, 1], [], []>} : vector<8x8xf32>, vector<8x512xf32>, vector<8x512xf32> -> vector<8x512xf32>
    %c16_i32 = arith.constant 16 : i32
    %48 = tpu.dynamic_rotate %0 by %c16_i32 dim 1 : vector<8x512xf32>, i32 -> vector<8x512xf32>
    %cst_22 = arith.constant 0.000000e+00 : f32
    %49 = vector.shape_cast %14 : vector<1x512xi1> to vector<1x512xi1>
    %50 = vector.broadcast %49 : vector<1x512xi1> to vector<8x512xi1>
    %51 = vector.broadcast %cst_22 : f32 to vector<8x512xf32>
    %52 = arith.select %50, %48, %51 : vector<8x512xi1>, vector<8x512xf32>
    %c1_23 = arith.constant 1 : index
    %c0_24 = arith.constant 0 : index
    %c0_25 = arith.constant 0 : index
    %53 = vector.load %arg1[%c1_23, %c0_24, %c0_25] : memref<9x8x8xf32, #tpu.memory_space<vmem>>, vector<1x8x8xf32>
    %54 = vector.shape_cast %53 : vector<1x8x8xf32> to vector<8x8xf32>
    %cst_26 = arith.constant dense<0.000000e+00> : vector<8x512xf32>
    %55 = tpu.matmul %54, %52, %cst_26 {dimension_numbers = #tpu.dot_dimension_numbers<[1], [0], [0], [1], [0, 0, 1, 1], [], []>} : vector<8x8xf32>, vector<8x512xf32>, vector<8x512xf32> -> vector<8x512xf32>
    %56 = arith.addf %47, %55 : vector<8x512xf32>
    %c15_i32_27 = arith.constant 15 : i32
    %57 = tpu.dynamic_rotate %0 by %c15_i32_27 dim 1 : vector<8x512xf32>, i32 -> vector<8x512xf32>
    %cst_28 = arith.constant 0.000000e+00 : f32
    %58 = vector.shape_cast %19 : vector<1x512xi1> to vector<1x512xi1>
    %59 = vector.broadcast %58 : vector<1x512xi1> to vector<8x512xi1>
    %60 = vector.broadcast %cst_28 : f32 to vector<8x512xf32>
    %61 = arith.select %59, %57, %60 : vector<8x512xi1>, vector<8x512xf32>
    %c2_29 = arith.constant 2 : index
    %c0_30 = arith.constant 0 : index
    %c0_31 = arith.constant 0 : index
    %62 = vector.load %arg1[%c2_29, %c0_30, %c0_31] : memref<9x8x8xf32, #tpu.memory_space<vmem>>, vector<1x8x8xf32>
    %63 = vector.shape_cast %62 : vector<1x8x8xf32> to vector<8x8xf32>
    %cst_32 = arith.constant dense<0.000000e+00> : vector<8x512xf32>
    %64 = tpu.matmul %63, %61, %cst_32 {dimension_numbers = #tpu.dot_dimension_numbers<[1], [0], [0], [1], [0, 0, 1, 1], [], []>} : vector<8x8xf32>, vector<8x512xf32>, vector<8x512xf32> -> vector<8x512xf32>
    %65 = arith.addf %56, %64 : vector<8x512xf32>
    %c1_i32_33 = arith.constant 1 : i32
    %66 = tpu.dynamic_rotate %0 by %c1_i32_33 dim 1 : vector<8x512xf32>, i32 -> vector<8x512xf32>
    %cst_34 = arith.constant 0.000000e+00 : f32
    %67 = vector.shape_cast %21 : vector<1x512xi1> to vector<1x512xi1>
    %68 = vector.broadcast %67 : vector<1x512xi1> to vector<8x512xi1>
    %69 = vector.broadcast %cst_34 : f32 to vector<8x512xf32>
    %70 = arith.select %68, %66, %69 : vector<8x512xi1>, vector<8x512xf32>
    %c3_35 = arith.constant 3 : index
    %c0_36 = arith.constant 0 : index
    %c0_37 = arith.constant 0 : index
    %71 = vector.load %arg1[%c3_35, %c0_36, %c0_37] : memref<9x8x8xf32, #tpu.memory_space<vmem>>, vector<1x8x8xf32>
    %72 = vector.shape_cast %71 : vector<1x8x8xf32> to vector<8x8xf32>
    %cst_38 = arith.constant dense<0.000000e+00> : vector<8x512xf32>
    %73 = tpu.matmul %72, %70, %cst_38 {dimension_numbers = #tpu.dot_dimension_numbers<[1], [0], [0], [1], [0, 0, 1, 1], [], []>} : vector<8x8xf32>, vector<8x512xf32>, vector<8x512xf32> -> vector<8x512xf32>
    %74 = arith.addf %65, %73 : vector<8x512xf32>
    %c4 = arith.constant 4 : index
    %c0_39 = arith.constant 0 : index
    %c0_40 = arith.constant 0 : index
    %75 = vector.load %arg1[%c4, %c0_39, %c0_40] : memref<9x8x8xf32, #tpu.memory_space<vmem>>, vector<1x8x8xf32>
    %76 = vector.shape_cast %75 : vector<1x8x8xf32> to vector<8x8xf32>
    %cst_41 = arith.constant dense<0.000000e+00> : vector<8x512xf32>
    %77 = tpu.matmul %76, %0, %cst_41 {dimension_numbers = #tpu.dot_dimension_numbers<[1], [0], [0], [1], [0, 0, 1, 1], [], []>} : vector<8x8xf32>, vector<8x512xf32>, vector<8x512xf32> -> vector<8x512xf32>
    %78 = arith.addf %74, %77 : vector<8x512xf32>
    %c511_i32 = arith.constant 511 : i32
    %79 = tpu.dynamic_rotate %0 by %c511_i32 dim 1 : vector<8x512xf32>, i32 -> vector<8x512xf32>
    %cst_42 = arith.constant 0.000000e+00 : f32
    %80 = vector.shape_cast %23 : vector<1x512xi1> to vector<1x512xi1>
    %81 = vector.broadcast %80 : vector<1x512xi1> to vector<8x512xi1>
    %82 = vector.broadcast %cst_42 : f32 to vector<8x512xf32>
    %83 = arith.select %81, %79, %82 : vector<8x512xi1>, vector<8x512xf32>
    %c5 = arith.constant 5 : index
    %c0_43 = arith.constant 0 : index
    %c0_44 = arith.constant 0 : index
    %84 = vector.load %arg1[%c5, %c0_43, %c0_44] : memref<9x8x8xf32, #tpu.memory_space<vmem>>, vector<1x8x8xf32>
    %85 = vector.shape_cast %84 : vector<1x8x8xf32> to vector<8x8xf32>
    %cst_45 = arith.constant dense<0.000000e+00> : vector<8x512xf32>
    %86 = tpu.matmul %85, %83, %cst_45 {dimension_numbers = #tpu.dot_dimension_numbers<[1], [0], [0], [1], [0, 0, 1, 1], [], []>} : vector<8x8xf32>, vector<8x512xf32>, vector<8x512xf32> -> vector<8x512xf32>
    %87 = arith.addf %78, %86 : vector<8x512xf32>
    %c497_i32 = arith.constant 497 : i32
    %88 = tpu.dynamic_rotate %0 by %c497_i32 dim 1 : vector<8x512xf32>, i32 -> vector<8x512xf32>
    %cst_46 = arith.constant 0.000000e+00 : f32
    %89 = vector.shape_cast %28 : vector<1x512xi1> to vector<1x512xi1>
    %90 = vector.broadcast %89 : vector<1x512xi1> to vector<8x512xi1>
    %91 = vector.broadcast %cst_46 : f32 to vector<8x512xf32>
    %92 = arith.select %90, %88, %91 : vector<8x512xi1>, vector<8x512xf32>
    %c6 = arith.constant 6 : index
    %c0_47 = arith.constant 0 : index
    %c0_48 = arith.constant 0 : index
    %93 = vector.load %arg1[%c6, %c0_47, %c0_48] : memref<9x8x8xf32, #tpu.memory_space<vmem>>, vector<1x8x8xf32>
    %94 = vector.shape_cast %93 : vector<1x8x8xf32> to vector<8x8xf32>
    %cst_49 = arith.constant dense<0.000000e+00> : vector<8x512xf32>
    %95 = tpu.matmul %94, %92, %cst_49 {dimension_numbers = #tpu.dot_dimension_numbers<[1], [0], [0], [1], [0, 0, 1, 1], [], []>} : vector<8x8xf32>, vector<8x512xf32>, vector<8x512xf32> -> vector<8x512xf32>
    %96 = arith.addf %87, %95 : vector<8x512xf32>
    %c496_i32 = arith.constant 496 : i32
    %97 = tpu.dynamic_rotate %0 by %c496_i32 dim 1 : vector<8x512xf32>, i32 -> vector<8x512xf32>
    %cst_50 = arith.constant 0.000000e+00 : f32
    %98 = vector.shape_cast %30 : vector<1x512xi1> to vector<1x512xi1>
    %99 = vector.broadcast %98 : vector<1x512xi1> to vector<8x512xi1>
    %100 = vector.broadcast %cst_50 : f32 to vector<8x512xf32>
    %101 = arith.select %99, %97, %100 : vector<8x512xi1>, vector<8x512xf32>
    %c7 = arith.constant 7 : index
    %c0_51 = arith.constant 0 : index
    %c0_52 = arith.constant 0 : index
    %102 = vector.load %arg1[%c7, %c0_51, %c0_52] : memref<9x8x8xf32, #tpu.memory_space<vmem>>, vector<1x8x8xf32>
    %103 = vector.shape_cast %102 : vector<1x8x8xf32> to vector<8x8xf32>
    %cst_53 = arith.constant dense<0.000000e+00> : vector<8x512xf32>
    %104 = tpu.matmul %103, %101, %cst_53 {dimension_numbers = #tpu.dot_dimension_numbers<[1], [0], [0], [1], [0, 0, 1, 1], [], []>} : vector<8x8xf32>, vector<8x512xf32>, vector<8x512xf32> -> vector<8x512xf32>
    %105 = arith.addf %96, %104 : vector<8x512xf32>
    %c495_i32 = arith.constant 495 : i32
    %106 = tpu.dynamic_rotate %0 by %c495_i32 dim 1 : vector<8x512xf32>, i32 -> vector<8x512xf32>
    %cst_54 = arith.constant 0.000000e+00 : f32
    %107 = vector.shape_cast %35 : vector<1x512xi1> to vector<1x512xi1>
    %108 = vector.broadcast %107 : vector<1x512xi1> to vector<8x512xi1>
    %109 = vector.broadcast %cst_54 : f32 to vector<8x512xf32>
    %110 = arith.select %108, %106, %109 : vector<8x512xi1>, vector<8x512xf32>
    %c8 = arith.constant 8 : index
    %c0_55 = arith.constant 0 : index
    %c0_56 = arith.constant 0 : index
    %111 = vector.load %arg1[%c8, %c0_55, %c0_56] : memref<9x8x8xf32, #tpu.memory_space<vmem>>, vector<1x8x8xf32>
    %112 = vector.shape_cast %111 : vector<1x8x8xf32> to vector<8x8xf32>
    %cst_57 = arith.constant dense<0.000000e+00> : vector<8x512xf32>
    %113 = tpu.matmul %112, %110, %cst_57 {dimension_numbers = #tpu.dot_dimension_numbers<[1], [0], [0], [1], [0, 0, 1, 1], [], []>} : vector<8x8xf32>, vector<8x512xf32>, vector<8x512xf32> -> vector<8x512xf32>
    %114 = arith.addf %105, %113 : vector<8x512xf32>
    %cst_58 = arith.constant dense<0.000000e+00> : vector<8xf32>
    %115 = vector.multi_reduction <add>, %114, %cst_58 [1] : vector<8x512xf32> to vector<8xf32>
    %116 = vector.shape_cast %115 : vector<8xf32> to vector<8x1xf32>
    %cst_59 = arith.constant 0.001953125 : f32
    %117 = vector.broadcast %cst_59 : f32 to vector<8x1xf32>
    %118 = arith.mulf %116, %117 : vector<8x1xf32>
    %119 = arith.mulf %114, %114 : vector<8x512xf32>
    %cst_60 = arith.constant dense<0.000000e+00> : vector<8xf32>
    %120 = vector.multi_reduction <add>, %119, %cst_60 [1] : vector<8x512xf32> to vector<8xf32>
    %121 = vector.shape_cast %120 : vector<8xf32> to vector<8x1xf32>
    %cst_61 = arith.constant 0.001953125 : f32
    %122 = vector.broadcast %cst_61 : f32 to vector<8x1xf32>
    %123 = arith.mulf %121, %122 : vector<8x1xf32>
    %124 = arith.mulf %118, %118 : vector<8x1xf32>
    %125 = arith.subf %123, %124 : vector<8x1xf32>
    %cst_62 = arith.constant 0.000000e+00 : f32
    %126 = vector.broadcast %cst_62 : f32 to vector<8x1xf32>
    %127 = arith.maximumf %125, %126 : vector<8x1xf32>
    %cst_63 = arith.constant 9.99999974E-6 : f32
    %128 = vector.broadcast %cst_63 : f32 to vector<8x1xf32>
    %129 = arith.addf %127, %128 : vector<8x1xf32>
    %130 = math.rsqrt %129 : vector<8x1xf32>
    %131 = arith.mulf %130, %36 : vector<8x1xf32>
    %132 = arith.mulf %118, %131 : vector<8x1xf32>
    %133 = arith.subf %37, %132 : vector<8x1xf32>
    %134 = vector.broadcast %131 : vector<8x1xf32> to vector<8x512xf32>
    %135 = arith.mulf %114, %134 : vector<8x512xf32>
    %136 = vector.broadcast %133 : vector<8x1xf32> to vector<8x512xf32>
    %137 = arith.addf %135, %136 : vector<8x512xf32>
    %cst_64 = arith.constant 0.000000e+00 : f32
    %138 = vector.broadcast %cst_64 : f32 to vector<8x512xf32>
    %139 = arith.maximumf %137, %138 : vector<8x512xf32>
    %c17_i32_65 = arith.constant 17 : i32
    %140 = tpu.dynamic_rotate %139 by %c17_i32_65 dim 1 : vector<8x512xf32>, i32 -> vector<8x512xf32>
    %cst_66 = arith.constant 0.000000e+00 : f32
    %141 = vector.shape_cast %12 : vector<1x512xi1> to vector<1x512xi1>
    %142 = vector.broadcast %141 : vector<1x512xi1> to vector<8x512xi1>
    %143 = vector.broadcast %cst_66 : f32 to vector<8x512xf32>
    %144 = arith.select %142, %140, %143 : vector<8x512xi1>, vector<8x512xf32>
    %c0_67 = arith.constant 0 : index
    %c0_68 = arith.constant 0 : index
    %c0_69 = arith.constant 0 : index
    %145 = vector.load %arg2[%c0_67, %c0_68, %c0_69] : memref<9x8x8xf32, #tpu.memory_space<vmem>>, vector<1x8x8xf32>
    %146 = vector.shape_cast %145 : vector<1x8x8xf32> to vector<8x8xf32>
    %cst_70 = arith.constant dense<0.000000e+00> : vector<8x512xf32>
    %147 = tpu.matmul %146, %144, %cst_70 {dimension_numbers = #tpu.dot_dimension_numbers<[1], [0], [0], [1], [0, 0, 1, 1], [], []>} : vector<8x8xf32>, vector<8x512xf32>, vector<8x512xf32> -> vector<8x512xf32>
    %c16_i32_71 = arith.constant 16 : i32
    %148 = tpu.dynamic_rotate %139 by %c16_i32_71 dim 1 : vector<8x512xf32>, i32 -> vector<8x512xf32>
    %cst_72 = arith.constant 0.000000e+00 : f32
    %149 = vector.shape_cast %14 : vector<1x512xi1> to vector<1x512xi1>
    %150 = vector.broadcast %149 : vector<1x512xi1> to vector<8x512xi1>
    %151 = vector.broadcast %cst_72 : f32 to vector<8x512xf32>
    %152 = arith.select %150, %148, %151 : vector<8x512xi1>, vector<8x512xf32>
    %c1_73 = arith.constant 1 : index
    %c0_74 = arith.constant 0 : index
    %c0_75 = arith.constant 0 : index
    %153 = vector.load %arg2[%c1_73, %c0_74, %c0_75] : memref<9x8x8xf32, #tpu.memory_space<vmem>>, vector<1x8x8xf32>
    %154 = vector.shape_cast %153 : vector<1x8x8xf32> to vector<8x8xf32>
    %cst_76 = arith.constant dense<0.000000e+00> : vector<8x512xf32>
    %155 = tpu.matmul %154, %152, %cst_76 {dimension_numbers = #tpu.dot_dimension_numbers<[1], [0], [0], [1], [0, 0, 1, 1], [], []>} : vector<8x8xf32>, vector<8x512xf32>, vector<8x512xf32> -> vector<8x512xf32>
    %156 = arith.addf %147, %155 : vector<8x512xf32>
    %c15_i32_77 = arith.constant 15 : i32
    %157 = tpu.dynamic_rotate %139 by %c15_i32_77 dim 1 : vector<8x512xf32>, i32 -> vector<8x512xf32>
    %cst_78 = arith.constant 0.000000e+00 : f32
    %158 = vector.shape_cast %19 : vector<1x512xi1> to vector<1x512xi1>
    %159 = vector.broadcast %158 : vector<1x512xi1> to vector<8x512xi1>
    %160 = vector.broadcast %cst_78 : f32 to vector<8x512xf32>
    %161 = arith.select %159, %157, %160 : vector<8x512xi1>, vector<8x512xf32>
    %c2_79 = arith.constant 2 : index
    %c0_80 = arith.constant 0 : index
    %c0_81 = arith.constant 0 : index
    %162 = vector.load %arg2[%c2_79, %c0_80, %c0_81] : memref<9x8x8xf32, #tpu.memory_space<vmem>>, vector<1x8x8xf32>
    %163 = vector.shape_cast %162 : vector<1x8x8xf32> to vector<8x8xf32>
    %cst_82 = arith.constant dense<0.000000e+00> : vector<8x512xf32>
    %164 = tpu.matmul %163, %161, %cst_82 {dimension_numbers = #tpu.dot_dimension_numbers<[1], [0], [0], [1], [0, 0, 1, 1], [], []>} : vector<8x8xf32>, vector<8x512xf32>, vector<8x512xf32> -> vector<8x512xf32>
    %165 = arith.addf %156, %164 : vector<8x512xf32>
    %c1_i32_83 = arith.constant 1 : i32
    %166 = tpu.dynamic_rotate %139 by %c1_i32_83 dim 1 : vector<8x512xf32>, i32 -> vector<8x512xf32>
    %cst_84 = arith.constant 0.000000e+00 : f32
    %167 = vector.shape_cast %21 : vector<1x512xi1> to vector<1x512xi1>
    %168 = vector.broadcast %167 : vector<1x512xi1> to vector<8x512xi1>
    %169 = vector.broadcast %cst_84 : f32 to vector<8x512xf32>
    %170 = arith.select %168, %166, %169 : vector<8x512xi1>, vector<8x512xf32>
    %c3_85 = arith.constant 3 : index
    %c0_86 = arith.constant 0 : index
    %c0_87 = arith.constant 0 : index
    %171 = vector.load %arg2[%c3_85, %c0_86, %c0_87] : memref<9x8x8xf32, #tpu.memory_space<vmem>>, vector<1x8x8xf32>
    %172 = vector.shape_cast %171 : vector<1x8x8xf32> to vector<8x8xf32>
    %cst_88 = arith.constant dense<0.000000e+00> : vector<8x512xf32>
    %173 = tpu.matmul %172, %170, %cst_88 {dimension_numbers = #tpu.dot_dimension_numbers<[1], [0], [0], [1], [0, 0, 1, 1], [], []>} : vector<8x8xf32>, vector<8x512xf32>, vector<8x512xf32> -> vector<8x512xf32>
    %174 = arith.addf %165, %173 : vector<8x512xf32>
    %c4_89 = arith.constant 4 : index
    %c0_90 = arith.constant 0 : index
    %c0_91 = arith.constant 0 : index
    %175 = vector.load %arg2[%c4_89, %c0_90, %c0_91] : memref<9x8x8xf32, #tpu.memory_space<vmem>>, vector<1x8x8xf32>
    %176 = vector.shape_cast %175 : vector<1x8x8xf32> to vector<8x8xf32>
    %cst_92 = arith.constant dense<0.000000e+00> : vector<8x512xf32>
    %177 = tpu.matmul %176, %139, %cst_92 {dimension_numbers = #tpu.dot_dimension_numbers<[1], [0], [0], [1], [0, 0, 1, 1], [], []>} : vector<8x8xf32>, vector<8x512xf32>, vector<8x512xf32> -> vector<8x512xf32>
    %178 = arith.addf %174, %177 : vector<8x512xf32>
    %c511_i32_93 = arith.constant 511 : i32
    %179 = tpu.dynamic_rotate %139 by %c511_i32_93 dim 1 : vector<8x512xf32>, i32 -> vector<8x512xf32>
    %cst_94 = arith.constant 0.000000e+00 : f32
    %180 = vector.shape_cast %23 : vector<1x512xi1> to vector<1x512xi1>
    %181 = vector.broadcast %180 : vector<1x512xi1> to vector<8x512xi1>
    %182 = vector.broadcast %cst_94 : f32 to vector<8x512xf32>
    %183 = arith.select %181, %179, %182 : vector<8x512xi1>, vector<8x512xf32>
    %c5_95 = arith.constant 5 : index
    %c0_96 = arith.constant 0 : index
    %c0_97 = arith.constant 0 : index
    %184 = vector.load %arg2[%c5_95, %c0_96, %c0_97] : memref<9x8x8xf32, #tpu.memory_space<vmem>>, vector<1x8x8xf32>
    %185 = vector.shape_cast %184 : vector<1x8x8xf32> to vector<8x8xf32>
    %cst_98 = arith.constant dense<0.000000e+00> : vector<8x512xf32>
    %186 = tpu.matmul %185, %183, %cst_98 {dimension_numbers = #tpu.dot_dimension_numbers<[1], [0], [0], [1], [0, 0, 1, 1], [], []>} : vector<8x8xf32>, vector<8x512xf32>, vector<8x512xf32> -> vector<8x512xf32>
    %187 = arith.addf %178, %186 : vector<8x512xf32>
    %c497_i32_99 = arith.constant 497 : i32
    %188 = tpu.dynamic_rotate %139 by %c497_i32_99 dim 1 : vector<8x512xf32>, i32 -> vector<8x512xf32>
    %cst_100 = arith.constant 0.000000e+00 : f32
    %189 = vector.shape_cast %28 : vector<1x512xi1> to vector<1x512xi1>
    %190 = vector.broadcast %189 : vector<1x512xi1> to vector<8x512xi1>
    %191 = vector.broadcast %cst_100 : f32 to vector<8x512xf32>
    %192 = arith.select %190, %188, %191 : vector<8x512xi1>, vector<8x512xf32>
    %c6_101 = arith.constant 6 : index
    %c0_102 = arith.constant 0 : index
    %c0_103 = arith.constant 0 : index
    %193 = vector.load %arg2[%c6_101, %c0_102, %c0_103] : memref<9x8x8xf32, #tpu.memory_space<vmem>>, vector<1x8x8xf32>
    %194 = vector.shape_cast %193 : vector<1x8x8xf32> to vector<8x8xf32>
    %cst_104 = arith.constant dense<0.000000e+00> : vector<8x512xf32>
    %195 = tpu.matmul %194, %192, %cst_104 {dimension_numbers = #tpu.dot_dimension_numbers<[1], [0], [0], [1], [0, 0, 1, 1], [], []>} : vector<8x8xf32>, vector<8x512xf32>, vector<8x512xf32> -> vector<8x512xf32>
    %196 = arith.addf %187, %195 : vector<8x512xf32>
    %c496_i32_105 = arith.constant 496 : i32
    %197 = tpu.dynamic_rotate %139 by %c496_i32_105 dim 1 : vector<8x512xf32>, i32 -> vector<8x512xf32>
    %cst_106 = arith.constant 0.000000e+00 : f32
    %198 = vector.shape_cast %30 : vector<1x512xi1> to vector<1x512xi1>
    %199 = vector.broadcast %198 : vector<1x512xi1> to vector<8x512xi1>
    %200 = vector.broadcast %cst_106 : f32 to vector<8x512xf32>
    %201 = arith.select %199, %197, %200 : vector<8x512xi1>, vector<8x512xf32>
    %c7_107 = arith.constant 7 : index
    %c0_108 = arith.constant 0 : index
    %c0_109 = arith.constant 0 : index
    %202 = vector.load %arg2[%c7_107, %c0_108, %c0_109] : memref<9x8x8xf32, #tpu.memory_space<vmem>>, vector<1x8x8xf32>
    %203 = vector.shape_cast %202 : vector<1x8x8xf32> to vector<8x8xf32>
    %cst_110 = arith.constant dense<0.000000e+00> : vector<8x512xf32>
    %204 = tpu.matmul %203, %201, %cst_110 {dimension_numbers = #tpu.dot_dimension_numbers<[1], [0], [0], [1], [0, 0, 1, 1], [], []>} : vector<8x8xf32>, vector<8x512xf32>, vector<8x512xf32> -> vector<8x512xf32>
    %205 = arith.addf %196, %204 : vector<8x512xf32>
    %c495_i32_111 = arith.constant 495 : i32
    %206 = tpu.dynamic_rotate %139 by %c495_i32_111 dim 1 : vector<8x512xf32>, i32 -> vector<8x512xf32>
    %cst_112 = arith.constant 0.000000e+00 : f32
    %207 = vector.shape_cast %35 : vector<1x512xi1> to vector<1x512xi1>
    %208 = vector.broadcast %207 : vector<1x512xi1> to vector<8x512xi1>
    %209 = vector.broadcast %cst_112 : f32 to vector<8x512xf32>
    %210 = arith.select %208, %206, %209 : vector<8x512xi1>, vector<8x512xf32>
    %c8_113 = arith.constant 8 : index
    %c0_114 = arith.constant 0 : index
    %c0_115 = arith.constant 0 : index
    %211 = vector.load %arg2[%c8_113, %c0_114, %c0_115] : memref<9x8x8xf32, #tpu.memory_space<vmem>>, vector<1x8x8xf32>
    %212 = vector.shape_cast %211 : vector<1x8x8xf32> to vector<8x8xf32>
    %cst_116 = arith.constant dense<0.000000e+00> : vector<8x512xf32>
    %213 = tpu.matmul %212, %210, %cst_116 {dimension_numbers = #tpu.dot_dimension_numbers<[1], [0], [0], [1], [0, 0, 1, 1], [], []>} : vector<8x8xf32>, vector<8x512xf32>, vector<8x512xf32> -> vector<8x512xf32>
    %214 = arith.addf %205, %213 : vector<8x512xf32>
    %cst_117 = arith.constant dense<0.000000e+00> : vector<8xf32>
    %215 = vector.multi_reduction <add>, %214, %cst_117 [1] : vector<8x512xf32> to vector<8xf32>
    %216 = vector.shape_cast %215 : vector<8xf32> to vector<8x1xf32>
    %cst_118 = arith.constant 0.001953125 : f32
    %217 = vector.broadcast %cst_118 : f32 to vector<8x1xf32>
    %218 = arith.mulf %216, %217 : vector<8x1xf32>
    %219 = arith.mulf %214, %214 : vector<8x512xf32>
    %cst_119 = arith.constant dense<0.000000e+00> : vector<8xf32>
    %220 = vector.multi_reduction <add>, %219, %cst_119 [1] : vector<8x512xf32> to vector<8xf32>
    %221 = vector.shape_cast %220 : vector<8xf32> to vector<8x1xf32>
    %cst_120 = arith.constant 0.001953125 : f32
    %222 = vector.broadcast %cst_120 : f32 to vector<8x1xf32>
    %223 = arith.mulf %221, %222 : vector<8x1xf32>
    %224 = arith.mulf %218, %218 : vector<8x1xf32>
    %225 = arith.subf %223, %224 : vector<8x1xf32>
    %cst_121 = arith.constant 0.000000e+00 : f32
    %226 = vector.broadcast %cst_121 : f32 to vector<8x1xf32>
    %227 = arith.maximumf %225, %226 : vector<8x1xf32>
    %cst_122 = arith.constant 9.99999974E-6 : f32
    %228 = vector.broadcast %cst_122 : f32 to vector<8x1xf32>
    %229 = arith.addf %227, %228 : vector<8x1xf32>
    %230 = math.rsqrt %229 : vector<8x1xf32>
    %231 = arith.mulf %230, %38 : vector<8x1xf32>
    %232 = arith.mulf %218, %231 : vector<8x1xf32>
    %233 = arith.subf %39, %232 : vector<8x1xf32>
    %234 = vector.broadcast %231 : vector<8x1xf32> to vector<8x512xf32>
    %235 = arith.mulf %214, %234 : vector<8x512xf32>
    %236 = vector.broadcast %233 : vector<8x1xf32> to vector<8x512xf32>
    %237 = arith.addf %235, %236 : vector<8x512xf32>
    %238 = arith.addf %237, %0 : vector<8x512xf32>
    %cst_123 = arith.constant 0.000000e+00 : f32
    %239 = vector.broadcast %cst_123 : f32 to vector<8x512xf32>
    %240 = arith.maximumf %238, %239 : vector<8x512xf32>
    %c0_124 = arith.constant 0 : index
    %c0_125 = arith.constant 0 : index
    %241 = vector.load %arg4[%c0_124, %c0_125] : memref<8x512xf32, #tpu.memory_space<vmem>>, vector<8x512xf32>
    tpu.vector_store %arg4[%c0_124, %c0_125], %240 {strides = array<i32>} : memref<8x512xf32, #tpu.memory_space<vmem>>, vector<8x512xf32>,
    return
  }
}

</mosaic_0001>

<llo_original>
// kernel: tpu_custom_call.1
$region0: #{tpu_custom_call.1}
  #allocation0 [shape = 'u32[]', space=smem, size = 0x4, offset = 0x4, fixed_abs, tag = 'smem constant byte address 0x4 - core index']
  #allocation1 [shape = 'u32[144,128]{1,0:T(1,128)}', space=vmem, size = 0x12000, scoped, tag = 'internal scratch']
  %s0 = inlined_call_operand.vmem [shape: f32[8,512], index: 0, kind: input, shape index: {}]
  %s1 = inlined_call_operand.vmem [shape: f32[9,8,8], index: 1, kind: input, shape index: {}]
  %s2 = inlined_call_operand.vmem [shape: f32[9,8,8], index: 2, kind: input, shape index: {}]
  %s3 = inlined_call_operand.vmem [shape: f32[8,4], index: 3, kind: input, shape index: {}]
  %s4 = inlined_call_operand.hbm [shape: f32[8,512], index: 4, kind: output, shape index: {}]
  %s5 = sld [smem:[#allocation0]]
  $region26: #{tpu_custom_call.1} parent=0
    _
  %s7 = ssub.s32 1, %s5
  %s8 = scalar_select 0, %s7, %s5
  $region1: #{tpu_custom_call.1} parent=0
    #allocation2 [shape = 'u8[16384]{0}', space=vmem, size = 0x4000, scoped, tag = 'output window, operand 0, single buffered']
    #allocation3 [shape = 's32[1]{0}', space=sflag, size = 0x4, scoped, tag = 'scoped memory for tpu_custom_call.1']
    %9 = vsyncpa [#allocation3], 0
    // Predicated region
    $region2: #{tpu_custom_call.1} parent=1 // pred_check
      _
    $region3: #{tpu_custom_call.1} parent=1 // pred_check_branch
      %11 = sbr.rel (0) target = $region5
    $region4: #{tpu_custom_call.1} parent=1 // pred_region
      _
    $region5: #{tpu_custom_call.1} parent=1 // pred_fallthru
      _
    // Predicated region
    $region6: #{tpu_custom_call.1} parent=1 // pred_check
      _
    $region7: #{tpu_custom_call.1} parent=1 // pred_check_branch
      %13 = sbr.rel (0) target = $region9
    $region8: #{tpu_custom_call.1} parent=1 // pred_region
      _
    $region9: #{tpu_custom_call.1} parent=1 // pred_fallthru
      _
    // Predicated region
    $region10: #{tpu_custom_call.1} parent=1 // pred_check
      _
    $region11: #{tpu_custom_call.1} parent=1 // pred_check_branch
      %15 = sbr.rel (0) target = $region13
    $region12: #{tpu_custom_call.1} parent=1 // pred_region
      _
    $region13: #{tpu_custom_call.1} parent=1 // pred_fallthru
      _
    // Predicated region
    $region14: #{tpu_custom_call.1} parent=1 // pred_check
      _
    $region15: #{tpu_custom_call.1} parent=1 // pred_check_branch
      %17 = sbr.rel (0) target = $region17
    $region16: #{tpu_custom_call.1} parent=1 // pred_region
      _
    $region17: #{tpu_custom_call.1} parent=1 // pred_fallthru
      _
    %v18 = vld [vmem:[%s0] sm:$0xff]
    %v19 = vld [vmem:[%s0 + $0x8] sm:$0xff]
    %v20 = vld [vmem:[%s0 + $0x10] sm:$0xff]
    %v21 = vld [vmem:[%s0 + $0x18] sm:$0xff]
    %v22 = vlaneseq
    %v23 = vand.u32 %v22, 127
    %v24 = vadd.s32 %v23, 128
    %v25 = vadd.s32 %v23, 256
    %v26 = vadd.s32 %v23, 384
    %v27 = vand.u32 %v23, 15
    %v28 = vand.u32 %v24, 15
    %v29 = vand.u32 %v25, 15
    %v30 = vand.u32 %v26, 15
    %v31 = vshra.s32 %v23, 4
    %v32 = vshra.s32 %v24, 4
    %v33 = vshra.s32 %v25, 4
    %v34 = vshra.s32 %v26, 4
    %v35 = vand.u32 %v31, 15
    %v36 = vand.u32 %v32, 15
    %v37 = vand.u32 %v33, 15
    %v38 = vand.u32 %v34, 15
    %vm39 = vcmp.ge.s32.totalorder %v35, 1
    %vm40 = vcmp.ge.s32.totalorder %v36, 1
    %vm41 = vcmp.ge.s32.totalorder %v37, 1
    %vm42 = vcmp.ge.s32.totalorder %v38, 1
    %vm43 = vcmp.ge.s32.totalorder %v27, 1
    %vm44 = vcmp.ge.s32.totalorder %v28, 1
    %vm45 = vcmp.ge.s32.totalorder %v29, 1
    %vm46 = vcmp.ge.s32.totalorder %v30, 1
    %vm47 = vmand %vm39, %vm43
    %vm48 = vmand %vm40, %vm44
    %vm49 = vmand %vm41, %vm45
    %vm50 = vmand %vm42, %vm46
    %vm51 = vcmp.lt.s32.totalorder %v27, 15
    %vm52 = vcmp.lt.s32.totalorder %v28, 15
    %vm53 = vcmp.lt.s32.totalorder %v29, 15
    %vm54 = vcmp.lt.s32.totalorder %v30, 15
    %vm55 = vmand %vm39, %vm51
    %vm56 = vmand %vm40, %vm52
    %vm57 = vmand %vm41, %vm53
    %vm58 = vmand %vm42, %vm54
    %vm59 = vcmp.lt.s32.totalorder %v35, 15
    %vm60 = vcmp.lt.s32.totalorder %v36, 15
    %vm61 = vcmp.lt.s32.totalorder %v37, 15
    %vm62 = vcmp.lt.s32.totalorder %v38, 15
    %vm63 = vmand %vm59, %vm43
    %vm64 = vmand %vm60, %vm44
    %vm65 = vmand %vm61, %vm45
    %vm66 = vmand %vm62, %vm46
    %vm67 = vmand %vm59, %vm51
    %vm68 = vmand %vm60, %vm52
    %vm69 = vmand %vm61, %vm53
    %vm70 = vmand %vm62, %vm54
    %v71 = vld [vmem:[%s3] sm:$0xff]
    %72 = vrot.lane.b32.xlu0 %v18, 17
    %v73 = vpop.permute.xlu0 %72
    %74 = vrot.lane.b32.xlu0 %v19, 17
    %v75 = vpop.permute.xlu0 %74
    %76 = vrot.lane.b32.xlu0 %v20, 17
    %v77 = vpop.permute.xlu0 %76
    %78 = vrot.lane.b32.xlu0 %v21, 17
    %v79 = vpop.permute.xlu0 %78
    %vm80 = vcmp.lt.s32.totalorder %v23, 17
    %v81 = vsel %vm80, %v77, %v79
    %v82 = vsel %vm80, %v75, %v77
    %v83 = vsel %vm80, %v73, %v75
    %v84 = vsel %vm80, %v79, %v73
    %v85 = vsel %vm47, 1, 0
    %v86 = vsel %vm48, 1, 0
    %v87 = vsel %vm49, 1, 0
    %v88 = vsel %vm50, 1, 0
    %vm89 = vcmp.eq.s32.totalorder %v85, 1
    %vm90 = vcmp.eq.s32.totalorder %v86, 1
    %vm91 = vcmp.eq.s32.totalorder %v87, 1
    %vm92 = vcmp.eq.s32.totalorder %v88, 1
    %v93 = vsel %vm89, %v84, 0.0
    %v94 = vsel %vm90, %v83, 0.0
    %v95 = vsel %vm91, %v82, 0.0
    %v96 = vsel %vm92, %v81, 0.0
    %v97 = vld [vmem:[%s1] sm:$0xff]
    %98 = vrot.lane.b32.xlu0 %v18, 16
    %v99 = vpop.permute.xlu0 %98
    %100 = vrot.lane.b32.xlu0 %v19, 16
    %v101 = vpop.permute.xlu0 %100
    %102 = vrot.lane.b32.xlu0 %v20, 16
    %v103 = vpop.permute.xlu0 %102
    %104 = vrot.lane.b32.xlu0 %v21, 16
    %v105 = vpop.permute.xlu0 %104
    %vm106 = vcmp.lt.s32.totalorder %v23, 16
    %v107 = vsel %vm106, %v103, %v105
    %v108 = vsel %vm106, %v101, %v103
    %v109 = vsel %vm106, %v99, %v101
    %v110 = vsel %vm106, %v105, %v99
    %v111 = vsel %vm39, 1, 0
    %v112 = vsel %vm40, 1, 0
    %v113 = vsel %vm41, 1, 0
    %v114 = vsel %vm42, 1, 0
    %vm115 = vcmp.eq.s32.totalorder %v111, 1
    %vm116 = vcmp.eq.s32.totalorder %v112, 1
    %vm117 = vcmp.eq.s32.totalorder %v113, 1
    %vm118 = vcmp.eq.s32.totalorder %v114, 1
    %v119 = vsel %vm115, %v110, 0.0
    %v120 = vsel %vm116, %v109, 0.0
    %v121 = vsel %vm117, %v108, 0.0
    %v122 = vsel %vm118, %v107, 0.0
    %s123 = scalar_lea.vmem %s1, 8
    %v124 = vld [vmem:[%s123] sm:$0xff]
    %vm125 = vcmask 64512
    %v127 = vsel %vm125, %v124, 0
    %129 = vmatprep.subr.mxu0 %v120
    %130 = vmatpush1.msra.mxu0 %v119
    %131 = vmatprep.subr.mxu0 0.0
    %132 = vmatpush1.msra.mxu0 0.0
    %133 = vmatprep.subr.mxu0 0.0
    %134 = vmatpush1.msra.mxu0 0.0
    %135 = vmatprep.subr.mxu0 0.0
    %136 = vmatpush1.msra.mxu0 0.0
    %137 = vmatprep.subr.mxu0 0.0
    %138 = vmatpush1.msra.mxu0 0.0
    %139 = vmatprep.subr.mxu0 0.0
    %140 = vmatpush1.msra.mxu0 0.0
    %141 = vmatprep.subr.mxu0 0.0
    %142 = vmatpush1.msra.mxu0 0.0
    %143 = vmatprep.subr.mxu0 0.0
    %144 = vmatpush1.msra.mxu0 0.0
    %145 = vmatprep.subr.mxu0 0.0
    %146 = vmatpush1.msra.mxu0 0.0
    %147 = vmatprep.subr.mxu0 0.0
    %148 = vmatpush1.msra.mxu0 0.0
    %149 = vmatprep.subr.mxu0 0.0
    %150 = vmatpush1.msra.mxu0 0.0
    %151 = vmatprep.subr.mxu0 0.0
    %152 = vmatpush1.msra.mxu0 0.0
    %153 = vmatprep.subr.mxu0 0.0
    %154 = vmatpush1.msra.mxu0 0.0
    %155 = vmatprep.subr.mxu0 0.0
    %156 = vmatpush1.msra.mxu0 0.0
    %157 = vmatprep.subr.mxu0 0.0
    %158 = vmatpush1.msra.mxu0 0.0
    %159 = vmatprep.subr.mxu0 0.0
    %160 = vmatpush1.msra.mxu0 0.0
    %161 = vmatprep.subr.mxu0 0.0
    %162 = vmatpush1.msra.mxu0 0.0
    %163 = vmatprep.subr.mxu0 0.0
    %164 = vmatpush1.msra.mxu0 0.0
    %165 = vmatprep.subr.mxu0 0.0
    %166 = vmatpush1.msra.mxu0 0.0
    %167 = vmatprep.subr.mxu0 0.0
    %168 = vmatpush1.msra.mxu0 0.0
    %169 = vmatprep.subr.mxu0 0.0
    %170 = vmatpush1.msra.mxu0 0.0
    %171 = vmatprep.subr.mxu0 0.0
    %172 = vmatpush1.msra.mxu0 0.0
    %173 = vmatprep.subr.mxu0 0.0
    %174 = vmatpush1.msra.mxu0 0.0
    %175 = vmatprep.subr.mxu0 0.0
    %176 = vmatpush1.msra.mxu0 0.0
    %177 = vmatprep.subr.mxu0 0.0
    %178 = vmatpush1.msra.mxu0 0.0
    %179 = vmatprep.subr.mxu0 0.0
    %180 = vmatpush1.msra.mxu0 0.0
    %181 = vmatprep.subr.mxu0 0.0
    %182 = vmatpush1.msra.mxu0 0.0
    %183 = vmatprep.subr.mxu0 0.0
    %184 = vmatpush1.msra.mxu0 0.0
    %185 = vmatprep.subr.mxu0 0.0
    %186 = vmatpush1.msra.mxu0 0.0
    %187 = vmatprep.subr.mxu0 0.0
    %188 = vmatpush1.msra.mxu0 0.0
    %189 = vmatprep.subr.mxu0 0.0
    %190 = vmatpush1.msra.mxu0 0.0
    %191 = vmatprep.subr.mxu0 0.0
    %192 = vmatpush1.msra.mxu0 0.0
    %193 = vmatprep.mubr.f32.mxu0 0.0
    %194 = vmatmul.mubr.f32.gmra.mrb[0].mxu0 %v127
    %v195 = vpop.f32.mrb[0].mxu0
    %v196 = vadd.f32 0.0, %v195
    %v197 = vpop.f32.mrb[0].mxu0
    %v198 = vadd.f32 0.0, %v197
    %199 = vdwg.mxu0
    %200 = vmatprep.subr.mxu0 %v122
    %201 = vmatpush1.msra.mxu0 %v121
    %202 = vmatprep.subr.mxu0 0.0
    %203 = vmatpush1.msra.mxu0 0.0
    %204 = vmatprep.subr.mxu0 0.0
    %205 = vmatpush1.msra.mxu0 0.0
    %206 = vmatprep.subr.mxu0 0.0
    %207 = vmatpush1.msra.mxu0 0.0
    %208 = vmatprep.subr.mxu0 0.0
    %209 = vmatpush1.msra.mxu0 0.0
    %210 = vmatprep.subr.mxu0 0.0
    %211 = vmatpush1.msra.mxu0 0.0
    %212 = vmatprep.subr.mxu0 0.0
    %213 = vmatpush1.msra.mxu0 0.0
    %214 = vmatprep.subr.mxu0 0.0
    %215 = vmatpush1.msra.mxu0 0.0
    %216 = vmatprep.subr.mxu0 0.0
    %217 = vmatpush1.msra.mxu0 0.0
    %218 = vmatprep.subr.mxu0 0.0
    %219 = vmatpush1.msra.mxu0 0.0
    %220 = vmatprep.subr.mxu0 0.0
    %221 = vmatpush1.msra.mxu0 0.0
    %222 = vmatprep.subr.mxu0 0.0
    %223 = vmatpush1.msra.mxu0 0.0
    %224 = vmatprep.subr.mxu0 0.0
    %225 = vmatpush1.msra.mxu0 0.0
    %226 = vmatprep.subr.mxu0 0.0
    %227 = vmatpush1.msra.mxu0 0.0
    %228 = vmatprep.subr.mxu0 0.0
    %229 = vmatpush1.msra.mxu0 0.0
    %230 = vmatprep.subr.mxu0 0.0
    %231 = vmatpush1.msra.mxu0 0.0
    %232 = vmatprep.subr.mxu0 0.0
    %233 = vmatpush1.msra.mxu0 0.0
    %234 = vmatprep.subr.mxu0 0.0
    %235 = vmatpush1.msra.mxu0 0.0
    %236 = vmatprep.subr.mxu0 0.0
    %237 = vmatpush1.msra.mxu0 0.0
    %238 = vmatprep.subr.mxu0 0.0
    %239 = vmatpush1.msra.mxu0 0.0
    %240 = vmatprep.subr.mxu0 0.0
    %241 = vmatpush1.msra.mxu0 0.0
    %242 = vmatprep.subr.mxu0 0.0
    %243 = vmatpush1.msra.mxu0 0.0
    %244 = vmatprep.subr.mxu0 0.0
    %245 = vmatpush1.msra.mxu0 0.0
    %246 = vmatprep.subr.mxu0 0.0
    %247 = vmatpush1.msra.mxu0 0.0
    %248 = vmatprep.subr.mxu0 0.0
    %249 = vmatpush1.msra.mxu0 0.0
    %250 = vmatprep.subr.mxu0 0.0
    %251 = vmatpush1.msra.mxu0 0.0
    %252 = vmatprep.subr.mxu0 0.0
    %253 = vmatpush1.msra.mxu0 0.0
    %254 = vmatprep.subr.mxu0 0.0
    %255 = vmatpush1.msra.mxu0 0.0
    %256 = vmatprep.subr.mxu0 0.0
    %257 = vmatpush1.msra.mxu0 0.0
    %258 = vmatprep.subr.mxu0 0.0
    %259 = vmatpush1.msra.mxu0 0.0
    %260 = vmatprep.subr.mxu0 0.0
    %261 = vmatpush1.msra.mxu0 0.0
    %262 = vmatprep.subr.mxu0 0.0
    %263 = vmatpush1.msra.mxu0 0.0
    %264 = vmatprep.mubr.f32.mxu0 0.0
    %265 = vmatmul.mubr.f32.gmra.mrb[0].mxu0 %v127
    %v266 = vpop.f32.mrb[0].mxu0
    %v267 = vadd.f32 0.0, %v266
    %v268 = vpop.f32.mrb[0].mxu0
    %v269 = vadd.f32 0.0, %v268
    %270 = vdwg.mxu0
    %v272 = vsel %vm125, %v97, 0
    %274 = vmatprep.subr.mxu0 %v94
    %275 = vmatpush1.msra.mxu0 %v93
    %276 = vmatprep.subr.mxu0 0.0
    %277 = vmatpush1.msra.mxu0 0.0
    %278 = vmatprep.subr.mxu0 0.0
    %279 = vmatpush1.msra.mxu0 0.0
    %280 = vmatprep.subr.mxu0 0.0
    %281 = vmatpush1.msra.mxu0 0.0
    %282 = vmatprep.subr.mxu0 0.0
    %283 = vmatpush1.msra.mxu0 0.0
    %284 = vmatprep.subr.mxu0 0.0
    %285 = vmatpush1.msra.mxu0 0.0
    %286 = vmatprep.subr.mxu0 0.0
    %287 = vmatpush1.msra.mxu0 0.0
    %288 = vmatprep.subr.mxu0 0.0
    %289 = vmatpush1.msra.mxu0 0.0
    %290 = vmatprep.subr.mxu0 0.0
    %291 = vmatpush1.msra.mxu0 0.0
    %292 = vmatprep.subr.mxu0 0.0
    %293 = vmatpush1.msra.mxu0 0.0
    %294 = vmatprep.subr.mxu0 0.0
    %295 = vmatpush1.msra.mxu0 0.0
    %296 = vmatprep.subr.mxu0 0.0
    %297 = vmatpush1.msra.mxu0 0.0
    %298 = vmatprep.subr.mxu0 0.0
    %299 = vmatpush1.msra.mxu0 0.0
    %300 = vmatprep.subr.mxu0 0.0
    %301 = vmatpush1.msra.mxu0 0.0
    %302 = vmatprep.subr.mxu0 0.0
    %303 = vmatpush1.msra.mxu0 0.0
    %304 = vmatprep.subr.mxu0 0.0
    %305 = vmatpush1.msra.mxu0 0.0
    %306 = vmatprep.subr.mxu0 0.0
    %307 = vmatpush1.msra.mxu0 0.0
    %308 = vmatprep.subr.mxu0 0.0
    %309 = vmatpush1.msra.mxu0 0.0
    %310 = vmatprep.subr.mxu0 0.0
    %311 = vmatpush1.msra.mxu0 0.0
    %312 = vmatprep.subr.mxu0 0.0
    %313 = vmatpush1.msra.mxu0 0.0
    %314 = vmatprep.subr.mxu0 0.0
    %315 = vmatpush1.msra.mxu0 0.0
    %316 = vmatprep.subr.mxu0 0.0
    %317 = vmatpush1.msra.mxu0 0.0
    %318 = vmatprep.subr.mxu0 0.0
    %319 = vmatpush1.msra.mxu0 0.0
    %320 = vmatprep.subr.mxu0 0.0
    %321 = vmatpush1.msra.mxu0 0.0
    %322 = vmatprep.subr.mxu0 0.0
    %323 = vmatpush1.msra.mxu0 0.0
    %324 = vmatprep.subr.mxu0 0.0
    %325 = vmatpush1.msra.mxu0 0.0
    %326 = vmatprep.subr.mxu0 0.0
    %327 = vmatpush1.msra.mxu0 0.0
    %328 = vmatprep.subr.mxu0 0.0
    %329 = vmatpush1.msra.mxu0 0.0
    %330 = vmatprep.subr.mxu0 0.0
    %331 = vmatpush1.msra.mxu0 0.0
    %332 = vmatprep.subr.mxu0 0.0
    %333 = vmatpush1.msra.mxu0 0.0
    %334 = vmatprep.subr.mxu0 0.0
    %335 = vmatpush1.msra.mxu0 0.0
    %336 = vmatprep.subr.mxu0 0.0
    %337 = vmatpush1.msra.mxu0 0.0
    %338 = vmatprep.mubr.f32.mxu0 0.0
    %339 = vmatmul.mubr.f32.gmra.mrb[0].mxu0 %v272
    %v340 = vpop.f32.mrb[0].mxu0
    %v341 = vadd.f32 %v196, %v340
    %v342 = vpop.f32.mrb[0].mxu0
    %v343 = vadd.f32 %v198, %v342
    %344 = vdwg.mxu0
    %345 = vmatprep.subr.mxu0 %v96
    %346 = vmatpush1.msra.mxu0 %v95
    %347 = vmatprep.subr.mxu0 0.0
    %348 = vmatpush1.msra.mxu0 0.0
    %349 = vmatprep.subr.mxu0 0.0
    %350 = vmatpush1.msra.mxu0 0.0
    %351 = vmatprep.subr.mxu0 0.0
    %352 = vmatpush1.msra.mxu0 0.0
    %353 = vmatprep.subr.mxu0 0.0
    %354 = vmatpush1.msra.mxu0 0.0
    %355 = vmatprep.subr.mxu0 0.0
    %356 = vmatpush1.msra.mxu0 0.0
    %357 = vmatprep.subr.mxu0 0.0
    %358 = vmatpush1.msra.mxu0 0.0
    %359 = vmatprep.subr.mxu0 0.0
    %360 = vmatpush1.msra.mxu0 0.0
    %361 = vmatprep.subr.mxu0 0.0
    %362 = vmatpush1.msra.mxu0 0.0
    %363 = vmatprep.subr.mxu0 0.0
    %364 = vmatpush1.msra.mxu0 0.0
    %365 = vmatprep.subr.mxu0 0.0
    %366 = vmatpush1.msra.mxu0 0.0
    %367 = vmatprep.subr.mxu0 0.0
    %368 = vmatpush1.msra.mxu0 0.0
    %369 = vmatprep.subr.mxu0 0.0
    %370 = vmatpush1.msra.mxu0 0.0
    %371 = vmatprep.subr.mxu0 0.0
    %372 = vmatpush1.msra.mxu0 0.0
    %373 = vmatprep.subr.mxu0 0.0
    %374 = vmatpush1.msra.mxu0 0.0
    %375 = vmatprep.subr.mxu0 0.0
    %376 = vmatpush1.msra.mxu0 0.0
    %377 = vmatprep.subr.mxu0 0.0
    %378 = vmatpush1.msra.mxu0 0.0
    %379 = vmatprep.subr.mxu0 0.0
    %380 = vmatpush1.msra.mxu0 0.0
    %381 = vmatprep.subr.mxu0 0.0
    %382 = vmatpush1.msra.mxu0 0.0
    %383 = vmatprep.subr.mxu0 0.0
    %384 = vmatpush1.msra.mxu0 0.0
    %385 = vmatprep.subr.mxu0 0.0
    %386 = vmatpush1.msra.mxu0 0.0
    %387 = vmatprep.subr.mxu0 0.0
    %388 = vmatpush1.msra.mxu0 0.0
    %389 = vmatprep.subr.mxu0 0.0
    %390 = vmatpush1.msra.mxu0 0.0
    %391 = vmatprep.subr.mxu0 0.0
    %392 = vmatpush1.msra.mxu0 0.0
    %393 = vmatprep.subr.mxu0 0.0
    %394 = vmatpush1.msra.mxu0 0.0
    %395 = vmatprep.subr.mxu0 0.0
    %396 = vmatpush1.msra.mxu0 0.0
    %397 = vmatprep.subr.mxu0 0.0
    %398 = vmatpush1.msra.mxu0 0.0
    %399 = vmatprep.subr.mxu0 0.0
    %400 = vmatpush1.msra.mxu0 0.0
    %401 = vmatprep.subr.mxu0 0.0
    %402 = vmatpush1.msra.mxu0 0.0
    %403 = vmatprep.subr.mxu0 0.0
    %404 = vmatpush1.msra.mxu0 0.0
    %405 = vmatprep.subr.mxu0 0.0
    %406 = vmatpush1.msra.mxu0 0.0
    %407 = vmatprep.subr.mxu0 0.0
    %408 = vmatpush1.msra.mxu0 0.0
    %409 = vmatprep.mubr.f32.mxu0 0.0
    %410 = vmatmul.mubr.f32.gmra.mrb[0].mxu0 %v272
    %v411 = vpop.f32.mrb[0].mxu0
    %v412 = vadd.f32 %v267, %v411
    %v413 = vpop.f32.mrb[0].mxu0
    %v414 = vadd.f32 %v269, %v413
    %415 = vdwg.mxu0
    %416 = vrot.lane.b32.xlu0 %v18, 15
    %v417 = vpop.permute.xlu0 %416
    %418 = vrot.lane.b32.xlu0 %v19, 15
    %v419 = vpop.permute.xlu0 %418
    %420 = vrot.lane.b32.xlu0 %v20, 15
    %v421 = vpop.permute.xlu0 %420
    %422 = vrot.lane.b32.xlu0 %v21, 15
    %v423 = vpop.permute.xlu0 %422
    %vm424 = vcmp.lt.s32.totalorder %v23, 15
    %v425 = vsel %vm424, %v421, %v423
    %v426 = vsel %vm424, %v419, %v421
    %v427 = vsel %vm424, %v417, %v419
    %v428 = vsel %vm424, %v423, %v417
    %v429 = vsel %vm55, 1, 0
    %v430 = vsel %vm56, 1, 0
    %v431 = vsel %vm57, 1, 0
    %v432 = vsel %vm58, 1, 0
    %vm433 = vcmp.eq.s32.totalorder %v429, 1
    %vm434 = vcmp.eq.s32.totalorder %v430, 1
    %vm435 = vcmp.eq.s32.totalorder %v431, 1
    %vm436 = vcmp.eq.s32.totalorder %v432, 1
    %v437 = vsel %vm433, %v428, 0.0
    %v438 = vsel %vm434, %v427, 0.0
    %v439 = vsel %vm435, %v426, 0.0
    %v440 = vsel %vm436, %v425, 0.0
    %s441 = scalar_lea.vmem %s1, 16
    %v442 = vld [vmem:[%s441] sm:$0xff]
    %v444 = vsel %vm125, %v442, 0
    %446 = vmatprep.subr.mxu0 %v438
    %447 = vmatpush1.msra.mxu0 %v437
    %448 = vmatprep.subr.mxu0 0.0
    %449 = vmatpush1.msra.mxu0 0.0
    %450 = vmatprep.subr.mxu0 0.0
    %451 = vmatpush1.msra.mxu0 0.0
    %452 = vmatprep.subr.mxu0 0.0
    %453 = vmatpush1.msra.mxu0 0.0
    %454 = vmatprep.subr.mxu0 0.0
    %455 = vmatpush1.msra.mxu0 0.0
    %456 = vmatprep.subr.mxu0 0.0
    %457 = vmatpush1.msra.mxu0 0.0
    %458 = vmatprep.subr.mxu0 0.0
    %459 = vmatpush1.msra.mxu0 0.0
    %460 = vmatprep.subr.mxu0 0.0
    %461 = vmatpush1.msra.mxu0 0.0
    %462 = vmatprep.subr.mxu0 0.0
    %463 = vmatpush1.msra.mxu0 0.0
    %464 = vmatprep.subr.mxu0 0.0
    %465 = vmatpush1.msra.mxu0 0.0
    %466 = vmatprep.subr.mxu0 0.0
    %467 = vmatpush1.msra.mxu0 0.0
    %468 = vmatprep.subr.mxu0 0.0
    %469 = vmatpush1.msra.mxu0 0.0
    %470 = vmatprep.subr.mxu0 0.0
    %471 = vmatpush1.msra.mxu0 0.0
    %472 = vmatprep.subr.mxu0 0.0
    %473 = vmatpush1.msra.mxu0 0.0
    %474 = vmatprep.subr.mxu0 0.0
    %475 = vmatpush1.msra.mxu0 0.0
    %476 = vmatprep.subr.mxu0 0.0
    %477 = vmatpush1.msra.mxu0 0.0
    %478 = vmatprep.subr.mxu0 0.0
    %479 = vmatpush1.msra.mxu0 0.0
    %480 = vmatprep.subr.mxu0 0.0
    %481 = vmatpush1.msra.mxu0 0.0
    %482 = vmatprep.subr.mxu0 0.0
    %483 = vmatpush1.msra.mxu0 0.0
    %484 = vmatprep.subr.mxu0 0.0
    %485 = vmatpush1.msra.mxu0 0.0
    %486 = vmatprep.subr.mxu0 0.0
    %487 = vmatpush1.msra.mxu0 0.0
    %488 = vmatprep.subr.mxu0 0.0
    %489 = vmatpush1.msra.mxu0 0.0
    %490 = vmatprep.subr.mxu0 0.0
    %491 = vmatpush1.msra.mxu0 0.0
    %492 = vmatprep.subr.mxu0 0.0
    %493 = vmatpush1.msra.mxu0 0.0
    %494 = vmatprep.subr.mxu0 0.0
    %495 = vmatpush1.msra.mxu0 0.0
    %496 = vmatprep.subr.mxu0 0.0
    %497 = vmatpush1.msra.mxu0 0.0
    %498 = vmatprep.subr.mxu0 0.0
    %499 = vmatpush1.msra.mxu0 0.0
    %500 = vmatprep.subr.mxu0 0.0
    %501 = vmatpush1.msra.mxu0 0.0
    %502 = vmatprep.subr.mxu0 0.0
    %503 = vmatpush1.msra.mxu0 0.0
    %504 = vmatprep.subr.mxu0 0.0
    %505 = vmatpush1.msra.mxu0 0.0
    %506 = vmatprep.subr.mxu0 0.0
    %507 = vmatpush1.msra.mxu0 0.0
    %508 = vmatprep.subr.mxu0 0.0
    %509 = vmatpush1.msra.mxu0 0.0
    %510 = vmatprep.mubr.f32.mxu0 0.0
    %511 = vmatmul.mubr.f32.gmra.mrb[0].mxu0 %v444
    %v512 = vpop.f32.mrb[0].mxu0
    %v513 = vadd.f32 0.0, %v512
    %v514 = vpop.f32.mrb[0].mxu0
    %v515 = vadd.f32 0.0, %v514
    %516 = vdwg.mxu0
    %517 = vmatprep.subr.mxu0 %v440
    %518 = vmatpush1.msra.mxu0 %v439
    %519 = vmatprep.subr.mxu0 0.0
    %520 = vmatpush1.msra.mxu0 0.0
    %521 = vmatprep.subr.mxu0 0.0
    %522 = vmatpush1.msra.mxu0 0.0
    %523 = vmatprep.subr.mxu0 0.0
    %524 = vmatpush1.msra.mxu0 0.0
    %525 = vmatprep.subr.mxu0 0.0
    %526 = vmatpush1.msra.mxu0 0.0
    %527 = vmatprep.subr.mxu0 0.0
    %528 = vmatpush1.msra.mxu0 0.0
    %529 = vmatprep.subr.mxu0 0.0
    %530 = vmatpush1.msra.mxu0 0.0
    %531 = vmatprep.subr.mxu0 0.0
    %532 = vmatpush1.msra.mxu0 0.0
    %533 = vmatprep.subr.mxu0 0.0
    %534 = vmatpush1.msra.mxu0 0.0
    %535 = vmatprep.subr.mxu0 0.0
    %536 = vmatpush1.msra.mxu0 0.0
    %537 = vmatprep.subr.mxu0 0.0
    %538 = vmatpush1.msra.mxu0 0.0
    %539 = vmatprep.subr.mxu0 0.0
    %540 = vmatpush1.msra.mxu0 0.0
    %541 = vmatprep.subr.mxu0 0.0
    %542 = vmatpush1.msra.mxu0 0.0
    %543 = vmatprep.subr.mxu0 0.0
    %544 = vmatpush1.msra.mxu0 0.0
    %545 = vmatprep.subr.mxu0 0.0
    %546 = vmatpush1.msra.mxu0 0.0
    %547 = vmatprep.subr.mxu0 0.0
    %548 = vmatpush1.msra.mxu0 0.0
    %549 = vmatprep.subr.mxu0 0.0
    %550 = vmatpush1.msra.mxu0 0.0
    %551 = vmatprep.subr.mxu0 0.0
    %552 = vmatpush1.msra.mxu0 0.0
    %553 = vmatprep.subr.mxu0 0.0
    %554 = vmatpush1.msra.mxu0 0.0
    %555 = vmatprep.subr.mxu0 0.0
    %556 = vmatpush1.msra.mxu0 0.0
    %557 = vmatprep.subr.mxu0 0.0
    %558 = vmatpush1.msra.mxu0 0.0
    %559 = vmatprep.subr.mxu0 0.0
    %560 = vmatpush1.msra.mxu0 0.0
    %561 = vmatprep.subr.mxu0 0.0
    %562 = vmatpush1.msra.mxu0 0.0
    %563 = vmatprep.subr.mxu0 0.0
    %564 = vmatpush1.msra.mxu0 0.0
    %565 = vmatprep.subr.mxu0 0.0
    %566 = vmatpush1.msra.mxu0 0.0
    %567 = vmatprep.subr.mxu0 0.0
    %568 = vmatpush1.msra.mxu0 0.0
    %569 = vmatprep.subr.mxu0 0.0
    %570 = vmatpush1.msra.mxu0 0.0
    %571 = vmatprep.subr.mxu0 0.0
    %572 = vmatpush1.msra.mxu0 0.0
    %573 = vmatprep.subr.mxu0 0.0
    %574 = vmatpush1.msra.mxu0 0.0
    %575 = vmatprep.subr.mxu0 0.0
    %576 = vmatpush1.msra.mxu0 0.0
    %577 = vmatprep.subr.mxu0 0.0
    %578 = vmatpush1.msra.mxu0 0.0
    %579 = vmatprep.subr.mxu0 0.0
    %580 = vmatpush1.msra.mxu0 0.0
    %581 = vmatprep.mubr.f32.mxu0 0.0
    %582 = vmatmul.mubr.f32.gmra.mrb[0].mxu0 %v444
    %v583 = vpop.f32.mrb[0].mxu0
    %v584 = vadd.f32 0.0, %v583
    %v585 = vpop.f32.mrb[0].mxu0
    %v586 = vadd.f32 0.0, %v585
    %587 = vdwg.mxu0
    %v588 = vadd.f32 %v341, %v513
    %v589 = vadd.f32 %v343, %v515
    %v590 = vadd.f32 %v412, %v584
    %v591 = vadd.f32 %v414, %v586
    %592 = vrot.lane.b32.xlu0 %v18, 1
    %v593 = vpop.permute.xlu0 %592
    %594 = vrot.lane.b32.xlu0 %v19, 1
    %v595 = vpop.permute.xlu0 %594
    %596 = vrot.lane.b32.xlu0 %v20, 1
    %v597 = vpop.permute.xlu0 %596
    %598 = vrot.lane.b32.xlu0 %v21, 1
    %v599 = vpop.permute.xlu0 %598
    %vm600 = vcmp.lt.s32.totalorder %v23, 1
    %v601 = vsel %vm600, %v597, %v599
    %v602 = vsel %vm600, %v595, %v597
    %v603 = vsel %vm600, %v593, %v595
    %v604 = vsel %vm600, %v599, %v593
    %v605 = vsel %vm43, 1, 0
    %v606 = vsel %vm44, 1, 0
    %v607 = vsel %vm45, 1, 0
    %v608 = vsel %vm46, 1, 0
    %vm609 = vcmp.eq.s32.totalorder %v605, 1
    %vm610 = vcmp.eq.s32.totalorder %v606, 1
    %vm611 = vcmp.eq.s32.totalorder %v607, 1
    %vm612 = vcmp.eq.s32.totalorder %v608, 1
    %v613 = vsel %vm609, %v604, 0.0
    %v614 = vsel %vm610, %v603, 0.0
    %v615 = vsel %vm611, %v602, 0.0
    %v616 = vsel %vm612, %v601, 0.0
    %s617 = scalar_lea.vmem %s1, 24
    %v618 = vld [vmem:[%s617] sm:$0xff]
    %v620 = vsel %vm125, %v618, 0
    %622 = vmatprep.subr.mxu0 %v614
    %623 = vmatpush1.msra.mxu0 %v613
    %624 = vmatprep.subr.mxu0 0.0
    %625 = vmatpush1.msra.mxu0 0.0
    %626 = vmatprep.subr.mxu0 0.0
    %627 = vmatpush1.msra.mxu0 0.0
    %628 = vmatprep.subr.mxu0 0.0
    %629 = vmatpush1.msra.mxu0 0.0
    %630 = vmatprep.subr.mxu0 0.0
    %631 = vmatpush1.msra.mxu0 0.0
    %632 = vmatprep.subr.mxu0 0.0
    %633 = vmatpush1.msra.mxu0 0.0
    %634 = vmatprep.subr.mxu0 0.0
    %635 = vmatpush1.msra.mxu0 0.0
    %636 = vmatprep.subr.mxu0 0.0
    %637 = vmatpush1.msra.mxu0 0.0
    %638 = vmatprep.subr.mxu0 0.0
    %639 = vmatpush1.msra.mxu0 0.0
    %640 = vmatprep.subr.mxu0 0.0
    %641 = vmatpush1.msra.mxu0 0.0
    %642 = vmatprep.subr.mxu0 0.0
    %643 = vmatpush1.msra.mxu0 0.0
    %644 = vmatprep.subr.mxu0 0.0
    %645 = vmatpush1.msra.mxu0 0.0
    %646 = vmatprep.subr.mxu0 0.0
    %647 = vmatpush1.msra.mxu0 0.0
    %648 = vmatprep.subr.mxu0 0.0
    %649 = vmatpush1.msra.mxu0 0.0
    %650 = vmatprep.subr.mxu0 0.0
    %651 = vmatpush1.msra.mxu0 0.0
    %652 = vmatprep.subr.mxu0 0.0
    %653 = vmatpush1.msra.mxu0 0.0
    %654 = vmatprep.subr.mxu0 0.0
    %655 = vmatpush1.msra.mxu0 0.0
    %656 = vmatprep.subr.mxu0 0.0
    %657 = vmatpush1.msra.mxu0 0.0
    %658 = vmatprep.subr.mxu0 0.0
    %659 = vmatpush1.msra.mxu0 0.0
    %660 = vmatprep.subr.mxu0 0.0
    %661 = vmatpush1.msra.mxu0 0.0
    %662 = vmatprep.subr.mxu0 0.0
    %663 = vmatpush1.msra.mxu0 0.0
    %664 = vmatprep.subr.mxu0 0.0
    %665 = vmatpush1.msra.mxu0 0.0
    %666 = vmatprep.subr.mxu0 0.0
    %667 = vmatpush1.msra.mxu0 0.0
    %668 = vmatprep.subr.mxu0 0.0
    %669 = vmatpush1.msra.mxu0 0.0
    %670 = vmatprep.subr.mxu0 0.0
    %671 = vmatpush1.msra.mxu0 0.0
    %672 = vmatprep.subr.mxu0 0.0
    %673 = vmatpush1.msra.mxu0 0.0
    %674 = vmatprep.subr.mxu0 0.0
    %675 = vmatpush1.msra.mxu0 0.0
    %676 = vmatprep.subr.mxu0 0.0
    %677 = vmatpush1.msra.mxu0 0.0
    %678 = vmatprep.subr.mxu0 0.0
    %679 = vmatpush1.msra.mxu0 0.0
    %680 = vmatprep.subr.mxu0 0.0
    %681 = vmatpush1.msra.mxu0 0.0
    %682 = vmatprep.subr.mxu0 0.0
    %683 = vmatpush1.msra.mxu0 0.0
    %684 = vmatprep.subr.mxu0 0.0
    %685 = vmatpush1.msra.mxu0 0.0
    %686 = vmatprep.mubr.f32.mxu0 0.0
    %687 = vmatmul.mubr.f32.gmra.mrb[0].mxu0 %v620
    %v688 = vpop.f32.mrb[0].mxu0
    %v689 = vadd.f32 0.0, %v688
    %v690 = vpop.f32.mrb[0].mxu0
    %v691 = vadd.f32 0.0, %v690
    %692 = vdwg.mxu0
    %693 = vmatprep.subr.mxu0 %v616
    %694 = vmatpush1.msra.mxu0 %v615
    %695 = vmatprep.subr.mxu0 0.0
    %696 = vmatpush1.msra.mxu0 0.0
    %697 = vmatprep.subr.mxu0 0.0
    %698 = vmatpush1.msra.mxu0 0.0
    %699 = vmatprep.subr.mxu0 0.0
    %700 = vmatpush1.msra.mxu0 0.0
    %701 = vmatprep.subr.mxu0 0.0
    %702 = vmatpush1.msra.mxu0 0.0
    %703 = vmatprep.subr.mxu0 0.0
    %704 = vmatpush1.msra.mxu0 0.0
    %705 = vmatprep.subr.mxu0 0.0
    %706 = vmatpush1.msra.mxu0 0.0
    %707 = vmatprep.subr.mxu0 0.0
    %708 = vmatpush1.msra.mxu0 0.0
    %709 = vmatprep.subr.mxu0 0.0
    %710 = vmatpush1.msra.mxu0 0.0
    %711 = vmatprep.subr.mxu0 0.0
    %712 = vmatpush1.msra.mxu0 0.0
    %713 = vmatprep.subr.mxu0 0.0
    %714 = vmatpush1.msra.mxu0 0.0
    %715 = vmatprep.subr.mxu0 0.0
    %716 = vmatpush1.msra.mxu0 0.0
    %717 = vmatprep.subr.mxu0 0.0
    %718 = vmatpush1.msra.mxu0 0.0
    %719 = vmatprep.subr.mxu0 0.0
    %720 = vmatpush1.msra.mxu0 0.0
    %721 = vmatprep.subr.mxu0 0.0
    %722 = vmatpush1.msra.mxu0 0.0
    %723 = vmatprep.subr.mxu0 0.0
    %724 = vmatpush1.msra.mxu0 0.0
    %725 = vmatprep.subr.mxu0 0.0
    %726 = vmatpush1.msra.mxu0 0.0
    %727 = vmatprep.subr.mxu0 0.0
    %728 = vmatpush1.msra.mxu0 0.0
    %729 = vmatprep.subr.mxu0 0.0
    %730 = vmatpush1.msra.mxu0 0.0
    %731 = vmatprep.subr.mxu0 0.0
    %732 = vmatpush1.msra.mxu0 0.0
    %733 = vmatprep.subr.mxu0 0.0
    %734 = vmatpush1.msra.mxu0 0.0
    %735 = vmatprep.subr.mxu0 0.0
    %736 = vmatpush1.msra.mxu0 0.0
    %737 = vmatprep.subr.mxu0 0.0
    %738 = vmatpush1.msra.mxu0 0.0
    %739 = vmatprep.subr.mxu0 0.0
    %740 = vmatpush1.msra.mxu0 0.0
    %741 = vmatprep.subr.mxu0 0.0
    %742 = vmatpush1.msra.mxu0 0.0
    %743 = vmatprep.subr.mxu0 0.0
    %744 = vmatpush1.msra.mxu0 0.0
    %745 = vmatprep.subr.mxu0 0.0
    %746 = vmatpush1.msra.mxu0 0.0
    %747 = vmatprep.subr.mxu0 0.0
    %748 = vmatpush1.msra.mxu0 0.0
    %749 = vmatprep.subr.mxu0 0.0
    %750 = vmatpush1.msra.mxu0 0.0
    %751 = vmatprep.subr.mxu0 0.0
    %752 = vmatpush1.msra.mxu0 0.0
    %753 = vmatprep.subr.mxu0 0.0
    %754 = vmatpush1.msra.mxu0 0.0
    %755 = vmatprep.subr.mxu0 0.0
    %756 = vmatpush1.msra.mxu0 0.0
    %757 = vmatprep.mubr.f32.mxu0 0.0
    %758 = vmatmul.mubr.f32.gmra.mrb[0].mxu0 %v620
    %v759 = vpop.f32.mrb[0].mxu0
    %v760 = vadd.f32 0.0, %v759
    %v761 = vpop.f32.mrb[0].mxu0
    %v762 = vadd.f32 0.0, %v761
    %763 = vdwg.mxu0
    %v764 = vadd.f32 %v588, %v689
    %v765 = vadd.f32 %v589, %v691
    %v766 = vadd.f32 %v590, %v760
    %v767 = vadd.f32 %v591, %v762
    %s768 = scalar_lea.vmem %s1, 32
    %v769 = vld [vmem:[%s768] sm:$0xff]
    %v771 = vsel %vm125, %v769, 0
    %773 = vmatprep.subr.mxu0 %v19
    %774 = vmatpush1.msra.mxu0 %v18
    %775 = vmatprep.subr.mxu0 0.0
    %776 = vmatpush1.msra.mxu0 0.0
    %777 = vmatprep.subr.mxu0 0.0
    %778 = vmatpush1.msra.mxu0 0.0
    %779 = vmatprep.subr.mxu0 0.0
    %780 = vmatpush1.msra.mxu0 0.0
    %781 = vmatprep.subr.mxu0 0.0
    %782 = vmatpush1.msra.mxu0 0.0
    %783 = vmatprep.subr.mxu0 0.0
    %784 = vmatpush1.msra.mxu0 0.0
    %785 = vmatprep.subr.mxu0 0.0
    %786 = vmatpush1.msra.mxu0 0.0
    %787 = vmatprep.subr.mxu0 0.0
    %788 = vmatpush1.msra.mxu0 0.0
    %789 = vmatprep.subr.mxu0 0.0
    %790 = vmatpush1.msra.mxu0 0.0
    %791 = vmatprep.subr.mxu0 0.0
    %792 = vmatpush1.msra.mxu0 0.0
    %793 = vmatprep.subr.mxu0 0.0
    %794 = vmatpush1.msra.mxu0 0.0
    %795 = vmatprep.subr.mxu0 0.0
    %796 = vmatpush1.msra.mxu0 0.0
    %797 = vmatprep.subr.mxu0 0.0
    %798 = vmatpush1.msra.mxu0 0.0
    %799 = vmatprep.subr.mxu0 0.0
    %800 = vmatpush1.msra.mxu0 0.0
    %801 = vmatprep.subr.mxu0 0.0
    %802 = vmatpush1.msra.mxu0 0.0
    %803 = vmatprep.subr.mxu0 0.0
    %804 = vmatpush1.msra.mxu0 0.0
    %805 = vmatprep.subr.mxu0 0.0
    %806 = vmatpush1.msra.mxu0 0.0
    %807 = vmatprep.subr.mxu0 0.0
    %808 = vmatpush1.msra.mxu0 0.0
    %809 = vmatprep.subr.mxu0 0.0
    %810 = vmatpush1.msra.mxu0 0.0
    %811 = vmatprep.subr.mxu0 0.0
    %812 = vmatpush1.msra.mxu0 0.0
    %813 = vmatprep.subr.mxu0 0.0
    %814 = vmatpush1.msra.mxu0 0.0
    %815 = vmatprep.subr.mxu0 0.0
    %816 = vmatpush1.msra.mxu0 0.0
    %817 = vmatprep.subr.mxu0 0.0
    %818 = vmatpush1.msra.mxu0 0.0
    %819 = vmatprep.subr.mxu0 0.0
    %820 = vmatpush1.msra.mxu0 0.0
    %821 = vmatprep.subr.mxu0 0.0
    %822 = vmatpush1.msra.mxu0 0.0
    %823 = vmatprep.subr.mxu0 0.0
    %824 = vmatpush1.msra.mxu0 0.0
    %825 = vmatprep.subr.mxu0 0.0
    %826 = vmatpush1.msra.mxu0 0.0
    %827 = vmatprep.subr.mxu0 0.0
    %828 = vmatpush1.msra.mxu0 0.0
    %829 = vmatprep.subr.mxu0 0.0
    %830 = vmatpush1.msra.mxu0 0.0
    %831 = vmatprep.subr.mxu0 0.0
    %832 = vmatpush1.msra.mxu0 0.0
    %833 = vmatprep.subr.mxu0 0.0
    %834 = vmatpush1.msra.mxu0 0.0
    %835 = vmatprep.subr.mxu0 0.0
    %836 = vmatpush1.msra.mxu0 0.0
    %837 = vmatprep.mubr.f32.mxu0 0.0
    %838 = vmatmul.mubr.f32.gmra.mrb[0].mxu0 %v771
    %v839 = vpop.f32.mrb[0].mxu0
    %v840 = vadd.f32 0.0, %v839
    %v841 = vpop.f32.mrb[0].mxu0
    %v842 = vadd.f32 0.0, %v841
    %843 = vdwg.mxu0
    %844 = vmatprep.subr.mxu0 %v21
    %845 = vmatpush1.msra.mxu0 %v20
    %846 = vmatprep.subr.mxu0 0.0
    %847 = vmatpush1.msra.mxu0 0.0
    %848 = vmatprep.subr.mxu0 0.0
    %849 = vmatpush1.msra.mxu0 0.0
    %850 = vmatprep.subr.mxu0 0.0
    %851 = vmatpush1.msra.mxu0 0.0
    %852 = vmatprep.subr.mxu0 0.0
    %853 = vmatpush1.msra.mxu0 0.0
    %854 = vmatprep.subr.mxu0 0.0
    %855 = vmatpush1.msra.mxu0 0.0
    %856 = vmatprep.subr.mxu0 0.0
    %857 = vmatpush1.msra.mxu0 0.0
    %858 = vmatprep.subr.mxu0 0.0
    %859 = vmatpush1.msra.mxu0 0.0
    %860 = vmatprep.subr.mxu0 0.0
    %861 = vmatpush1.msra.mxu0 0.0
    %862 = vmatprep.subr.mxu0 0.0
    %863 = vmatpush1.msra.mxu0 0.0
    %864 = vmatprep.subr.mxu0 0.0
    %865 = vmatpush1.msra.mxu0 0.0
    %866 = vmatprep.subr.mxu0 0.0
    %867 = vmatpush1.msra.mxu0 0.0
    %868 = vmatprep.subr.mxu0 0.0
    %869 = vmatpush1.msra.mxu0 0.0
    %870 = vmatprep.subr.mxu0 0.0
    %871 = vmatpush1.msra.mxu0 0.0
    %872 = vmatprep.subr.mxu0 0.0
    %873 = vmatpush1.msra.mxu0 0.0
    %874 = vmatprep.subr.mxu0 0.0
    %875 = vmatpush1.msra.mxu0 0.0
    %876 = vmatprep.subr.mxu0 0.0
    %877 = vmatpush1.msra.mxu0 0.0
    %878 = vmatprep.subr.mxu0 0.0
    %879 = vmatpush1.msra.mxu0 0.0
    %880 = vmatprep.subr.mxu0 0.0
    %881 = vmatpush1.msra.mxu0 0.0
    %882 = vmatprep.subr.mxu0 0.0
    %883 = vmatpush1.msra.mxu0 0.0
    %884 = vmatprep.subr.mxu0 0.0
    %885 = vmatpush1.msra.mxu0 0.0
    %886 = vmatprep.subr.mxu0 0.0
    %887 = vmatpush1.msra.mxu0 0.0
    %888 = vmatprep.subr.mxu0 0.0
    %889 = vmatpush1.msra.mxu0 0.0
    %890 = vmatprep.subr.mxu0 0.0
    %891 = vmatpush1.msra.mxu0 0.0
    %892 = vmatprep.subr.mxu0 0.0
    %893 = vmatpush1.msra.mxu0 0.0
    %894 = vmatprep.subr.mxu0 0.0
    %895 = vmatpush1.msra.mxu0 0.0
    %896 = vmatprep.subr.mxu0 0.0
    %897 = vmatpush1.msra.mxu0 0.0
    %898 = vmatprep.subr.mxu0 0.0
    %899 = vmatpush1.msra.mxu0 0.0
    %900 = vmatprep.subr.mxu0 0.0
    %901 = vmatpush1.msra.mxu0 0.0
    %902 = vmatprep.subr.mxu0 0.0
    %903 = vmatpush1.msra.mxu0 0.0
    %904 = vmatprep.subr.mxu0 0.0
    %905 = vmatpush1.msra.mxu0 0.0
    %906 = vmatprep.subr.mxu0 0.0
    %907 = vmatpush1.msra.mxu0 0.0
    %908 = vmatprep.mubr.f32.mxu0 0.0
    %909 = vmatmul.mubr.f32.gmra.mrb[0].mxu0 %v771
    %v910 = vpop.f32.mrb[0].mxu0
    %v911 = vadd.f32 0.0, %v910
    %v912 = vpop.f32.mrb[0].mxu0
    %v913 = vadd.f32 0.0, %v912
    %914 = vdwg.mxu0
    %v915 = vadd.f32 %v764, %v840
    %v916 = vadd.f32 %v765, %v842
    %v917 = vadd.f32 %v766, %v911
    %v918 = vadd.f32 %v767, %v913
    %919 = vrot.lane.b32.xlu0 %v18, 127
    %v920 = vpop.permute.xlu0 %919
    %921 = vrot.lane.b32.xlu0 %v19, 127
    %v922 = vpop.permute.xlu0 %921
    %923 = vrot.lane.b32.xlu0 %v20, 127
    %v924 = vpop.permute.xlu0 %923
    %925 = vrot.lane.b32.xlu0 %v21, 127
    %v926 = vpop.permute.xlu0 %925
    %vm927 = vcmp.lt.s32.totalorder %v23, 127
    %v928 = vsel %vm927, %v924, %v926
    %v929 = vsel %vm927, %v922, %v924
    %v930 = vsel %vm927, %v920, %v922
    %v931 = vsel %vm927, %v926, %v920
    %v932 = vsel %vm51, 1, 0
    %v933 = vsel %vm52, 1, 0
    %v934 = vsel %vm53, 1, 0
    %v935 = vsel %vm54, 1, 0
    %vm936 = vcmp.eq.s32.totalorder %v932, 1
    %vm937 = vcmp.eq.s32.totalorder %v933, 1
    %vm938 = vcmp.eq.s32.totalorder %v934, 1
    %vm939 = vcmp.eq.s32.totalorder %v935, 1
    %v940 = vsel %vm936, %v930, 0.0
    %v941 = vsel %vm937, %v929, 0.0
    %v942 = vsel %vm938, %v928, 0.0
    %v943 = vsel %vm939, %v931, 0.0
    %s944 = scalar_lea.vmem %s1, 40
    %v945 = vld [vmem:[%s944] sm:$0xff]
    %v947 = vsel %vm125, %v945, 0
    %949 = vmatprep.subr.mxu0 %v941
    %950 = vmatpush1.msra.mxu0 %v940
    %951 = vmatprep.subr.mxu0 0.0
    %952 = vmatpush1.msra.mxu0 0.0
    %953 = vmatprep.subr.mxu0 0.0
    %954 = vmatpush1.msra.mxu0 0.0
    %955 = vmatprep.subr.mxu0 0.0
    %956 = vmatpush1.msra.mxu0 0.0
    %957 = vmatprep.subr.mxu0 0.0
    %958 = vmatpush1.msra.mxu0 0.0
    %959 = vmatprep.subr.mxu0 0.0
    %960 = vmatpush1.msra.mxu0 0.0
    %961 = vmatprep.subr.mxu0 0.0
    %962 = vmatpush1.msra.mxu0 0.0
    %963 = vmatprep.subr.mxu0 0.0
    %964 = vmatpush1.msra.mxu0 0.0
    %965 = vmatprep.subr.mxu0 0.0
    %966 = vmatpush1.msra.mxu0 0.0
    %967 = vmatprep.subr.mxu0 0.0
    %968 = vmatpush1.msra.mxu0 0.0
    %969 = vmatprep.subr.mxu0 0.0
    %970 = vmatpush1.msra.mxu0 0.0
    %971 = vmatprep.subr.mxu0 0.0
    %972 = vmatpush1.msra.mxu0 0.0
    %973 = vmatprep.subr.mxu0 0.0
    %974 = vmatpush1.msra.mxu0 0.0
    %975 = vmatprep.subr.mxu0 0.0
    %976 = vmatpush1.msra.mxu0 0.0
    %977 = vmatprep.subr.mxu0 0.0
    %978 = vmatpush1.msra.mxu0 0.0
    %979 = vmatprep.subr.mxu0 0.0
    %980 = vmatpush1.msra.mxu0 0.0
    %981 = vmatprep.subr.mxu0 0.0
    %982 = vmatpush1.msra.mxu0 0.0
    %983 = vmatprep.subr.mxu0 0.0
    %984 = vmatpush1.msra.mxu0 0.0
    %985 = vmatprep.subr.mxu0 0.0
    %986 = vmatpush1.msra.mxu0 0.0
    %987 = vmatprep.subr.mxu0 0.0
    %988 = vmatpush1.msra.mxu0 0.0
    %989 = vmatprep.subr.mxu0 0.0
    %990 = vmatpush1.msra.mxu0 0.0
    %991 = vmatprep.subr.mxu0 0.0
    %992 = vmatpush1.msra.mxu0 0.0
    %993 = vmatprep.subr.mxu0 0.0
    %994 = vmatpush1.msra.mxu0 0.0
    %995 = vmatprep.subr.mxu0 0.0
    %996 = vmatpush1.msra.mxu0 0.0
    %997 = vmatprep.subr.mxu0 0.0
    %998 = vmatpush1.msra.mxu0 0.0
    %999 = vmatprep.subr.mxu0 0.0
    %1000 = vmatpush1.msra.mxu0 0.0
    %1001 = vmatprep.subr.mxu0 0.0
    %1002 = vmatpush1.msra.mxu0 0.0
    %1003 = vmatprep.subr.mxu0 0.0
    %1004 = vmatpush1.msra.mxu0 0.0
    %1005 = vmatprep.subr.mxu0 0.0
    %1006 = vmatpush1.msra.mxu0 0.0
    %1007 = vmatprep.subr.mxu0 0.0
    %1008 = vmatpush1.msra.mxu0 0.0
    %1009 = vmatprep.subr.mxu0 0.0
    %1010 = vmatpush1.msra.mxu0 0.0
    %1011 = vmatprep.subr.mxu0 0.0
    %1012 = vmatpush1.msra.mxu0 0.0
    %1013 = vmatprep.mubr.f32.mxu0 0.0
    %1014 = vmatmul.mubr.f32.gmra.mrb[0].mxu0 %v947
    %v1015 = vpop.f32.mrb[0].mxu0
    %v1016 = vadd.f32 0.0, %v1015
    %v1017 = vpop.f32.mrb[0].mxu0
    %v1018 = vadd.f32 0.0, %v1017
    %1019 = vdwg.mxu0
    %1020 = vmatprep.subr.mxu0 %v943
    %1021 = vmatpush1.msra.mxu0 %v942
    %1022 = vmatprep.subr.mxu0 0.0
    %1023 = vmatpush1.msra.mxu0 0.0
    %1024 = vmatprep.subr.mxu0 0.0
    %1025 = vmatpush1.msra.mxu0 0.0
    %1026 = vmatprep.subr.mxu0 0.0
    %1027 = vmatpush1.msra.mxu0 0.0
    %1028 = vmatprep.subr.mxu0 0.0
    %1029 = vmatpush1.msra.mxu0 0.0
    %1030 = vmatprep.subr.mxu0 0.0
    %1031 = vmatpush1.msra.mxu0 0.0
    %1032 = vmatprep.subr.mxu0 0.0
    %1033 = vmatpush1.msra.mxu0 0.0
    %1034 = vmatprep.subr.mxu0 0.0
    %1035 = vmatpush1.msra.mxu0 0.0
    %1036 = vmatprep.subr.mxu0 0.0
    %1037 = vmatpush1.msra.mxu0 0.0
    %1038 = vmatprep.subr.mxu0 0.0
    %1039 = vmatpush1.msra.mxu0 0.0
    %1040 = vmatprep.subr.mxu0 0.0
    %1041 = vmatpush1.msra.mxu0 0.0
    %1042 = vmatprep.subr.mxu0 0.0
    %1043 = vmatpush1.msra.mxu0 0.0
    %1044 = vmatprep.subr.mxu0 0.0
    %1045 = vmatpush1.msra.mxu0 0.0
    %1046 = vmatprep.subr.mxu0 0.0
    %1047 = vmatpush1.msra.mxu0 0.0
    %1048 = vmatprep.subr.mxu0 0.0
    %1049 = vmatpush1.msra.mxu0 0.0
    %1050 = vmatprep.subr.mxu0 0.0
    %1051 = vmatpush1.msra.mxu0 0.0
    %1052 = vmatprep.subr.mxu0 0.0
    %1053 = vmatpush1.msra.mxu0 0.0
    %1054 = vmatprep.subr.mxu0 0.0
    %1055 = vmatpush1.msra.mxu0 0.0
    %1056 = vmatprep.subr.mxu0 0.0
    %1057 = vmatpush1.msra.mxu0 0.0
    %1058 = vmatprep.subr.mxu0 0.0
    %1059 = vmatpush1.msra.mxu0 0.0
    %1060 = vmatprep.subr.mxu0 0.0
    %1061 = vmatpush1.msra.mxu0 0.0
    %1062 = vmatprep.subr.mxu0 0.0
    %1063 = vmatpush1.msra.mxu0 0.0
    %1064 = vmatprep.subr.mxu0 0.0
    %1065 = vmatpush1.msra.mxu0 0.0
    %1066 = vmatprep.subr.mxu0 0.0
    %1067 = vmatpush1.msra.mxu0 0.0
    %1068 = vmatprep.subr.mxu0 0.0
    %1069 = vmatpush1.msra.mxu0 0.0
    %1070 = vmatprep.subr.mxu0 0.0
    %1071 = vmatpush1.msra.mxu0 0.0
    %1072 = vmatprep.subr.mxu0 0.0
    %1073 = vmatpush1.msra.mxu0 0.0
    %1074 = vmatprep.subr.mxu0 0.0
    %1075 = vmatpush1.msra.mxu0 0.0
    %1076 = vmatprep.subr.mxu0 0.0
    %1077 = vmatpush1.msra.mxu0 0.0
    %1078 = vmatprep.subr.mxu0 0.0
    %1079 = vmatpush1.msra.mxu0 0.0
    %1080 = vmatprep.subr.mxu0 0.0
    %1081 = vmatpush1.msra.mxu0 0.0
    %1082 = vmatprep.subr.mxu0 0.0
    %1083 = vmatpush1.msra.mxu0 0.0
    %1084 = vmatprep.mubr.f32.mxu0 0.0
    %1085 = vmatmul.mubr.f32.gmra.mrb[0].mxu0 %v947
    %v1086 = vpop.f32.mrb[0].mxu0
    %v1087 = vadd.f32 0.0, %v1086
    %v1088 = vpop.f32.mrb[0].mxu0
    %v1089 = vadd.f32 0.0, %v1088
    %1090 = vdwg.mxu0
    %v1091 = vadd.f32 %v915, %v1016
    %v1092 = vadd.f32 %v916, %v1018
    %v1093 = vadd.f32 %v917, %v1087
    %v1094 = vadd.f32 %v918, %v1089
    %1095 = vrot.lane.b32.xlu0 %v18, 113
    %v1096 = vpop.permute.xlu0 %1095
    %1097 = vrot.lane.b32.xlu0 %v19, 113
    %v1098 = vpop.permute.xlu0 %1097
    %1099 = vrot.lane.b32.xlu0 %v20, 113
    %v1100 = vpop.permute.xlu0 %1099
    %1101 = vrot.lane.b32.xlu0 %v21, 113
    %v1102 = vpop.permute.xlu0 %1101
    %vm1103 = vcmp.lt.s32.totalorder %v23, 113
    %v1104 = vsel %vm1103, %v1100, %v1102
    %v1105 = vsel %vm1103, %v1098, %v1100
    %v1106 = vsel %vm1103, %v1096, %v1098
    %v1107 = vsel %vm1103, %v1102, %v1096
    %v1108 = vsel %vm63, 1, 0
    %v1109 = vsel %vm64, 1, 0
    %v1110 = vsel %vm65, 1, 0
    %v1111 = vsel %vm66, 1, 0
    %vm1112 = vcmp.eq.s32.totalorder %v1108, 1
    %vm1113 = vcmp.eq.s32.totalorder %v1109, 1
    %vm1114 = vcmp.eq.s32.totalorder %v1110, 1
    %vm1115 = vcmp.eq.s32.totalorder %v1111, 1
    %v1116 = vsel %vm1112, %v1106, 0.0
    %v1117 = vsel %vm1113, %v1105, 0.0
    %v1118 = vsel %vm1114, %v1104, 0.0
    %v1119 = vsel %vm1115, %v1107, 0.0
    %s1120 = scalar_lea.vmem %s1, 48
    %v1121 = vld [vmem:[%s1120] sm:$0xff]
    %v1123 = vsel %vm125, %v1121, 0
    %1125 = vmatprep.subr.mxu0 %v1117
    %1126 = vmatpush1.msra.mxu0 %v1116
    %1127 = vmatprep.subr.mxu0 0.0
    %1128 = vmatpush1.msra.mxu0 0.0
    %1129 = vmatprep.subr.mxu0 0.0
    %1130 = vmatpush1.msra.mxu0 0.0
    %1131 = vmatprep.subr.mxu0 0.0
    %1132 = vmatpush1.msra.mxu0 0.0
    %1133 = vmatprep.subr.mxu0 0.0
    %1134 = vmatpush1.msra.mxu0 0.0
    %1135 = vmatprep.subr.mxu0 0.0
    %1136 = vmatpush1.msra.mxu0 0.0
    %1137 = vmatprep.subr.mxu0 0.0
    %1138 = vmatpush1.msra.mxu0 0.0
    %1139 = vmatprep.subr.mxu0 0.0
    %1140 = vmatpush1.msra.mxu0 0.0
    %1141 = vmatprep.subr.mxu0 0.0
    %1142 = vmatpush1.msra.mxu0 0.0
    %1143 = vmatprep.subr.mxu0 0.0
    %1144 = vmatpush1.msra.mxu0 0.0
    %1145 = vmatprep.subr.mxu0 0.0
    %1146 = vmatpush1.msra.mxu0 0.0
    %1147 = vmatprep.subr.mxu0 0.0
    %1148 = vmatpush1.msra.mxu0 0.0
    %1149 = vmatprep.subr.mxu0 0.0
    %1150 = vmatpush1.msra.mxu0 0.0
    %1151 = vmatprep.subr.mxu0 0.0
    %1152 = vmatpush1.msra.mxu0 0.0
    %1153 = vmatprep.subr.mxu0 0.0
    %1154 = vmatpush1.msra.mxu0 0.0
    %1155 = vmatprep.subr.mxu0 0.0
    %1156 = vmatpush1.msra.mxu0 0.0
    %1157 = vmatprep.subr.mxu0 0.0
    %1158 = vmatpush1.msra.mxu0 0.0
    %1159 = vmatprep.subr.mxu0 0.0
    %1160 = vmatpush1.msra.mxu0 0.0
    %1161 = vmatprep.subr.mxu0 0.0
    %1162 = vmatpush1.msra.mxu0 0.0
    %1163 = vmatprep.subr.mxu0 0.0
    %1164 = vmatpush1.msra.mxu0 0.0
    %1165 = vmatprep.subr.mxu0 0.0
    %1166 = vmatpush1.msra.mxu0 0.0
    %1167 = vmatprep.subr.mxu0 0.0
    %1168 = vmatpush1.msra.mxu0 0.0
    %1169 = vmatprep.subr.mxu0 0.0
    %1170 = vmatpush1.msra.mxu0 0.0
    %1171 = vmatprep.subr.mxu0 0.0
    %1172 = vmatpush1.msra.mxu0 0.0
    %1173 = vmatprep.subr.mxu0 0.0
    %1174 = vmatpush1.msra.mxu0 0.0
    %1175 = vmatprep.subr.mxu0 0.0
    %1176 = vmatpush1.msra.mxu0 0.0
    %1177 = vmatprep.subr.mxu0 0.0
    %1178 = vmatpush1.msra.mxu0 0.0
    %1179 = vmatprep.subr.mxu0 0.0
    %1180 = vmatpush1.msra.mxu0 0.0
    %1181 = vmatprep.subr.mxu0 0.0
    %1182 = vmatpush1.msra.mxu0 0.0
    %1183 = vmatprep.subr.mxu0 0.0
    %1184 = vmatpush1.msra.mxu0 0.0
    %1185 = vmatprep.subr.mxu0 0.0
    %1186 = vmatpush1.msra.mxu0 0.0
    %1187 = vmatprep.subr.mxu0 0.0
    %1188 = vmatpush1.msra.mxu0 0.0
    %1189 = vmatprep.mubr.f32.mxu0 0.0
    %1190 = vmatmul.mubr.f32.gmra.mrb[0].mxu0 %v1123
    %v1191 = vpop.f32.mrb[0].mxu0
    %v1192 = vadd.f32 0.0, %v1191
    %v1193 = vpop.f32.mrb[0].mxu0
    %v1194 = vadd.f32 0.0, %v1193
    %1195 = vdwg.mxu0
    %1196 = vmatprep.subr.mxu0 %v1119
    %1197 = vmatpush1.msra.mxu0 %v1118
    %1198 = vmatprep.subr.mxu0 0.0
    %1199 = vmatpush1.msra.mxu0 0.0
    %1200 = vmatprep.subr.mxu0 0.0
    %1201 = vmatpush1.msra.mxu0 0.0
    %1202 = vmatprep.subr.mxu0 0.0
    %1203 = vmatpush1.msra.mxu0 0.0
    %1204 = vmatprep.subr.mxu0 0.0
    %1205 = vmatpush1.msra.mxu0 0.0
    %1206 = vmatprep.subr.mxu0 0.0
    %1207 = vmatpush1.msra.mxu0 0.0
    %1208 = vmatprep.subr.mxu0 0.0
    %1209 = vmatpush1.msra.mxu0 0.0
    %1210 = vmatprep.subr.mxu0 0.0
    %1211 = vmatpush1.msra.mxu0 0.0
    %1212 = vmatprep.subr.mxu0 0.0
    %1213 = vmatpush1.msra.mxu0 0.0
    %1214 = vmatprep.subr.mxu0 0.0
    %1215 = vmatpush1.msra.mxu0 0.0
    %1216 = vmatprep.subr.mxu0 0.0
    %1217 = vmatpush1.msra.mxu0 0.0
    %1218 = vmatprep.subr.mxu0 0.0
    %1219 = vmatpush1.msra.mxu0 0.0
    %1220 = vmatprep.subr.mxu0 0.0
    %1221 = vmatpush1.msra.mxu0 0.0
    %1222 = vmatprep.subr.mxu0 0.0
    %1223 = vmatpush1.msra.mxu0 0.0
    %1224 = vmatprep.subr.mxu0 0.0
    %1225 = vmatpush1.msra.mxu0 0.0
    %1226 = vmatprep.subr.mxu0 0.0
    %1227 = vmatpush1.msra.mxu0 0.0
    %1228 = vmatprep.subr.mxu0 0.0
    %1229 = vmatpush1.msra.mxu0 0.0
    %1230 = vmatprep.subr.mxu0 0.0
    %1231 = vmatpush1.msra.mxu0 0.0
    %1232 = vmatprep.subr.mxu0 0.0
    %1233 = vmatpush1.msra.mxu0 0.0
    %1234 = vmatprep.subr.mxu0 0.0
    %1235 = vmatpush1.msra.mxu0 0.0
    %1236 = vmatprep.subr.mxu0 0.0
    %1237 = vmatpush1.msra.mxu0 0.0
    %1238 = vmatprep.subr.mxu0 0.0
    %1239 = vmatpush1.msra.mxu0 0.0
    %1240 = vmatprep.subr.mxu0 0.0
    %1241 = vmatpush1.msra.mxu0 0.0
    %1242 = vmatprep.subr.mxu0 0.0
    %1243 = vmatpush1.msra.mxu0 0.0
    %1244 = vmatprep.subr.mxu0 0.0
    %1245 = vmatpush1.msra.mxu0 0.0
    %1246 = vmatprep.subr.mxu0 0.0
    %1247 = vmatpush1.msra.mxu0 0.0
    %1248 = vmatprep.subr.mxu0 0.0
    %1249 = vmatpush1.msra.mxu0 0.0
    %1250 = vmatprep.subr.mxu0 0.0
    %1251 = vmatpush1.msra.mxu0 0.0
    %1252 = vmatprep.subr.mxu0 0.0
    %1253 = vmatpush1.msra.mxu0 0.0
    %1254 = vmatprep.subr.mxu0 0.0
    %1255 = vmatpush1.msra.mxu0 0.0
    %1256 = vmatprep.subr.mxu0 0.0
    %1257 = vmatpush1.msra.mxu0 0.0
    %1258 = vmatprep.subr.mxu0 0.0
    %1259 = vmatpush1.msra.mxu0 0.0
    %1260 = vmatprep.mubr.f32.mxu0 0.0
    %1261 = vmatmul.mubr.f32.gmra.mrb[0].mxu0 %v1123
    %v1262 = vpop.f32.mrb[0].mxu0
    %v1263 = vadd.f32 0.0, %v1262
    %v1264 = vpop.f32.mrb[0].mxu0
    %v1265 = vadd.f32 0.0, %v1264
    %1266 = vdwg.mxu0
    %v1267 = vadd.f32 %v1091, %v1192
    %v1268 = vadd.f32 %v1092, %v1194
    %v1269 = vadd.f32 %v1093, %v1263
    %v1270 = vadd.f32 %v1094, %v1265
    %1271 = vrot.lane.b32.xlu0 %v18, 112
    %v1272 = vpop.permute.xlu0 %1271
    %1273 = vrot.lane.b32.xlu0 %v19, 112
    %v1274 = vpop.permute.xlu0 %1273
    %1275 = vrot.lane.b32.xlu0 %v20, 112
    %v1276 = vpop.permute.xlu0 %1275
    %1277 = vrot.lane.b32.xlu0 %v21, 112
    %v1278 = vpop.permute.xlu0 %1277
    %vm1279 = vcmp.lt.s32.totalorder %v23, 112
    %v1280 = vsel %vm1279, %v1276, %v1278
    %v1281 = vsel %vm1279, %v1274, %v1276
    %v1282 = vsel %vm1279, %v1272, %v1274
    %v1283 = vsel %vm1279, %v1278, %v1272
    %v1284 = vsel %vm59, 1, 0
    %v1285 = vsel %vm60, 1, 0
    %v1286 = vsel %vm61, 1, 0
    %v1287 = vsel %vm62, 1, 0
    %vm1288 = vcmp.eq.s32.totalorder %v1284, 1
    %vm1289 = vcmp.eq.s32.totalorder %v1285, 1
    %vm1290 = vcmp.eq.s32.totalorder %v1286, 1
    %vm1291 = vcmp.eq.s32.totalorder %v1287, 1
    %v1292 = vsel %vm1288, %v1282, 0.0
    %v1293 = vsel %vm1289, %v1281, 0.0
    %v1294 = vsel %vm1290, %v1280, 0.0
    %v1295 = vsel %vm1291, %v1283, 0.0
    %s1296 = scalar_lea.vmem %s1, 56
    %v1297 = vld [vmem:[%s1296] sm:$0xff]
    %v1299 = vsel %vm125, %v1297, 0
    %1301 = vmatprep.subr.mxu0 %v1293
    %1302 = vmatpush1.msra.mxu0 %v1292
    %1303 = vmatprep.subr.mxu0 0.0
    %1304 = vmatpush1.msra.mxu0 0.0
    %1305 = vmatprep.subr.mxu0 0.0
    %1306 = vmatpush1.msra.mxu0 0.0
    %1307 = vmatprep.subr.mxu0 0.0
    %1308 = vmatpush1.msra.mxu0 0.0
    %1309 = vmatprep.subr.mxu0 0.0
    %1310 = vmatpush1.msra.mxu0 0.0
    %1311 = vmatprep.subr.mxu0 0.0
    %1312 = vmatpush1.msra.mxu0 0.0
    %1313 = vmatprep.subr.mxu0 0.0
    %1314 = vmatpush1.msra.mxu0 0.0
    %1315 = vmatprep.subr.mxu0 0.0
    %1316 = vmatpush1.msra.mxu0 0.0
    %1317 = vmatprep.subr.mxu0 0.0
    %1318 = vmatpush1.msra.mxu0 0.0
    %1319 = vmatprep.subr.mxu0 0.0
    %1320 = vmatpush1.msra.mxu0 0.0
    %1321 = vmatprep.subr.mxu0 0.0
    %1322 = vmatpush1.msra.mxu0 0.0
    %1323 = vmatprep.subr.mxu0 0.0
    %1324 = vmatpush1.msra.mxu0 0.0
    %1325 = vmatprep.subr.mxu0 0.0
    %1326 = vmatpush1.msra.mxu0 0.0
    %1327 = vmatprep.subr.mxu0 0.0
    %1328 = vmatpush1.msra.mxu0 0.0
    %1329 = vmatprep.subr.mxu0 0.0
    %1330 = vmatpush1.msra.mxu0 0.0
    %1331 = vmatprep.subr.mxu0 0.0
    %1332 = vmatpush1.msra.mxu0 0.0
    %1333 = vmatprep.subr.mxu0 0.0
    %1334 = vmatpush1.msra.mxu0 0.0
    %1335 = vmatprep.subr.mxu0 0.0
    %1336 = vmatpush1.msra.mxu0 0.0
    %1337 = vmatprep.subr.mxu0 0.0
    %1338 = vmatpush1.msra.mxu0 0.0
    %1339 = vmatprep.subr.mxu0 0.0
    %1340 = vmatpush1.msra.mxu0 0.0
    %1341 = vmatprep.subr.mxu0 0.0
    %1342 = vmatpush1.msra.mxu0 0.0
    %1343 = vmatprep.subr.mxu0 0.0
    %1344 = vmatpush1.msra.mxu0 0.0
    %1345 = vmatprep.subr.mxu0 0.0
    %1346 = vmatpush1.msra.mxu0 0.0
    %1347 = vmatprep.subr.mxu0 0.0
    %1348 = vmatpush1.msra.mxu0 0.0
    %1349 = vmatprep.subr.mxu0 0.0
    %1350 = vmatpush1.msra.mxu0 0.0
    %1351 = vmatprep.subr.mxu0 0.0
    %1352 = vmatpush1.msra.mxu0 0.0
    %1353 = vmatprep.subr.mxu0 0.0
    %1354 = vmatpush1.msra.mxu0 0.0
    %1355 = vmatprep.subr.mxu0 0.0
    %1356 = vmatpush1.msra.mxu0 0.0
    %1357 = vmatprep.subr.mxu0 0.0
    %1358 = vmatpush1.msra.mxu0 0.0
    %1359 = vmatprep.subr.mxu0 0.0
    %1360 = vmatpush1.msra.mxu0 0.0
    %1361 = vmatprep.subr.mxu0 0.0
    %1362 = vmatpush1.msra.mxu0 0.0
    %1363 = vmatprep.subr.mxu0 0.0
    %1364 = vmatpush1.msra.mxu0 0.0
    %1365 = vmatprep.mubr.f32.mxu0 0.0
    %1366 = vmatmul.mubr.f32.gmra.mrb[0].mxu0 %v1299
    %v1367 = vpop.f32.mrb[0].mxu0
    %v1368 = vadd.f32 0.0, %v1367
    %v1369 = vpop.f32.mrb[0].mxu0
    %v1370 = vadd.f32 0.0, %v1369
    %1371 = vdwg.mxu0
    %1372 = vmatprep.subr.mxu0 %v1295
    %1373 = vmatpush1.msra.mxu0 %v1294
    %1374 = vmatprep.subr.mxu0 0.0
    %1375 = vmatpush1.msra.mxu0 0.0
    %1376 = vmatprep.subr.mxu0 0.0
    %1377 = vmatpush1.msra.mxu0 0.0
    %1378 = vmatprep.subr.mxu0 0.0
    %1379 = vmatpush1.msra.mxu0 0.0
    %1380 = vmatprep.subr.mxu0 0.0
    %1381 = vmatpush1.msra.mxu0 0.0
    %1382 = vmatprep.subr.mxu0 0.0
    %1383 = vmatpush1.msra.mxu0 0.0
    %1384 = vmatprep.subr.mxu0 0.0
    %1385 = vmatpush1.msra.mxu0 0.0
    %1386 = vmatprep.subr.mxu0 0.0
    %1387 = vmatpush1.msra.mxu0 0.0
    %1388 = vmatprep.subr.mxu0 0.0
    %1389 = vmatpush1.msra.mxu0 0.0
    %1390 = vmatprep.subr.mxu0 0.0
    %1391 = vmatpush1.msra.mxu0 0.0
    %1392 = vmatprep.subr.mxu0 0.0
    %1393 = vmatpush1.msra.mxu0 0.0
    %1394 = vmatprep.subr.mxu0 0.0
    %1395 = vmatpush1.msra.mxu0 0.0
    %1396 = vmatprep.subr.mxu0 0.0
    %1397 = vmatpush1.msra.mxu0 0.0
    %1398 = vmatprep.subr.mxu0 0.0
    %1399 = vmatpush1.msra.mxu0 0.0
    %1400 = vmatprep.subr.mxu0 0.0
    %1401 = vmatpush1.msra.mxu0 0.0
    %1402 = vmatprep.subr.mxu0 0.0
    %1403 = vmatpush1.msra.mxu0 0.0
    %1404 = vmatprep.subr.mxu0 0.0
    %1405 = vmatpush1.msra.mxu0 0.0
    %1406 = vmatprep.subr.mxu0 0.0
    %1407 = vmatpush1.msra.mxu0 0.0
    %1408 = vmatprep.subr.mxu0 0.0
    %1409 = vmatpush1.msra.mxu0 0.0
    %1410 = vmatprep.subr.mxu0 0.0
    %1411 = vmatpush1.msra.mxu0 0.0
    %1412 = vmatprep.subr.mxu0 0.0
    %1413 = vmatpush1.msra.mxu0 0.0
    %1414 = vmatprep.subr.mxu0 0.0
    %1415 = vmatpush1.msra.mxu0 0.0
    %1416 = vmatprep.subr.mxu0 0.0
    %1417 = vmatpush1.msra.mxu0 0.0
    %1418 = vmatprep.subr.mxu0 0.0
    %1419 = vmatpush1.msra.mxu0 0.0
    %1420 = vmatprep.subr.mxu0 0.0
    %1421 = vmatpush1.msra.mxu0 0.0
    %1422 = vmatprep.subr.mxu0 0.0
    %1423 = vmatpush1.msra.mxu0 0.0
    %1424 = vmatprep.subr.mxu0 0.0
    %1425 = vmatpush1.msra.mxu0 0.0
    %1426 = vmatprep.subr.mxu0 0.0
    %1427 = vmatpush1.msra.mxu0 0.0
    %1428 = vmatprep.subr.mxu0 0.0
    %1429 = vmatpush1.msra.mxu0 0.0
    %1430 = vmatprep.subr.mxu0 0.0
    %1431 = vmatpush1.msra.mxu0 0.0
    %1432 = vmatprep.subr.mxu0 0.0
    %1433 = vmatpush1.msra.mxu0 0.0
    %1434 = vmatprep.subr.mxu0 0.0
    %1435 = vmatpush1.msra.mxu0 0.0
    %1436 = vmatprep.mubr.f32.mxu0 0.0
    %1437 = vmatmul.mubr.f32.gmra.mrb[0].mxu0 %v1299
    %v1438 = vpop.f32.mrb[0].mxu0
    %v1439 = vadd.f32 0.0, %v1438
    %v1440 = vpop.f32.mrb[0].mxu0
    %v1441 = vadd.f32 0.0, %v1440
    %1442 = vdwg.mxu0
    %v1443 = vadd.f32 %v1267, %v1368
    %v1444 = vadd.f32 %v1268, %v1370
    %v1445 = vadd.f32 %v1269, %v1439
    %v1446 = vadd.f32 %v1270, %v1441
    %1447 = vrot.lane.b32.xlu0 %v18, 111
    %v1448 = vpop.permute.xlu0 %1447
    %1449 = vrot.lane.b32.xlu0 %v19, 111
    %v1450 = vpop.permute.xlu0 %1449
    %1451 = vrot.lane.b32.xlu0 %v20, 111
    %v1452 = vpop.permute.xlu0 %1451
    %1453 = vrot.lane.b32.xlu0 %v21, 111
    %v1454 = vpop.permute.xlu0 %1453
    %vm1455 = vcmp.lt.s32.totalorder %v23, 111
    %v1456 = vsel %vm1455, %v1452, %v1454
    %v1457 = vsel %vm1455, %v1450, %v1452
    %v1458 = vsel %vm1455, %v1448, %v1450
    %v1459 = vsel %vm1455, %v1454, %v1448
    %v1460 = vsel %vm67, 1, 0
    %v1461 = vsel %vm68, 1, 0
    %v1462 = vsel %vm69, 1, 0
    %v1463 = vsel %vm70, 1, 0
    %vm1464 = vcmp.eq.s32.totalorder %v1460, 1
    %vm1465 = vcmp.eq.s32.totalorder %v1461, 1
    %vm1466 = vcmp.eq.s32.totalorder %v1462, 1
    %vm1467 = vcmp.eq.s32.totalorder %v1463, 1
    %v1468 = vsel %vm1464, %v1458, 0.0
    %v1469 = vsel %vm1465, %v1457, 0.0
    %v1470 = vsel %vm1466, %v1456, 0.0
    %v1471 = vsel %vm1467, %v1459, 0.0
    %s1472 = scalar_lea.vmem %s1, 64
    %v1473 = vld [vmem:[%s1472] sm:$0xff]
    %v1475 = vsel %vm125, %v1473, 0
    %1477 = vmatprep.subr.mxu0 %v1469
    %1478 = vmatpush1.msra.mxu0 %v1468
    %1479 = vmatprep.subr.mxu0 0.0
    %1480 = vmatpush1.msra.mxu0 0.0
    %1481 = vmatprep.subr.mxu0 0.0
    %1482 = vmatpush1.msra.mxu0 0.0
    %1483 = vmatprep.subr.mxu0 0.0
    %1484 = vmatpush1.msra.mxu0 0.0
    %1485 = vmatprep.subr.mxu0 0.0
    %1486 = vmatpush1.msra.mxu0 0.0
    %1487 = vmatprep.subr.mxu0 0.0
    %1488 = vmatpush1.msra.mxu0 0.0
    %1489 = vmatprep.subr.mxu0 0.0
    %1490 = vmatpush1.msra.mxu0 0.0
    %1491 = vmatprep.subr.mxu0 0.0
    %1492 = vmatpush1.msra.mxu0 0.0
    %1493 = vmatprep.subr.mxu0 0.0
    %1494 = vmatpush1.msra.mxu0 0.0
    %1495 = vmatprep.subr.mxu0 0.0
    %1496 = vmatpush1.msra.mxu0 0.0
    %1497 = vmatprep.subr.mxu0 0.0
    %1498 = vmatpush1.msra.mxu0 0.0
    %1499 = vmatprep.subr.mxu0 0.0
    %1500 = vmatpush1.msra.mxu0 0.0
    %1501 = vmatprep.subr.mxu0 0.0
    %1502 = vmatpush1.msra.mxu0 0.0
    %1503 = vmatprep.subr.mxu0 0.0
    %1504 = vmatpush1.msra.mxu0 0.0
    %1505 = vmatprep.subr.mxu0 0.0
    %1506 = vmatpush1.msra.mxu0 0.0
    %1507 = vmatprep.subr.mxu0 0.0
    %1508 = vmatpush1.msra.mxu0 0.0
    %1509 = vmatprep.subr.mxu0 0.0
    %1510 = vmatpush1.msra.mxu0 0.0
    %1511 = vmatprep.subr.mxu0 0.0
    %1512 = vmatpush1.msra.mxu0 0.0
    %1513 = vmatprep.subr.mxu0 0.0
    %1514 = vmatpush1.msra.mxu0 0.0
    %1515 = vmatprep.subr.mxu0 0.0
    %1516 = vmatpush1.msra.mxu0 0.0
    %1517 = vmatprep.subr.mxu0 0.0
    %1518 = vmatpush1.msra.mxu0 0.0
    %1519 = vmatprep.subr.mxu0 0.0
    %1520 = vmatpush1.msra.mxu0 0.0
    %1521 = vmatprep.subr.mxu0 0.0
    %1522 = vmatpush1.msra.mxu0 0.0
    %1523 = vmatprep.subr.mxu0 0.0
    %1524 = vmatpush1.msra.mxu0 0.0
    %1525 = vmatprep.subr.mxu0 0.0
    %1526 = vmatpush1.msra.mxu0 0.0
    %1527 = vmatprep.subr.mxu0 0.0
    %1528 = vmatpush1.msra.mxu0 0.0
    %1529 = vmatprep.subr.mxu0 0.0
    %1530 = vmatpush1.msra.mxu0 0.0
    %1531 = vmatprep.subr.mxu0 0.0
    %1532 = vmatpush1.msra.mxu0 0.0
    %1533 = vmatprep.subr.mxu0 0.0
    %1534 = vmatpush1.msra.mxu0 0.0
    %1535 = vmatprep.subr.mxu0 0.0
    %1536 = vmatpush1.msra.mxu0 0.0
    %1537 = vmatprep.subr.mxu0 0.0
    %1538 = vmatpush1.msra.mxu0 0.0
    %1539 = vmatprep.subr.mxu0 0.0
    %1540 = vmatpush1.msra.mxu0 0.0
    %1541 = vmatprep.mubr.f32.mxu0 0.0
    %1542 = vmatmul.mubr.f32.gmra.mrb[0].mxu0 %v1475
    %v1543 = vpop.f32.mrb[0].mxu0
    %v1544 = vadd.f32 0.0, %v1543
    %v1545 = vpop.f32.mrb[0].mxu0
    %v1546 = vadd.f32 0.0, %v1545
    %1547 = vdwg.mxu0
    %1548 = vmatprep.subr.mxu0 %v1471
    %1549 = vmatpush1.msra.mxu0 %v1470
    %1550 = vmatprep.subr.mxu0 0.0
    %1551 = vmatpush1.msra.mxu0 0.0
    %1552 = vmatprep.subr.mxu0 0.0
    %1553 = vmatpush1.msra.mxu0 0.0
    %1554 = vmatprep.subr.mxu0 0.0
    %1555 = vmatpush1.msra.mxu0 0.0
    %1556 = vmatprep.subr.mxu0 0.0
    %1557 = vmatpush1.msra.mxu0 0.0
    %1558 = vmatprep.subr.mxu0 0.0
    %1559 = vmatpush1.msra.mxu0 0.0
    %1560 = vmatprep.subr.mxu0 0.0
    %1561 = vmatpush1.msra.mxu0 0.0
    %1562 = vmatprep.subr.mxu0 0.0
    %1563 = vmatpush1.msra.mxu0 0.0
    %1564 = vmatprep.subr.mxu0 0.0
    %1565 = vmatpush1.msra.mxu0 0.0
    %1566 = vmatprep.subr.mxu0 0.0
    %1567 = vmatpush1.msra.mxu0 0.0
    %1568 = vmatprep.subr.mxu0 0.0
    %1569 = vmatpush1.msra.mxu0 0.0
    %1570 = vmatprep.subr.mxu0 0.0
    %1571 = vmatpush1.msra.mxu0 0.0
    %1572 = vmatprep.subr.mxu0 0.0
    %1573 = vmatpush1.msra.mxu0 0.0
    %1574 = vmatprep.subr.mxu0 0.0
    %1575 = vmatpush1.msra.mxu0 0.0
    %1576 = vmatprep.subr.mxu0 0.0
    %1577 = vmatpush1.msra.mxu0 0.0
    %1578 = vmatprep.subr.mxu0 0.0
    %1579 = vmatpush1.msra.mxu0 0.0
    %1580 = vmatprep.subr.mxu0 0.0
    %1581 = vmatpush1.msra.mxu0 0.0
    %1582 = vmatprep.subr.mxu0 0.0
    %1583 = vmatpush1.msra.mxu0 0.0
    %1584 = vmatprep.subr.mxu0 0.0
    %1585 = vmatpush1.msra.mxu0 0.0
    %1586 = vmatprep.subr.mxu0 0.0
    %1587 = vmatpush1.msra.mxu0 0.0
    %1588 = vmatprep.subr.mxu0 0.0
    %1589 = vmatpush1.msra.mxu0 0.0
    %1590 = vmatprep.subr.mxu0 0.0
    %1591 = vmatpush1.msra.mxu0 0.0
    %1592 = vmatprep.subr.mxu0 0.0
    %1593 = vmatpush1.msra.mxu0 0.0
    %1594 = vmatprep.subr.mxu0 0.0
    %1595 = vmatpush1.msra.mxu0 0.0
    %1596 = vmatprep.subr.mxu0 0.0
    %1597 = vmatpush1.msra.mxu0 0.0
    %1598 = vmatprep.subr.mxu0 0.0
    %1599 = vmatpush1.msra.mxu0 0.0
    %1600 = vmatprep.subr.mxu0 0.0
    %1601 = vmatpush1.msra.mxu0 0.0
    %1602 = vmatprep.subr.mxu0 0.0
    %1603 = vmatpush1.msra.mxu0 0.0
    %1604 = vmatprep.subr.mxu0 0.0
    %1605 = vmatpush1.msra.mxu0 0.0
    %1606 = vmatprep.subr.mxu0 0.0
    %1607 = vmatpush1.msra.mxu0 0.0
    %1608 = vmatprep.subr.mxu0 0.0
    %1609 = vmatpush1.msra.mxu0 0.0
    %1610 = vmatprep.subr.mxu0 0.0
    %1611 = vmatpush1.msra.mxu0 0.0
    %1612 = vmatprep.mubr.f32.mxu0 0.0
    %1613 = vmatmul.mubr.f32.gmra.mrb[0].mxu0 %v1475
    %v1614 = vpop.f32.mrb[0].mxu0
    %v1615 = vadd.f32 0.0, %v1614
    %v1616 = vpop.f32.mrb[0].mxu0
    %v1617 = vadd.f32 0.0, %v1616
    %1618 = vdwg.mxu0
    %v1619 = vadd.f32 %v1443, %v1544
    %v1620 = vadd.f32 %v1444, %v1546
    %v1621 = vadd.f32 %v1445, %v1615
    %v1622 = vadd.f32 %v1446, %v1617
    %v1623 = vadd.f32 %v1619, %v1620
    %v1624 = vadd.f32 %v1623, %v1621
    %v1625 = vadd.f32 %v1624, %v1622
    %1626 = vadd.xlane.f32.xlu0 %v1625
    %v1627 = vpop.xlane.xlu0 %1626
    %v1628 = vmul.f32 %v1627, 0.001953125
    %v1629 = vmul.f32 %v1619, %v1619
    %v1630 = vmul.f32 %v1620, %v1620
    %v1631 = vmul.f32 %v1621, %v1621
    %v1632 = vmul.f32 %v1622, %v1622
    %v1633 = vadd.f32 %v1629, %v1630
    %v1634 = vadd.f32 %v1633, %v1631
    %v1635 = vadd.f32 %v1634, %v1632
    %1636 = vadd.xlane.f32.xlu0 %v1635
    %v1637 = vpop.xlane.xlu0 %1636
    %v1638 = vmul.f32 %v1637, 0.001953125
    %v1639 = vmul.f32 %v1628, %v1628
    %v1640 = vsub.f32 %v1638, %v1639
    %v1641 = vmax.f32 %v1640, 0.0
    %v1642 = vadd.f32 %v1641, 1e-05
    %v1643 = vrsqrt.pop %v1642
    %v1644 = vmul.f32 %v1643, %v71
    %v1645 = vmul.f32 %v1628, %v1644
    %1647 = vrot.lane.b32.xlu0 %v1645, 1
    %v1648 = vpop.permute.xlu0 %1647
    %v1650 = vsub.f32 %v71, %v1648
    %1652 = vset.pattern.permute.xlu0 0
    %1653 = vperm.xlu0 %1652, %v1644
    %v1654 = vpop.permute.xlu0 %1653
    %v1656 = vmul.f32 %v1619, %v1654
    %v1657 = vmul.f32 %v1620, %v1654
    %v1658 = vmul.f32 %v1621, %v1654
    %v1659 = vmul.f32 %v1622, %v1654
    %1661 = vset.pattern.permute.xlu0 1
    %1662 = vperm.xlu0 %1661, %v1650
    %v1663 = vpop.permute.xlu0 %1662
    %v1665 = vadd.f32 %v1656, %v1663
    %v1666 = vadd.f32 %v1657, %v1663
    %v1667 = vadd.f32 %v1658, %v1663
    %v1668 = vadd.f32 %v1659, %v1663
    %v1669 = vmax.f32 %v1665, 0.0
    %v1670 = vmax.f32 %v1666, 0.0
    %v1671 = vmax.f32 %v1667, 0.0
    %v1672 = vmax.f32 %v1668, 0.0
    %1673 = vrot.lane.b32.xlu0 %v1669, 17
    %v1674 = vpop.permute.xlu0 %1673
    %1675 = vrot.lane.b32.xlu0 %v1670, 17
    %v1676 = vpop.permute.xlu0 %1675
    %1677 = vrot.lane.b32.xlu0 %v1671, 17
    %v1678 = vpop.permute.xlu0 %1677
    %1679 = vrot.lane.b32.xlu0 %v1672, 17
    %v1680 = vpop.permute.xlu0 %1679
    %v1681 = vsel %vm80, %v1678, %v1680
    %v1682 = vsel %vm80, %v1676, %v1678
    %v1683 = vsel %vm80, %v1674, %v1676
    %v1684 = vsel %vm80, %v1680, %v1674
    %v1685 = vsel %vm89, %v1684, 0.0
    %v1686 = vsel %vm90, %v1683, 0.0
    %v1687 = vsel %vm91, %v1682, 0.0
    %v1688 = vsel %vm92, %v1681, 0.0
    %v1689 = vld [vmem:[%s2] sm:$0xff]
    %1690 = vrot.lane.b32.xlu0 %v1669, 16
    %v1691 = vpop.permute.xlu0 %1690
    %1692 = vrot.lane.b32.xlu0 %v1670, 16
    %v1693 = vpop.permute.xlu0 %1692
    %1694 = vrot.lane.b32.xlu0 %v1671, 16
    %v1695 = vpop.permute.xlu0 %1694
    %1696 = vrot.lane.b32.xlu0 %v1672, 16
    %v1697 = vpop.permute.xlu0 %1696
    %v1698 = vsel %vm106, %v1695, %v1697
    %v1699 = vsel %vm106, %v1693, %v1695
    %v1700 = vsel %vm106, %v1691, %v1693
    %v1701 = vsel %vm106, %v1697, %v1691
    %v1702 = vsel %vm115, %v1701, 0.0
    %v1703 = vsel %vm116, %v1700, 0.0
    %v1704 = vsel %vm117, %v1699, 0.0
    %v1705 = vsel %vm118, %v1698, 0.0
    %s1706 = scalar_lea.vmem %s2, 8
    %v1707 = vld [vmem:[%s1706] sm:$0xff]
    %v1709 = vsel %vm125, %v1707, 0
    %1711 = vmatprep.subr.mxu0 %v1703
    %1712 = vmatpush1.msra.mxu0 %v1702
    %1713 = vmatprep.subr.mxu0 0.0
    %1714 = vmatpush1.msra.mxu0 0.0
    %1715 = vmatprep.subr.mxu0 0.0
    %1716 = vmatpush1.msra.mxu0 0.0
    %1717 = vmatprep.subr.mxu0 0.0
    %1718 = vmatpush1.msra.mxu0 0.0
    %1719 = vmatprep.subr.mxu0 0.0
    %1720 = vmatpush1.msra.mxu0 0.0
    %1721 = vmatprep.subr.mxu0 0.0
    %1722 = vmatpush1.msra.mxu0 0.0
    %1723 = vmatprep.subr.mxu0 0.0
    %1724 = vmatpush1.msra.mxu0 0.0
    %1725 = vmatprep.subr.mxu0 0.0
    %1726 = vmatpush1.msra.mxu0 0.0
    %1727 = vmatprep.subr.mxu0 0.0
    %1728 = vmatpush1.msra.mxu0 0.0
    %1729 = vmatprep.subr.mxu0 0.0
    %1730 = vmatpush1.msra.mxu0 0.0
    %1731 = vmatprep.subr.mxu0 0.0
    %1732 = vmatpush1.msra.mxu0 0.0
    %1733 = vmatprep.subr.mxu0 0.0
    %1734 = vmatpush1.msra.mxu0 0.0
    %1735 = vmatprep.subr.mxu0 0.0
    %1736 = vmatpush1.msra.mxu0 0.0
    %1737 = vmatprep.subr.mxu0 0.0
    %1738 = vmatpush1.msra.mxu0 0.0
    %1739 = vmatprep.subr.mxu0 0.0
    %1740 = vmatpush1.msra.mxu0 0.0
    %1741 = vmatprep.subr.mxu0 0.0
    %1742 = vmatpush1.msra.mxu0 0.0
    %1743 = vmatprep.subr.mxu0 0.0
    %1744 = vmatpush1.msra.mxu0 0.0
    %1745 = vmatprep.subr.mxu0 0.0
    %1746 = vmatpush1.msra.mxu0 0.0
    %1747 = vmatprep.subr.mxu0 0.0
    %1748 = vmatpush1.msra.mxu0 0.0
    %1749 = vmatprep.subr.mxu0 0.0
    %1750 = vmatpush1.msra.mxu0 0.0
    %1751 = vmatprep.subr.mxu0 0.0
    %1752 = vmatpush1.msra.mxu0 0.0
    %1753 = vmatprep.subr.mxu0 0.0
    %1754 = vmatpush1.msra.mxu0 0.0
    %1755 = vmatprep.subr.mxu0 0.0
    %1756 = vmatpush1.msra.mxu0 0.0
    %1757 = vmatprep.subr.mxu0 0.0
    %1758 = vmatpush1.msra.mxu0 0.0
    %1759 = vmatprep.subr.mxu0 0.0
    %1760 = vmatpush1.msra.mxu0 0.0
    %1761 = vmatprep.subr.mxu0 0.0
    %1762 = vmatpush1.msra.mxu0 0.0
    %1763 = vmatprep.subr.mxu0 0.0
    %1764 = vmatpush1.msra.mxu0 0.0
    %1765 = vmatprep.subr.mxu0 0.0
    %1766 = vmatpush1.msra.mxu0 0.0
    %1767 = vmatprep.subr.mxu0 0.0
    %1768 = vmatpush1.msra.mxu0 0.0
    %1769 = vmatprep.subr.mxu0 0.0
    %1770 = vmatpush1.msra.mxu0 0.0
    %1771 = vmatprep.subr.mxu0 0.0
    %1772 = vmatpush1.msra.mxu0 0.0
    %1773 = vmatprep.subr.mxu0 0.0
    %1774 = vmatpush1.msra.mxu0 0.0
    %1775 = vmatprep.mubr.f32.mxu0 0.0
    %1776 = vmatmul.mubr.f32.gmra.mrb[0].mxu0 %v1709
    %v1777 = vpop.f32.mrb[0].mxu0
    %v1778 = vadd.f32 0.0, %v1777
    %v1779 = vpop.f32.mrb[0].mxu0
    %v1780 = vadd.f32 0.0, %v1779
    %1781 = vdwg.mxu0
    %1782 = vmatprep.subr.mxu0 %v1705
    %1783 = vmatpush1.msra.mxu0 %v1704
    %1784 = vmatprep.subr.mxu0 0.0
    %1785 = vmatpush1.msra.mxu0 0.0
    %1786 = vmatprep.subr.mxu0 0.0
    %1787 = vmatpush1.msra.mxu0 0.0
    %1788 = vmatprep.subr.mxu0 0.0
    %1789 = vmatpush1.msra.mxu0 0.0
    %1790 = vmatprep.subr.mxu0 0.0
    %1791 = vmatpush1.msra.mxu0 0.0
    %1792 = vmatprep.subr.mxu0 0.0
    %1793 = vmatpush1.msra.mxu0 0.0
    %1794 = vmatprep.subr.mxu0 0.0
    %1795 = vmatpush1.msra.mxu0 0.0
    %1796 = vmatprep.subr.mxu0 0.0
    %1797 = vmatpush1.msra.mxu0 0.0
    %1798 = vmatprep.subr.mxu0 0.0
    %1799 = vmatpush1.msra.mxu0 0.0
    %1800 = vmatprep.subr.mxu0 0.0
    %1801 = vmatpush1.msra.mxu0 0.0
    %1802 = vmatprep.subr.mxu0 0.0
    %1803 = vmatpush1.msra.mxu0 0.0
    %1804 = vmatprep.subr.mxu0 0.0
    %1805 = vmatpush1.msra.mxu0 0.0
    %1806 = vmatprep.subr.mxu0 0.0
    %1807 = vmatpush1.msra.mxu0 0.0
    %1808 = vmatprep.subr.mxu0 0.0
    %1809 = vmatpush1.msra.mxu0 0.0
    %1810 = vmatprep.subr.mxu0 0.0
    %1811 = vmatpush1.msra.mxu0 0.0
    %1812 = vmatprep.subr.mxu0 0.0
    %1813 = vmatpush1.msra.mxu0 0.0
    %1814 = vmatprep.subr.mxu0 0.0
    %1815 = vmatpush1.msra.mxu0 0.0
    %1816 = vmatprep.subr.mxu0 0.0
    %1817 = vmatpush1.msra.mxu0 0.0
    %1818 = vmatprep.subr.mxu0 0.0
    %1819 = vmatpush1.msra.mxu0 0.0
    %1820 = vmatprep.subr.mxu0 0.0
    %1821 = vmatpush1.msra.mxu0 0.0
    %1822 = vmatprep.subr.mxu0 0.0
    %1823 = vmatpush1.msra.mxu0 0.0
    %1824 = vmatprep.subr.mxu0 0.0
    %1825 = vmatpush1.msra.mxu0 0.0
    %1826 = vmatprep.subr.mxu0 0.0
    %1827 = vmatpush1.msra.mxu0 0.0
    %1828 = vmatprep.subr.mxu0 0.0
    %1829 = vmatpush1.msra.mxu0 0.0
    %1830 = vmatprep.subr.mxu0 0.0
    %1831 = vmatpush1.msra.mxu0 0.0
    %1832 = vmatprep.subr.mxu0 0.0
    %1833 = vmatpush1.msra.mxu0 0.0
    %1834 = vmatprep.subr.mxu0 0.0
    %1835 = vmatpush1.msra.mxu0 0.0
    %1836 = vmatprep.subr.mxu0 0.0
    %1837 = vmatpush1.msra.mxu0 0.0
    %1838 = vmatprep.subr.mxu0 0.0
    %1839 = vmatpush1.msra.mxu0 0.0
    %1840 = vmatprep.subr.mxu0 0.0
    %1841 = vmatpush1.msra.mxu0 0.0
    %1842 = vmatprep.subr.mxu0 0.0
    %1843 = vmatpush1.msra.mxu0 0.0
    %1844 = vmatprep.subr.mxu0 0.0
    %1845 = vmatpush1.msra.mxu0 0.0
    %1846 = vmatprep.mubr.f32.mxu0 0.0
    %1847 = vmatmul.mubr.f32.gmra.mrb[0].mxu0 %v1709
    %v1848 = vpop.f32.mrb[0].mxu0
    %v1849 = vadd.f32 0.0, %v1848
    %v1850 = vpop.f32.mrb[0].mxu0
    %v1851 = vadd.f32 0.0, %v1850
    %1852 = vdwg.mxu0
    %v1854 = vsel %vm125, %v1689, 0
    %1856 = vmatprep.subr.mxu0 %v1686
    %1857 = vmatpush1.msra.mxu0 %v1685
    %1858 = vmatprep.subr.mxu0 0.0
    %1859 = vmatpush1.msra.mxu0 0.0
    %1860 = vmatprep.subr.mxu0 0.0
    %1861 = vmatpush1.msra.mxu0 0.0
    %1862 = vmatprep.subr.mxu0 0.0
    %1863 = vmatpush1.msra.mxu0 0.0
    %1864 = vmatprep.subr.mxu0 0.0
    %1865 = vmatpush1.msra.mxu0 0.0
    %1866 = vmatprep.subr.mxu0 0.0
    %1867 = vmatpush1.msra.mxu0 0.0
    %1868 = vmatprep.subr.mxu0 0.0
    %1869 = vmatpush1.msra.mxu0 0.0
    %1870 = vmatprep.subr.mxu0 0.0
    %1871 = vmatpush1.msra.mxu0 0.0
    %1872 = vmatprep.subr.mxu0 0.0
    %1873 = vmatpush1.msra.mxu0 0.0
    %1874 = vmatprep.subr.mxu0 0.0
    %1875 = vmatpush1.msra.mxu0 0.0
    %1876 = vmatprep.subr.mxu0 0.0
    %1877 = vmatpush1.msra.mxu0 0.0
    %1878 = vmatprep.subr.mxu0 0.0
    %1879 = vmatpush1.msra.mxu0 0.0
    %1880 = vmatprep.subr.mxu0 0.0
    %1881 = vmatpush1.msra.mxu0 0.0
    %1882 = vmatprep.subr.mxu0 0.0
    %1883 = vmatpush1.msra.mxu0 0.0
    %1884 = vmatprep.subr.mxu0 0.0
    %1885 = vmatpush1.msra.mxu0 0.0
    %1886 = vmatprep.subr.mxu0 0.0
    %1887 = vmatpush1.msra.mxu0 0.0
    %1888 = vmatprep.subr.mxu0 0.0
    %1889 = vmatpush1.msra.mxu0 0.0
    %1890 = vmatprep.subr.mxu0 0.0
    %1891 = vmatpush1.msra.mxu0 0.0
    %1892 = vmatprep.subr.mxu0 0.0
    %1893 = vmatpush1.msra.mxu0 0.0
    %1894 = vmatprep.subr.mxu0 0.0
    %1895 = vmatpush1.msra.mxu0 0.0
    %1896 = vmatprep.subr.mxu0 0.0
    %1897 = vmatpush1.msra.mxu0 0.0
    %1898 = vmatprep.subr.mxu0 0.0
    %1899 = vmatpush1.msra.mxu0 0.0
    %1900 = vmatprep.subr.mxu0 0.0
    %1901 = vmatpush1.msra.mxu0 0.0
    %1902 = vmatprep.subr.mxu0 0.0
    %1903 = vmatpush1.msra.mxu0 0.0
    %1904 = vmatprep.subr.mxu0 0.0
    %1905 = vmatpush1.msra.mxu0 0.0
    %1906 = vmatprep.subr.mxu0 0.0
    %1907 = vmatpush1.msra.mxu0 0.0
    %1908 = vmatprep.subr.mxu0 0.0
    %1909 = vmatpush1.msra.mxu0 0.0
    %1910 = vmatprep.subr.mxu0 0.0
    %1911 = vmatpush1.msra.mxu0 0.0
    %1912 = vmatprep.subr.mxu0 0.0
    %1913 = vmatpush1.msra.mxu0 0.0
    %1914 = vmatprep.subr.mxu0 0.0
    %1915 = vmatpush1.msra.mxu0 0.0
    %1916 = vmatprep.subr.mxu0 0.0
    %1917 = vmatpush1.msra.mxu0 0.0
    %1918 = vmatprep.subr.mxu0 0.0
    %1919 = vmatpush1.msra.mxu0 0.0
    %1920 = vmatprep.mubr.f32.mxu0 0.0
    %1921 = vmatmul.mubr.f32.gmra.mrb[0].mxu0 %v1854
    %v1922 = vpop.f32.mrb[0].mxu0
    %v1923 = vadd.f32 %v1778, %v1922
    %v1924 = vpop.f32.mrb[0].mxu0
    %v1925 = vadd.f32 %v1780, %v1924
    %1926 = vdwg.mxu0
    %1927 = vmatprep.subr.mxu0 %v1688
    %1928 = vmatpush1.msra.mxu0 %v1687
    %1929 = vmatprep.subr.mxu0 0.0
    %1930 = vmatpush1.msra.mxu0 0.0
    %1931 = vmatprep.subr.mxu0 0.0
    %1932 = vmatpush1.msra.mxu0 0.0
    %1933 = vmatprep.subr.mxu0 0.0
    %1934 = vmatpush1.msra.mxu0 0.0
    %1935 = vmatprep.subr.mxu0 0.0
    %1936 = vmatpush1.msra.mxu0 0.0
    %1937 = vmatprep.subr.mxu0 0.0
    %1938 = vmatpush1.msra.mxu0 0.0
    %1939 = vmatprep.subr.mxu0 0.0
    %1940 = vmatpush1.msra.mxu0 0.0
    %1941 = vmatprep.subr.mxu0 0.0
    %1942 = vmatpush1.msra.mxu0 0.0
    %1943 = vmatprep.subr.mxu0 0.0
    %1944 = vmatpush1.msra.mxu0 0.0
    %1945 = vmatprep.subr.mxu0 0.0
    %1946 = vmatpush1.msra.mxu0 0.0
    %1947 = vmatprep.subr.mxu0 0.0
    %1948 = vmatpush1.msra.mxu0 0.0
    %1949 = vmatprep.subr.mxu0 0.0
    %1950 = vmatpush1.msra.mxu0 0.0
    %1951 = vmatprep.subr.mxu0 0.0
    %1952 = vmatpush1.msra.mxu0 0.0
    %1953 = vmatprep.subr.mxu0 0.0
    %1954 = vmatpush1.msra.mxu0 0.0
    %1955 = vmatprep.subr.mxu0 0.0
    %1956 = vmatpush1.msra.mxu0 0.0
    %1957 = vmatprep.subr.mxu0 0.0
    %1958 = vmatpush1.msra.mxu0 0.0
    %1959 = vmatprep.subr.mxu0 0.0
    %1960 = vmatpush1.msra.mxu0 0.0
    %1961 = vmatprep.subr.mxu0 0.0
    %1962 = vmatpush1.msra.mxu0 0.0
    %1963 = vmatprep.subr.mxu0 0.0
    %1964 = vmatpush1.msra.mxu0 0.0
    %1965 = vmatprep.subr.mxu0 0.0
    %1966 = vmatpush1.msra.mxu0 0.0
    %1967 = vmatprep.subr.mxu0 0.0
    %1968 = vmatpush1.msra.mxu0 0.0
    %1969 = vmatprep.subr.mxu0 0.0
    %1970 = vmatpush1.msra.mxu0 0.0
    %1971 = vmatprep.subr.mxu0 0.0
    %1972 = vmatpush1.msra.mxu0 0.0
    %1973 = vmatprep.subr.mxu0 0.0
    %1974 = vmatpush1.msra.mxu0 0.0
    %1975 = vmatprep.subr.mxu0 0.0
    %1976 = vmatpush1.msra.mxu0 0.0
    %1977 = vmatprep.subr.mxu0 0.0
    %1978 = vmatpush1.msra.mxu0 0.0
    %1979 = vmatprep.subr.mxu0 0.0
    %1980 = vmatpush1.msra.mxu0 0.0
    %1981 = vmatprep.subr.mxu0 0.0
    %1982 = vmatpush1.msra.mxu0 0.0
    %1983 = vmatprep.subr.mxu0 0.0
    %1984 = vmatpush1.msra.mxu0 0.0
    %1985 = vmatprep.subr.mxu0 0.0
    %1986 = vmatpush1.msra.mxu0 0.0
    %1987 = vmatprep.subr.mxu0 0.0
    %1988 = vmatpush1.msra.mxu0 0.0
    %1989 = vmatprep.subr.mxu0 0.0
    %1990 = vmatpush1.msra.mxu0 0.0
    %1991 = vmatprep.mubr.f32.mxu0 0.0
    %1992 = vmatmul.mubr.f32.gmra.mrb[0].mxu0 %v1854
    %v1993 = vpop.f32.mrb[0].mxu0
    %v1994 = vadd.f32 %v1849, %v1993
    %v1995 = vpop.f32.mrb[0].mxu0
    %v1996 = vadd.f32 %v1851, %v1995
    %1997 = vdwg.mxu0
    %1998 = vrot.lane.b32.xlu0 %v1669, 15
    %v1999 = vpop.permute.xlu0 %1998
    %2000 = vrot.lane.b32.xlu0 %v1670, 15
    %v2001 = vpop.permute.xlu0 %2000
    %2002 = vrot.lane.b32.xlu0 %v1671, 15
    %v2003 = vpop.permute.xlu0 %2002
    %2004 = vrot.lane.b32.xlu0 %v1672, 15
    %v2005 = vpop.permute.xlu0 %2004
    %v2006 = vsel %vm424, %v2003, %v2005
    %v2007 = vsel %vm424, %v2001, %v2003
    %v2008 = vsel %vm424, %v1999, %v2001
    %v2009 = vsel %vm424, %v2005, %v1999
    %v2010 = vsel %vm433, %v2009, 0.0
    %v2011 = vsel %vm434, %v2008, 0.0
    %v2012 = vsel %vm435, %v2007, 0.0
    %v2013 = vsel %vm436, %v2006, 0.0
    %s2014 = scalar_lea.vmem %s2, 16
    %v2015 = vld [vmem:[%s2014] sm:$0xff]
    %v2017 = vsel %vm125, %v2015, 0
    %2019 = vmatprep.subr.mxu0 %v2011
    %2020 = vmatpush1.msra.mxu0 %v2010
    %2021 = vmatprep.subr.mxu0 0.0
    %2022 = vmatpush1.msra.mxu0 0.0
    %2023 = vmatprep.subr.mxu0 0.0
    %2024 = vmatpush1.msra.mxu0 0.0
    %2025 = vmatprep.subr.mxu0 0.0
    %2026 = vmatpush1.msra.mxu0 0.0
    %2027 = vmatprep.subr.mxu0 0.0
    %2028 = vmatpush1.msra.mxu0 0.0
    %2029 = vmatprep.subr.mxu0 0.0
    %2030 = vmatpush1.msra.mxu0 0.0
    %2031 = vmatprep.subr.mxu0 0.0
    %2032 = vmatpush1.msra.mxu0 0.0
    %2033 = vmatprep.subr.mxu0 0.0
    %2034 = vmatpush1.msra.mxu0 0.0
    %2035 = vmatprep.subr.mxu0 0.0
    %2036 = vmatpush1.msra.mxu0 0.0
    %2037 = vmatprep.subr.mxu0 0.0
    %2038 = vmatpush1.msra.mxu0 0.0
    %2039 = vmatprep.subr.mxu0 0.0
    %2040 = vmatpush1.msra.mxu0 0.0
    %2041 = vmatprep.subr.mxu0 0.0
    %2042 = vmatpush1.msra.mxu0 0.0
    %2043 = vmatprep.subr.mxu0 0.0
    %2044 = vmatpush1.msra.mxu0 0.0
    %2045 = vmatprep.subr.mxu0 0.0
    %2046 = vmatpush1.msra.mxu0 0.0
    %2047 = vmatprep.subr.mxu0 0.0
    %2048 = vmatpush1.msra.mxu0 0.0
    %2049 = vmatprep.subr.mxu0 0.0
    %2050 = vmatpush1.msra.mxu0 0.0
    %2051 = vmatprep.subr.mxu0 0.0
    %2052 = vmatpush1.msra.mxu0 0.0
    %2053 = vmatprep.subr.mxu0 0.0
    %2054 = vmatpush1.msra.mxu0 0.0
    %2055 = vmatprep.subr.mxu0 0.0
    %2056 = vmatpush1.msra.mxu0 0.0
    %2057 = vmatprep.subr.mxu0 0.0
    %2058 = vmatpush1.msra.mxu0 0.0
    %2059 = vmatprep.subr.mxu0 0.0
    %2060 = vmatpush1.msra.mxu0 0.0
    %2061 = vmatprep.subr.mxu0 0.0
    %2062 = vmatpush1.msra.mxu0 0.0
    %2063 = vmatprep.subr.mxu0 0.0
    %2064 = vmatpush1.msra.mxu0 0.0
    %2065 = vmatprep.subr.mxu0 0.0
    %2066 = vmatpush1.msra.mxu0 0.0
    %2067 = vmatprep.subr.mxu0 0.0
    %2068 = vmatpush1.msra.mxu0 0.0
    %2069 = vmatprep.subr.mxu0 0.0
    %2070 = vmatpush1.msra.mxu0 0.0
    %2071 = vmatprep.subr.mxu0 0.0
    %2072 = vmatpush1.msra.mxu0 0.0
    %2073 = vmatprep.subr.mxu0 0.0
    %2074 = vmatpush1.msra.mxu0 0.0
    %2075 = vmatprep.subr.mxu0 0.0
    %2076 = vmatpush1.msra.mxu0 0.0
    %2077 = vmatprep.subr.mxu0 0.0
    %2078 = vmatpush1.msra.mxu0 0.0
    %2079 = vmatprep.subr.mxu0 0.0
    %2080 = vmatpush1.msra.mxu0 0.0
    %2081 = vmatprep.subr.mxu0 0.0
    %2082 = vmatpush1.msra.mxu0 0.0
    %2083 = vmatprep.mubr.f32.mxu0 0.0
    %2084 = vmatmul.mubr.f32.gmra.mrb[0].mxu0 %v2017
    %v2085 = vpop.f32.mrb[0].mxu0
    %v2086 = vadd.f32 0.0, %v2085
    %v2087 = vpop.f32.mrb[0].mxu0
    %v2088 = vadd.f32 0.0, %v2087
    %2089 = vdwg.mxu0
    %2090 = vmatprep.subr.mxu0 %v2013
    %2091 = vmatpush1.msra.mxu0 %v2012
    %2092 = vmatprep.subr.mxu0 0.0
    %2093 = vmatpush1.msra.mxu0 0.0
    %2094 = vmatprep.subr.mxu0 0.0
    %2095 = vmatpush1.msra.mxu0 0.0
    %2096 = vmatprep.subr.mxu0 0.0
    %2097 = vmatpush1.msra.mxu0 0.0
    %2098 = vmatprep.subr.mxu0 0.0
    %2099 = vmatpush1.msra.mxu0 0.0
    %2100 = vmatprep.subr.mxu0 0.0
    %2101 = vmatpush1.msra.mxu0 0.0
    %2102 = vmatprep.subr.mxu0 0.0
    %2103 = vmatpush1.msra.mxu0 0.0
    %2104 = vmatprep.subr.mxu0 0.0
    %2105 = vmatpush1.msra.mxu0 0.0
    %2106 = vmatprep.subr.mxu0 0.0
    %2107 = vmatpush1.msra.mxu0 0.0
    %2108 = vmatprep.subr.mxu0 0.0
    %2109 = vmatpush1.msra.mxu0 0.0
    %2110 = vmatprep.subr.mxu0 0.0
    %2111 = vmatpush1.msra.mxu0 0.0
    %2112 = vmatprep.subr.mxu0 0.0
    %2113 = vmatpush1.msra.mxu0 0.0
    %2114 = vmatprep.subr.mxu0 0.0
    %2115 = vmatpush1.msra.mxu0 0.0
    %2116 = vmatprep.subr.mxu0 0.0
    %2117 = vmatpush1.msra.mxu0 0.0
    %2118 = vmatprep.subr.mxu0 0.0
    %2119 = vmatpush1.msra.mxu0 0.0
    %2120 = vmatprep.subr.mxu0 0.0
    %2121 = vmatpush1.msra.mxu0 0.0
    %2122 = vmatprep.subr.mxu0 0.0
    %2123 = vmatpush1.msra.mxu0 0.0
    %2124 = vmatprep.subr.mxu0 0.0
    %2125 = vmatpush1.msra.mxu0 0.0
    %2126 = vmatprep.subr.mxu0 0.0
    %2127 = vmatpush1.msra.mxu0 0.0
    %2128 = vmatprep.subr.mxu0 0.0
    %2129 = vmatpush1.msra.mxu0 0.0
    %2130 = vmatprep.subr.mxu0 0.0
    %2131 = vmatpush1.msra.mxu0 0.0
    %2132 = vmatprep.subr.mxu0 0.0
    %2133 = vmatpush1.msra.mxu0 0.0
    %2134 = vmatprep.subr.mxu0 0.0
    %2135 = vmatpush1.msra.mxu0 0.0
    %2136 = vmatprep.subr.mxu0 0.0
    %2137 = vmatpush1.msra.mxu0 0.0
    %2138 = vmatprep.subr.mxu0 0.0
    %2139 = vmatpush1.msra.mxu0 0.0
    %2140 = vmatprep.subr.mxu0 0.0
    %2141 = vmatpush1.msra.mxu0 0.0
    %2142 = vmatprep.subr.mxu0 0.0
    %2143 = vmatpush1.msra.mxu0 0.0
    %2144 = vmatprep.subr.mxu0 0.0
    %2145 = vmatpush1.msra.mxu0 0.0
    %2146 = vmatprep.subr.mxu0 0.0
    %2147 = vmatpush1.msra.mxu0 0.0
    %2148 = vmatprep.subr.mxu0 0.0
    %2149 = vmatpush1.msra.mxu0 0.0
    %2150 = vmatprep.subr.mxu0 0.0
    %2151 = vmatpush1.msra.mxu0 0.0
    %2152 = vmatprep.subr.mxu0 0.0
    %2153 = vmatpush1.msra.mxu0 0.0
    %2154 = vmatprep.mubr.f32.mxu0 0.0
    %2155 = vmatmul.mubr.f32.gmra.mrb[0].mxu0 %v2017
    %v2156 = vpop.f32.mrb[0].mxu0
    %v2157 = vadd.f32 0.0, %v2156
    %v2158 = vpop.f32.mrb[0].mxu0
    %v2159 = vadd.f32 0.0, %v2158
    %2160 = vdwg.mxu0
    %v2161 = vadd.f32 %v1923, %v2086
    %v2162 = vadd.f32 %v1925, %v2088
    %v2163 = vadd.f32 %v1994, %v2157
    %v2164 = vadd.f32 %v1996, %v2159
    %2165 = vrot.lane.b32.xlu0 %v1669, 1
    %v2166 = vpop.permute.xlu0 %2165
    %2167 = vrot.lane.b32.xlu0 %v1670, 1
    %v2168 = vpop.permute.xlu0 %2167
    %2169 = vrot.lane.b32.xlu0 %v1671, 1
    %v2170 = vpop.permute.xlu0 %2169
    %2171 = vrot.lane.b32.xlu0 %v1672, 1
    %v2172 = vpop.permute.xlu0 %2171
    %v2173 = vsel %vm600, %v2170, %v2172
    %v2174 = vsel %vm600, %v2168, %v2170
    %v2175 = vsel %vm600, %v2166, %v2168
    %v2176 = vsel %vm600, %v2172, %v2166
    %v2177 = vsel %vm609, %v2176, 0.0
    %v2178 = vsel %vm610, %v2175, 0.0
    %v2179 = vsel %vm611, %v2174, 0.0
    %v2180 = vsel %vm612, %v2173, 0.0
    %s2181 = scalar_lea.vmem %s2, 24
    %v2182 = vld [vmem:[%s2181] sm:$0xff]
    %v2184 = vsel %vm125, %v2182, 0
    %2186 = vmatprep.subr.mxu0 %v2178
    %2187 = vmatpush1.msra.mxu0 %v2177
    %2188 = vmatprep.subr.mxu0 0.0
    %2189 = vmatpush1.msra.mxu0 0.0
    %2190 = vmatprep.subr.mxu0 0.0
    %2191 = vmatpush1.msra.mxu0 0.0
    %2192 = vmatprep.subr.mxu0 0.0
    %2193 = vmatpush1.msra.mxu0 0.0
    %2194 = vmatprep.subr.mxu0 0.0
    %2195 = vmatpush1.msra.mxu0 0.0
    %2196 = vmatprep.subr.mxu0 0.0
    %2197 = vmatpush1.msra.mxu0 0.0
    %2198 = vmatprep.subr.mxu0 0.0
    %2199 = vmatpush1.msra.mxu0 0.0
    %2200 = vmatprep.subr.mxu0 0.0
    %2201 = vmatpush1.msra.mxu0 0.0
    %2202 = vmatprep.subr.mxu0 0.0
    %2203 = vmatpush1.msra.mxu0 0.0
    %2204 = vmatprep.subr.mxu0 0.0
    %2205 = vmatpush1.msra.mxu0 0.0
    %2206 = vmatprep.subr.mxu0 0.0
    %2207 = vmatpush1.msra.mxu0 0.0
    %2208 = vmatprep.subr.mxu0 0.0
    %2209 = vmatpush1.msra.mxu0 0.0
    %2210 = vmatprep.subr.mxu0 0.0
    %2211 = vmatpush1.msra.mxu0 0.0
    %2212 = vmatprep.subr.mxu0 0.0
    %2213 = vmatpush1.msra.mxu0 0.0
    %2214 = vmatprep.subr.mxu0 0.0
    %2215 = vmatpush1.msra.mxu0 0.0
    %2216 = vmatprep.subr.mxu0 0.0
    %2217 = vmatpush1.msra.mxu0 0.0
    %2218 = vmatprep.subr.mxu0 0.0
    %2219 = vmatpush1.msra.mxu0 0.0
    %2220 = vmatprep.subr.mxu0 0.0
    %2221 = vmatpush1.msra.mxu0 0.0
    %2222 = vmatprep.subr.mxu0 0.0
    %2223 = vmatpush1.msra.mxu0 0.0
    %2224 = vmatprep.subr.mxu0 0.0
    %2225 = vmatpush1.msra.mxu0 0.0
    %2226 = vmatprep.subr.mxu0 0.0
    %2227 = vmatpush1.msra.mxu0 0.0
    %2228 = vmatprep.subr.mxu0 0.0
    %2229 = vmatpush1.msra.mxu0 0.0
    %2230 = vmatprep.subr.mxu0 0.0
    %2231 = vmatpush1.msra.mxu0 0.0
    %2232 = vmatprep.subr.mxu0 0.0
    %2233 = vmatpush1.msra.mxu0 0.0
    %2234 = vmatprep.subr.mxu0 0.0
    %2235 = vmatpush1.msra.mxu0 0.0
    %2236 = vmatprep.subr.mxu0 0.0
    %2237 = vmatpush1.msra.mxu0 0.0
    %2238 = vmatprep.subr.mxu0 0.0
    %2239 = vmatpush1.msra.mxu0 0.0
    %2240 = vmatprep.subr.mxu0 0.0
    %2241 = vmatpush1.msra.mxu0 0.0
    %2242 = vmatprep.subr.mxu0 0.0
    %2243 = vmatpush1.msra.mxu0 0.0
    %2244 = vmatprep.subr.mxu0 0.0
    %2245 = vmatpush1.msra.mxu0 0.0
    %2246 = vmatprep.subr.mxu0 0.0
    %2247 = vmatpush1.msra.mxu0 0.0
    %2248 = vmatprep.subr.mxu0 0.0
    %2249 = vmatpush1.msra.mxu0 0.0
    %2250 = vmatprep.mubr.f32.mxu0 0.0
    %2251 = vmatmul.mubr.f32.gmra.mrb[0].mxu0 %v2184
    %v2252 = vpop.f32.mrb[0].mxu0
    %v2253 = vadd.f32 0.0, %v2252
    %v2254 = vpop.f32.mrb[0].mxu0
    %v2255 = vadd.f32 0.0, %v2254
    %2256 = vdwg.mxu0
    %2257 = vmatprep.subr.mxu0 %v2180
    %2258 = vmatpush1.msra.mxu0 %v2179
    %2259 = vmatprep.subr.mxu0 0.0
    %2260 = vmatpush1.msra.mxu0 0.0
    %2261 = vmatprep.subr.mxu0 0.0
    %2262 = vmatpush1.msra.mxu0 0.0
    %2263 = vmatprep.subr.mxu0 0.0
    %2264 = vmatpush1.msra.mxu0 0.0
    %2265 = vmatprep.subr.mxu0 0.0
    %2266 = vmatpush1.msra.mxu0 0.0
    %2267 = vmatprep.subr.mxu0 0.0
    %2268 = vmatpush1.msra.mxu0 0.0
    %2269 = vmatprep.subr.mxu0 0.0
    %2270 = vmatpush1.msra.mxu0 0.0
    %2271 = vmatprep.subr.mxu0 0.0
    %2272 = vmatpush1.msra.mxu0 0.0
    %2273 = vmatprep.subr.mxu0 0.0
    %2274 = vmatpush1.msra.mxu0 0.0
    %2275 = vmatprep.subr.mxu0 0.0
    %2276 = vmatpush1.msra.mxu0 0.0
    %2277 = vmatprep.subr.mxu0 0.0
    %2278 = vmatpush1.msra.mxu0 0.0
    %2279 = vmatprep.subr.mxu0 0.0
    %2280 = vmatpush1.msra.mxu0 0.0
    %2281 = vmatprep.subr.mxu0 0.0
    %2282 = vmatpush1.msra.mxu0 0.0
    %2283 = vmatprep.subr.mxu0 0.0
    %2284 = vmatpush1.msra.mxu0 0.0
    %2285 = vmatprep.subr.mxu0 0.0
    %2286 = vmatpush1.msra.mxu0 0.0
    %2287 = vmatprep.subr.mxu0 0.0
    %2288 = vmatpush1.msra.mxu0 0.0
    %2289 = vmatprep.subr.mxu0 0.0
    %2290 = vmatpush1.msra.mxu0 0.0
    %2291 = vmatprep.subr.mxu0 0.0
    %2292 = vmatpush1.msra.mxu0 0.0
    %2293 = vmatprep.subr.mxu0 0.0
    %2294 = vmatpush1.msra.mxu0 0.0
    %2295 = vmatprep.subr.mxu0 0.0
    %2296 = vmatpush1.msra.mxu0 0.0
    %2297 = vmatprep.subr.mxu0 0.0
    %2298 = vmatpush1.msra.mxu0 0.0
    %2299 = vmatprep.subr.mxu0 0.0
    %2300 = vmatpush1.msra.mxu0 0.0
    %2301 = vmatprep.subr.mxu0 0.0
    %2302 = vmatpush1.msra.mxu0 0.0
    %2303 = vmatprep.subr.mxu0 0.0
    %2304 = vmatpush1.msra.mxu0 0.0
    %2305 = vmatprep.subr.mxu0 0.0
    %2306 = vmatpush1.msra.mxu0 0.0
    %2307 = vmatprep.subr.mxu0 0.0
    %2308 = vmatpush1.msra.mxu0 0.0
    %2309 = vmatprep.subr.mxu0 0.0
    %2310 = vmatpush1.msra.mxu0 0.0
    %2311 = vmatprep.subr.mxu0 0.0
    %2312 = vmatpush1.msra.mxu0 0.0
    %2313 = vmatprep.subr.mxu0 0.0
    %2314 = vmatpush1.msra.mxu0 0.0
    %2315 = vmatprep.subr.mxu0 0.0
    %2316 = vmatpush1.msra.mxu0 0.0
    %2317 = vmatprep.subr.mxu0 0.0
    %2318 = vmatpush1.msra.mxu0 0.0
    %2319 = vmatprep.subr.mxu0 0.0
    %2320 = vmatpush1.msra.mxu0 0.0
    %2321 = vmatprep.mubr.f32.mxu0 0.0
    %2322 = vmatmul.mubr.f32.gmra.mrb[0].mxu0 %v2184
    %v2323 = vpop.f32.mrb[0].mxu0
    %v2324 = vadd.f32 0.0, %v2323
    %v2325 = vpop.f32.mrb[0].mxu0
    %v2326 = vadd.f32 0.0, %v2325
    %2327 = vdwg.mxu0
    %v2328 = vadd.f32 %v2161, %v2253
    %v2329 = vadd.f32 %v2162, %v2255
    %v2330 = vadd.f32 %v2163, %v2324
    %v2331 = vadd.f32 %v2164, %v2326
    %s2332 = scalar_lea.vmem %s2, 32
    %v2333 = vld [vmem:[%s2332] sm:$0xff]
    %v2335 = vsel %vm125, %v2333, 0
    %2337 = vmatprep.subr.mxu0 %v1670
    %2338 = vmatpush1.msra.mxu0 %v1669
    %2339 = vmatprep.subr.mxu0 0.0
    %2340 = vmatpush1.msra.mxu0 0.0
    %2341 = vmatprep.subr.mxu0 0.0
    %2342 = vmatpush1.msra.mxu0 0.0
    %2343 = vmatprep.subr.mxu0 0.0
    %2344 = vmatpush1.msra.mxu0 0.0
    %2345 = vmatprep.subr.mxu0 0.0
    %2346 = vmatpush1.msra.mxu0 0.0
    %2347 = vmatprep.subr.mxu0 0.0
    %2348 = vmatpush1.msra.mxu0 0.0
    %2349 = vmatprep.subr.mxu0 0.0
    %2350 = vmatpush1.msra.mxu0 0.0
    %2351 = vmatprep.subr.mxu0 0.0
    %2352 = vmatpush1.msra.mxu0 0.0
    %2353 = vmatprep.subr.mxu0 0.0
    %2354 = vmatpush1.msra.mxu0 0.0
    %2355 = vmatprep.subr.mxu0 0.0
    %2356 = vmatpush1.msra.mxu0 0.0
    %2357 = vmatprep.subr.mxu0 0.0
    %2358 = vmatpush1.msra.mxu0 0.0
    %2359 = vmatprep.subr.mxu0 0.0
    %2360 = vmatpush1.msra.mxu0 0.0
    %2361 = vmatprep.subr.mxu0 0.0
    %2362 = vmatpush1.msra.mxu0 0.0
    %2363 = vmatprep.subr.mxu0 0.0
    %2364 = vmatpush1.msra.mxu0 0.0
    %2365 = vmatprep.subr.mxu0 0.0
    %2366 = vmatpush1.msra.mxu0 0.0
    %2367 = vmatprep.subr.mxu0 0.0
    %2368 = vmatpush1.msra.mxu0 0.0
    %2369 = vmatprep.subr.mxu0 0.0
    %2370 = vmatpush1.msra.mxu0 0.0
    %2371 = vmatprep.subr.mxu0 0.0
    %2372 = vmatpush1.msra.mxu0 0.0
    %2373 = vmatprep.subr.mxu0 0.0
    %2374 = vmatpush1.msra.mxu0 0.0
    %2375 = vmatprep.subr.mxu0 0.0
    %2376 = vmatpush1.msra.mxu0 0.0
    %2377 = vmatprep.subr.mxu0 0.0
    %2378 = vmatpush1.msra.mxu0 0.0
    %2379 = vmatprep.subr.mxu0 0.0
    %2380 = vmatpush1.msra.mxu0 0.0
    %2381 = vmatprep.subr.mxu0 0.0
    %2382 = vmatpush1.msra.mxu0 0.0
    %2383 = vmatprep.subr.mxu0 0.0
    %2384 = vmatpush1.msra.mxu0 0.0
    %2385 = vmatprep.subr.mxu0 0.0
    %2386 = vmatpush1.msra.mxu0 0.0
    %2387 = vmatprep.subr.mxu0 0.0
    %2388 = vmatpush1.msra.mxu0 0.0
    %2389 = vmatprep.subr.mxu0 0.0
    %2390 = vmatpush1.msra.mxu0 0.0
    %2391 = vmatprep.subr.mxu0 0.0
    %2392 = vmatpush1.msra.mxu0 0.0
    %2393 = vmatprep.subr.mxu0 0.0
    %2394 = vmatpush1.msra.mxu0 0.0
    %2395 = vmatprep.subr.mxu0 0.0
    %2396 = vmatpush1.msra.mxu0 0.0
    %2397 = vmatprep.subr.mxu0 0.0
    %2398 = vmatpush1.msra.mxu0 0.0
    %2399 = vmatprep.subr.mxu0 0.0
    %2400 = vmatpush1.msra.mxu0 0.0
    %2401 = vmatprep.mubr.f32.mxu0 0.0
    %2402 = vmatmul.mubr.f32.gmra.mrb[0].mxu0 %v2335
    %v2403 = vpop.f32.mrb[0].mxu0
    %v2404 = vadd.f32 0.0, %v2403
    %v2405 = vpop.f32.mrb[0].mxu0
    %v2406 = vadd.f32 0.0, %v2405
    %2407 = vdwg.mxu0
    %2408 = vmatprep.subr.mxu0 %v1672
    %2409 = vmatpush1.msra.mxu0 %v1671
    %2410 = vmatprep.subr.mxu0 0.0
    %2411 = vmatpush1.msra.mxu0 0.0
    %2412 = vmatprep.subr.mxu0 0.0
    %2413 = vmatpush1.msra.mxu0 0.0
    %2414 = vmatprep.subr.mxu0 0.0
    %2415 = vmatpush1.msra.mxu0 0.0
    %2416 = vmatprep.subr.mxu0 0.0
    %2417 = vmatpush1.msra.mxu0 0.0
    %2418 = vmatprep.subr.mxu0 0.0
    %2419 = vmatpush1.msra.mxu0 0.0
    %2420 = vmatprep.subr.mxu0 0.0
    %2421 = vmatpush1.msra.mxu0 0.0
    %2422 = vmatprep.subr.mxu0 0.0
    %2423 = vmatpush1.msra.mxu0 0.0
    %2424 = vmatprep.subr.mxu0 0.0
    %2425 = vmatpush1.msra.mxu0 0.0
    %2426 = vmatprep.subr.mxu0 0.0
    %2427 = vmatpush1.msra.mxu0 0.0
    %2428 = vmatprep.subr.mxu0 0.0
    %2429 = vmatpush1.msra.mxu0 0.0
    %2430 = vmatprep.subr.mxu0 0.0
    %2431 = vmatpush1.msra.mxu0 0.0
    %2432 = vmatprep.subr.mxu0 0.0
    %2433 = vmatpush1.msra.mxu0 0.0
    %2434 = vmatprep.subr.mxu0 0.0
    %2435 = vmatpush1.msra.mxu0 0.0
    %2436 = vmatprep.subr.mxu0 0.0
    %2437 = vmatpush1.msra.mxu0 0.0
    %2438 = vmatprep.subr.mxu0 0.0
    %2439 = vmatpush1.msra.mxu0 0.0
    %2440 = vmatprep.subr.mxu0 0.0
    %2441 = vmatpush1.msra.mxu0 0.0
    %2442 = vmatprep.subr.mxu0 0.0
    %2443 = vmatpush1.msra.mxu0 0.0
    %2444 = vmatprep.subr.mxu0 0.0
    %2445 = vmatpush1.msra.mxu0 0.0
    %2446 = vmatprep.subr.mxu0 0.0
    %2447 = vmatpush1.msra.mxu0 0.0
    %2448 = vmatprep.subr.mxu0 0.0
    %2449 = vmatpush1.msra.mxu0 0.0
    %2450 = vmatprep.subr.mxu0 0.0
    %2451 = vmatpush1.msra.mxu0 0.0
    %2452 = vmatprep.subr.mxu0 0.0
    %2453 = vmatpush1.msra.mxu0 0.0
    %2454 = vmatprep.subr.mxu0 0.0
    %2455 = vmatpush1.msra.mxu0 0.0
    %2456 = vmatprep.subr.mxu0 0.0
    %2457 = vmatpush1.msra.mxu0 0.0
    %2458 = vmatprep.subr.mxu0 0.0
    %2459 = vmatpush1.msra.mxu0 0.0
    %2460 = vmatprep.subr.mxu0 0.0
    %2461 = vmatpush1.msra.mxu0 0.0
    %2462 = vmatprep.subr.mxu0 0.0
    %2463 = vmatpush1.msra.mxu0 0.0
    %2464 = vmatprep.subr.mxu0 0.0
    %2465 = vmatpush1.msra.mxu0 0.0
    %2466 = vmatprep.subr.mxu0 0.0
    %2467 = vmatpush1.msra.mxu0 0.0
    %2468 = vmatprep.subr.mxu0 0.0
    %2469 = vmatpush1.msra.mxu0 0.0
    %2470 = vmatprep.subr.mxu0 0.0
    %2471 = vmatpush1.msra.mxu0 0.0
    %2472 = vmatprep.mubr.f32.mxu0 0.0
    %2473 = vmatmul.mubr.f32.gmra.mrb[0].mxu0 %v2335
    %v2474 = vpop.f32.mrb[0].mxu0
    %v2475 = vadd.f32 0.0, %v2474
    %v2476 = vpop.f32.mrb[0].mxu0
    %v2477 = vadd.f32 0.0, %v2476
    %2478 = vdwg.mxu0
    %v2479 = vadd.f32 %v2328, %v2404
    %v2480 = vadd.f32 %v2329, %v2406
    %v2481 = vadd.f32 %v2330, %v2475
    %v2482 = vadd.f32 %v2331, %v2477
    %2483 = vrot.lane.b32.xlu0 %v1669, 127
    %v2484 = vpop.permute.xlu0 %2483
    %2485 = vrot.lane.b32.xlu0 %v1670, 127
    %v2486 = vpop.permute.xlu0 %2485
    %2487 = vrot.lane.b32.xlu0 %v1671, 127
    %v2488 = vpop.permute.xlu0 %2487
    %2489 = vrot.lane.b32.xlu0 %v1672, 127
    %v2490 = vpop.permute.xlu0 %2489
    %v2491 = vsel %vm927, %v2488, %v2490
    %v2492 = vsel %vm927, %v2486, %v2488
    %v2493 = vsel %vm927, %v2484, %v2486
    %v2494 = vsel %vm927, %v2490, %v2484
    %v2495 = vsel %vm936, %v2493, 0.0
    %v2496 = vsel %vm937, %v2492, 0.0
    %v2497 = vsel %vm938, %v2491, 0.0
    %v2498 = vsel %vm939, %v2494, 0.0
    %s2499 = scalar_lea.vmem %s2, 40
    %v2500 = vld [vmem:[%s2499] sm:$0xff]
    %v2502 = vsel %vm125, %v2500, 0
    %2504 = vmatprep.subr.mxu0 %v2496
    %2505 = vmatpush1.msra.mxu0 %v2495
    %2506 = vmatprep.subr.mxu0 0.0
    %2507 = vmatpush1.msra.mxu0 0.0
    %2508 = vmatprep.subr.mxu0 0.0
    %2509 = vmatpush1.msra.mxu0 0.0
    %2510 = vmatprep.subr.mxu0 0.0
    %2511 = vmatpush1.msra.mxu0 0.0
    %2512 = vmatprep.subr.mxu0 0.0
    %2513 = vmatpush1.msra.mxu0 0.0
    %2514 = vmatprep.subr.mxu0 0.0
    %2515 = vmatpush1.msra.mxu0 0.0
    %2516 = vmatprep.subr.mxu0 0.0
    %2517 = vmatpush1.msra.mxu0 0.0
    %2518 = vmatprep.subr.mxu0 0.0
    %2519 = vmatpush1.msra.mxu0 0.0
    %2520 = vmatprep.subr.mxu0 0.0
    %2521 = vmatpush1.msra.mxu0 0.0
    %2522 = vmatprep.subr.mxu0 0.0
    %2523 = vmatpush1.msra.mxu0 0.0
    %2524 = vmatprep.subr.mxu0 0.0
    %2525 = vmatpush1.msra.mxu0 0.0
    %2526 = vmatprep.subr.mxu0 0.0
    %2527 = vmatpush1.msra.mxu0 0.0
    %2528 = vmatprep.subr.mxu0 0.0
    %2529 = vmatpush1.msra.mxu0 0.0
    %2530 = vmatprep.subr.mxu0 0.0
    %2531 = vmatpush1.msra.mxu0 0.0
    %2532 = vmatprep.subr.mxu0 0.0
    %2533 = vmatpush1.msra.mxu0 0.0
    %2534 = vmatprep.subr.mxu0 0.0
    %2535 = vmatpush1.msra.mxu0 0.0
    %2536 = vmatprep.subr.mxu0 0.0
    %2537 = vmatpush1.msra.mxu0 0.0
    %2538 = vmatprep.subr.mxu0 0.0
    %2539 = vmatpush1.msra.mxu0 0.0
    %2540 = vmatprep.subr.mxu0 0.0
    %2541 = vmatpush1.msra.mxu0 0.0
    %2542 = vmatprep.subr.mxu0 0.0
    %2543 = vmatpush1.msra.mxu0 0.0
    %2544 = vmatprep.subr.mxu0 0.0
    %2545 = vmatpush1.msra.mxu0 0.0
    %2546 = vmatprep.subr.mxu0 0.0
    %2547 = vmatpush1.msra.mxu0 0.0
    %2548 = vmatprep.subr.mxu0 0.0
    %2549 = vmatpush1.msra.mxu0 0.0
    %2550 = vmatprep.subr.mxu0 0.0
    %2551 = vmatpush1.msra.mxu0 0.0
    %2552 = vmatprep.subr.mxu0 0.0
    %2553 = vmatpush1.msra.mxu0 0.0
    %2554 = vmatprep.subr.mxu0 0.0
    %2555 = vmatpush1.msra.mxu0 0.0
    %2556 = vmatprep.subr.mxu0 0.0
    %2557 = vmatpush1.msra.mxu0 0.0
    %2558 = vmatprep.subr.mxu0 0.0
    %2559 = vmatpush1.msra.mxu0 0.0
    %2560 = vmatprep.subr.mxu0 0.0
    %2561 = vmatpush1.msra.mxu0 0.0
    %2562 = vmatprep.subr.mxu0 0.0
    %2563 = vmatpush1.msra.mxu0 0.0
    %2564 = vmatprep.subr.mxu0 0.0
    %2565 = vmatpush1.msra.mxu0 0.0
    %2566 = vmatprep.subr.mxu0 0.0
    %2567 = vmatpush1.msra.mxu0 0.0
    %2568 = vmatprep.mubr.f32.mxu0 0.0
    %2569 = vmatmul.mubr.f32.gmra.mrb[0].mxu0 %v2502
    %v2570 = vpop.f32.mrb[0].mxu0
    %v2571 = vadd.f32 0.0, %v2570
    %v2572 = vpop.f32.mrb[0].mxu0
    %v2573 = vadd.f32 0.0, %v2572
    %2574 = vdwg.mxu0
    %2575 = vmatprep.subr.mxu0 %v2498
    %2576 = vmatpush1.msra.mxu0 %v2497
    %2577 = vmatprep.subr.mxu0 0.0
    %2578 = vmatpush1.msra.mxu0 0.0
    %2579 = vmatprep.subr.mxu0 0.0
    %2580 = vmatpush1.msra.mxu0 0.0
    %2581 = vmatprep.subr.mxu0 0.0
    %2582 = vmatpush1.msra.mxu0 0.0
    %2583 = vmatprep.subr.mxu0 0.0
    %2584 = vmatpush1.msra.mxu0 0.0
    %2585 = vmatprep.subr.mxu0 0.0
    %2586 = vmatpush1.msra.mxu0 0.0
    %2587 = vmatprep.subr.mxu0 0.0
    %2588 = vmatpush1.msra.mxu0 0.0
    %2589 = vmatprep.subr.mxu0 0.0
    %2590 = vmatpush1.msra.mxu0 0.0
    %2591 = vmatprep.subr.mxu0 0.0
    %2592 = vmatpush1.msra.mxu0 0.0
    %2593 = vmatprep.subr.mxu0 0.0
    %2594 = vmatpush1.msra.mxu0 0.0
    %2595 = vmatprep.subr.mxu0 0.0
    %2596 = vmatpush1.msra.mxu0 0.0
    %2597 = vmatprep.subr.mxu0 0.0
    %2598 = vmatpush1.msra.mxu0 0.0
    %2599 = vmatprep.subr.mxu0 0.0
    %2600 = vmatpush1.msra.mxu0 0.0
    %2601 = vmatprep.subr.mxu0 0.0
    %2602 = vmatpush1.msra.mxu0 0.0
    %2603 = vmatprep.subr.mxu0 0.0
    %2604 = vmatpush1.msra.mxu0 0.0
    %2605 = vmatprep.subr.mxu0 0.0
    %2606 = vmatpush1.msra.mxu0 0.0
    %2607 = vmatprep.subr.mxu0 0.0
    %2608 = vmatpush1.msra.mxu0 0.0
    %2609 = vmatprep.subr.mxu0 0.0
    %2610 = vmatpush1.msra.mxu0 0.0
    %2611 = vmatprep.subr.mxu0 0.0
    %2612 = vmatpush1.msra.mxu0 0.0
    %2613 = vmatprep.subr.mxu0 0.0
    %2614 = vmatpush1.msra.mxu0 0.0
    %2615 = vmatprep.subr.mxu0 0.0
    %2616 = vmatpush1.msra.mxu0 0.0
    %2617 = vmatprep.subr.mxu0 0.0
    %2618 = vmatpush1.msra.mxu0 0.0
    %2619 = vmatprep.subr.mxu0 0.0
    %2620 = vmatpush1.msra.mxu0 0.0
    %2621 = vmatprep.subr.mxu0 0.0
    %2622 = vmatpush1.msra.mxu0 0.0
    %2623 = vmatprep.subr.mxu0 0.0
    %2624 = vmatpush1.msra.mxu0 0.0
    %2625 = vmatprep.subr.mxu0 0.0
    %2626 = vmatpush1.msra.mxu0 0.0
    %2627 = vmatprep.subr.mxu0 0.0
    %2628 = vmatpush1.msra.mxu0 0.0
    %2629 = vmatprep.subr.mxu0 0.0
    %2630 = vmatpush1.msra.mxu0 0.0
    %2631 = vmatprep.subr.mxu0 0.0
    %2632 = vmatpush1.msra.mxu0 0.0
    %2633 = vmatprep.subr.mxu0 0.0
    %2634 = vmatpush1.msra.mxu0 0.0
    %2635 = vmatprep.subr.mxu0 0.0
    %2636 = vmatpush1.msra.mxu0 0.0
    %2637 = vmatprep.subr.mxu0 0.0
    %2638 = vmatpush1.msra.mxu0 0.0
    %2639 = vmatprep.mubr.f32.mxu0 0.0
    %2640 = vmatmul.mubr.f32.gmra.mrb[0].mxu0 %v2502
    %v2641 = vpop.f32.mrb[0].mxu0
    %v2642 = vadd.f32 0.0, %v2641
    %v2643 = vpop.f32.mrb[0].mxu0
    %v2644 = vadd.f32 0.0, %v2643
    %2645 = vdwg.mxu0
    %v2646 = vadd.f32 %v2479, %v2571
    %v2647 = vadd.f32 %v2480, %v2573
    %v2648 = vadd.f32 %v2481, %v2642
    %v2649 = vadd.f32 %v2482, %v2644
    %2650 = vrot.lane.b32.xlu0 %v1669, 113
    %v2651 = vpop.permute.xlu0 %2650
    %2652 = vrot.lane.b32.xlu0 %v1670, 113
    %v2653 = vpop.permute.xlu0 %2652
    %2654 = vrot.lane.b32.xlu0 %v1671, 113
    %v2655 = vpop.permute.xlu0 %2654
    %2656 = vrot.lane.b32.xlu0 %v1672, 113
    %v2657 = vpop.permute.xlu0 %2656
    %v2658 = vsel %vm1103, %v2655, %v2657
    %v2659 = vsel %vm1103, %v2653, %v2655
    %v2660 = vsel %vm1103, %v2651, %v2653
    %v2661 = vsel %vm1103, %v2657, %v2651
    %v2662 = vsel %vm1112, %v2660, 0.0
    %v2663 = vsel %vm1113, %v2659, 0.0
    %v2664 = vsel %vm1114, %v2658, 0.0
    %v2665 = vsel %vm1115, %v2661, 0.0
    %s2666 = scalar_lea.vmem %s2, 48
    %v2667 = vld [vmem:[%s2666] sm:$0xff]
    %v2669 = vsel %vm125, %v2667, 0
    %2671 = vmatprep.subr.mxu0 %v2663
    %2672 = vmatpush1.msra.mxu0 %v2662
    %2673 = vmatprep.subr.mxu0 0.0
    %2674 = vmatpush1.msra.mxu0 0.0
    %2675 = vmatprep.subr.mxu0 0.0
    %2676 = vmatpush1.msra.mxu0 0.0
    %2677 = vmatprep.subr.mxu0 0.0
    %2678 = vmatpush1.msra.mxu0 0.0
    %2679 = vmatprep.subr.mxu0 0.0
    %2680 = vmatpush1.msra.mxu0 0.0
    %2681 = vmatprep.subr.mxu0 0.0
    %2682 = vmatpush1.msra.mxu0 0.0
    %2683 = vmatprep.subr.mxu0 0.0
    %2684 = vmatpush1.msra.mxu0 0.0
    %2685 = vmatprep.subr.mxu0 0.0
    %2686 = vmatpush1.msra.mxu0 0.0
    %2687 = vmatprep.subr.mxu0 0.0
    %2688 = vmatpush1.msra.mxu0 0.0
    %2689 = vmatprep.subr.mxu0 0.0
    %2690 = vmatpush1.msra.mxu0 0.0
    %2691 = vmatprep.subr.mxu0 0.0
    %2692 = vmatpush1.msra.mxu0 0.0
    %2693 = vmatprep.subr.mxu0 0.0
    %2694 = vmatpush1.msra.mxu0 0.0
    %2695 = vmatprep.subr.mxu0 0.0
    %2696 = vmatpush1.msra.mxu0 0.0
    %2697 = vmatprep.subr.mxu0 0.0
    %2698 = vmatpush1.msra.mxu0 0.0
    %2699 = vmatprep.subr.mxu0 0.0
    %2700 = vmatpush1.msra.mxu0 0.0
    %2701 = vmatprep.subr.mxu0 0.0
    %2702 = vmatpush1.msra.mxu0 0.0
    %2703 = vmatprep.subr.mxu0 0.0
    %2704 = vmatpush1.msra.mxu0 0.0
    %2705 = vmatprep.subr.mxu0 0.0
    %2706 = vmatpush1.msra.mxu0 0.0
    %2707 = vmatprep.subr.mxu0 0.0
    %2708 = vmatpush1.msra.mxu0 0.0
    %2709 = vmatprep.subr.mxu0 0.0
    %2710 = vmatpush1.msra.mxu0 0.0
    %2711 = vmatprep.subr.mxu0 0.0
    %2712 = vmatpush1.msra.mxu0 0.0
    %2713 = vmatprep.subr.mxu0 0.0
    %2714 = vmatpush1.msra.mxu0 0.0
    %2715 = vmatprep.subr.mxu0 0.0
    %2716 = vmatpush1.msra.mxu0 0.0
    %2717 = vmatprep.subr.mxu0 0.0
    %2718 = vmatpush1.msra.mxu0 0.0
    %2719 = vmatprep.subr.mxu0 0.0
    %2720 = vmatpush1.msra.mxu0 0.0
    %2721 = vmatprep.subr.mxu0 0.0
    %2722 = vmatpush1.msra.mxu0 0.0
    %2723 = vmatprep.subr.mxu0 0.0
    %2724 = vmatpush1.msra.mxu0 0.0
    %2725 = vmatprep.subr.mxu0 0.0
    %2726 = vmatpush1.msra.mxu0 0.0
    %2727 = vmatprep.subr.mxu0 0.0
    %2728 = vmatpush1.msra.mxu0 0.0
    %2729 = vmatprep.subr.mxu0 0.0
    %2730 = vmatpush1.msra.mxu0 0.0
    %2731 = vmatprep.subr.mxu0 0.0
    %2732 = vmatpush1.msra.mxu0 0.0
    %2733 = vmatprep.subr.mxu0 0.0
    %2734 = vmatpush1.msra.mxu0 0.0
    %2735 = vmatprep.mubr.f32.mxu0 0.0
    %2736 = vmatmul.mubr.f32.gmra.mrb[0].mxu0 %v2669
    %v2737 = vpop.f32.mrb[0].mxu0
    %v2738 = vadd.f32 0.0, %v2737
    %v2739 = vpop.f32.mrb[0].mxu0
    %v2740 = vadd.f32 0.0, %v2739
    %2741 = vdwg.mxu0
    %2742 = vmatprep.subr.mxu0 %v2665
    %2743 = vmatpush1.msra.mxu0 %v2664
    %2744 = vmatprep.subr.mxu0 0.0
    %2745 = vmatpush1.msra.mxu0 0.0
    %2746 = vmatprep.subr.mxu0 0.0
    %2747 = vmatpush1.msra.mxu0 0.0
    %2748 = vmatprep.subr.mxu0 0.0
    %2749 = vmatpush1.msra.mxu0 0.0
    %2750 = vmatprep.subr.mxu0 0.0
    %2751 = vmatpush1.msra.mxu0 0.0
    %2752 = vmatprep.subr.mxu0 0.0
    %2753 = vmatpush1.msra.mxu0 0.0
    %2754 = vmatprep.subr.mxu0 0.0
    %2755 = vmatpush1.msra.mxu0 0.0
    %2756 = vmatprep.subr.mxu0 0.0
    %2757 = vmatpush1.msra.mxu0 0.0
    %2758 = vmatprep.subr.mxu0 0.0
    %2759 = vmatpush1.msra.mxu0 0.0
    %2760 = vmatprep.subr.mxu0 0.0
    %2761 = vmatpush1.msra.mxu0 0.0
    %2762 = vmatprep.subr.mxu0 0.0
    %2763 = vmatpush1.msra.mxu0 0.0
    %2764 = vmatprep.subr.mxu0 0.0
    %2765 = vmatpush1.msra.mxu0 0.0
    %2766 = vmatprep.subr.mxu0 0.0
    %2767 = vmatpush1.msra.mxu0 0.0
    %2768 = vmatprep.subr.mxu0 0.0
    %2769 = vmatpush1.msra.mxu0 0.0
    %2770 = vmatprep.subr.mxu0 0.0
    %2771 = vmatpush1.msra.mxu0 0.0
    %2772 = vmatprep.subr.mxu0 0.0
    %2773 = vmatpush1.msra.mxu0 0.0
    %2774 = vmatprep.subr.mxu0 0.0
    %2775 = vmatpush1.msra.mxu0 0.0
    %2776 = vmatprep.subr.mxu0 0.0
    %2777 = vmatpush1.msra.mxu0 0.0
    %2778 = vmatprep.subr.mxu0 0.0
    %2779 = vmatpush1.msra.mxu0 0.0
    %2780 = vmatprep.subr.mxu0 0.0
    %2781 = vmatpush1.msra.mxu0 0.0
    %2782 = vmatprep.subr.mxu0 0.0
    %2783 = vmatpush1.msra.mxu0 0.0
    %2784 = vmatprep.subr.mxu0 0.0
    %2785 = vmatpush1.msra.mxu0 0.0
    %2786 = vmatprep.subr.mxu0 0.0
    %2787 = vmatpush1.msra.mxu0 0.0
    %2788 = vmatprep.subr.mxu0 0.0
    %2789 = vmatpush1.msra.mxu0 0.0
    %2790 = vmatprep.subr.mxu0 0.0
    %2791 = vmatpush1.msra.mxu0 0.0
    %2792 = vmatprep.subr.mxu0 0.0
    %2793 = vmatpush1.msra.mxu0 0.0
    %2794 = vmatprep.subr.mxu0 0.0
    %2795 = vmatpush1.msra.mxu0 0.0
    %2796 = vmatprep.subr.mxu0 0.0
    %2797 = vmatpush1.msra.mxu0 0.0
    %2798 = vmatprep.subr.mxu0 0.0
    %2799 = vmatpush1.msra.mxu0 0.0
    %2800 = vmatprep.subr.mxu0 0.0
    %2801 = vmatpush1.msra.mxu0 0.0
    %2802 = vmatprep.subr.mxu0 0.0
    %2803 = vmatpush1.msra.mxu0 0.0
    %2804 = vmatprep.subr.mxu0 0.0
    %2805 = vmatpush1.msra.mxu0 0.0
    %2806 = vmatprep.mubr.f32.mxu0 0.0
    %2807 = vmatmul.mubr.f32.gmra.mrb[0].mxu0 %v2669
    %v2808 = vpop.f32.mrb[0].mxu0
    %v2809 = vadd.f32 0.0, %v2808
    %v2810 = vpop.f32.mrb[0].mxu0
    %v2811 = vadd.f32 0.0, %v2810
    %2812 = vdwg.mxu0
    %v2813 = vadd.f32 %v2646, %v2738
    %v2814 = vadd.f32 %v2647, %v2740
    %v2815 = vadd.f32 %v2648, %v2809
    %v2816 = vadd.f32 %v2649, %v2811
    %2817 = vrot.lane.b32.xlu0 %v1669, 112
    %v2818 = vpop.permute.xlu0 %2817
    %2819 = vrot.lane.b32.xlu0 %v1670, 112
    %v2820 = vpop.permute.xlu0 %2819
    %2821 = vrot.lane.b32.xlu0 %v1671, 112
    %v2822 = vpop.permute.xlu0 %2821
    %2823 = vrot.lane.b32.xlu0 %v1672, 112
    %v2824 = vpop.permute.xlu0 %2823
    %v2825 = vsel %vm1279, %v2822, %v2824
    %v2826 = vsel %vm1279, %v2820, %v2822
    %v2827 = vsel %vm1279, %v2818, %v2820
    %v2828 = vsel %vm1279, %v2824, %v2818
    %v2829 = vsel %vm1288, %v2827, 0.0
    %v2830 = vsel %vm1289, %v2826, 0.0
    %v2831 = vsel %vm1290, %v2825, 0.0
    %v2832 = vsel %vm1291, %v2828, 0.0
    %s2833 = scalar_lea.vmem %s2, 56
    %v2834 = vld [vmem:[%s2833] sm:$0xff]
    %v2836 = vsel %vm125, %v2834, 0
    %2838 = vmatprep.subr.mxu0 %v2830
    %2839 = vmatpush1.msra.mxu0 %v2829
    %2840 = vmatprep.subr.mxu0 0.0
    %2841 = vmatpush1.msra.mxu0 0.0
    %2842 = vmatprep.subr.mxu0 0.0
    %2843 = vmatpush1.msra.mxu0 0.0
    %2844 = vmatprep.subr.mxu0 0.0
    %2845 = vmatpush1.msra.mxu0 0.0
    %2846 = vmatprep.subr.mxu0 0.0
    %2847 = vmatpush1.msra.mxu0 0.0
    %2848 = vmatprep.subr.mxu0 0.0
    %2849 = vmatpush1.msra.mxu0 0.0
    %2850 = vmatprep.subr.mxu0 0.0
    %2851 = vmatpush1.msra.mxu0 0.0
    %2852 = vmatprep.subr.mxu0 0.0
    %2853 = vmatpush1.msra.mxu0 0.0
    %2854 = vmatprep.subr.mxu0 0.0
    %2855 = vmatpush1.msra.mxu0 0.0
    %2856 = vmatprep.subr.mxu0 0.0
    %2857 = vmatpush1.msra.mxu0 0.0
    %2858 = vmatprep.subr.mxu0 0.0
    %2859 = vmatpush1.msra.mxu0 0.0
    %2860 = vmatprep.subr.mxu0 0.0
    %2861 = vmatpush1.msra.mxu0 0.0
    %2862 = vmatprep.subr.mxu0 0.0
    %2863 = vmatpush1.msra.mxu0 0.0
    %2864 = vmatprep.subr.mxu0 0.0
    %2865 = vmatpush1.msra.mxu0 0.0
    %2866 = vmatprep.subr.mxu0 0.0
    %2867 = vmatpush1.msra.mxu0 0.0
    %2868 = vmatprep.subr.mxu0 0.0
    %2869 = vmatpush1.msra.mxu0 0.0
    %2870 = vmatprep.subr.mxu0 0.0
    %2871 = vmatpush1.msra.mxu0 0.0
    %2872 = vmatprep.subr.mxu0 0.0
    %2873 = vmatpush1.msra.mxu0 0.0
    %2874 = vmatprep.subr.mxu0 0.0
    %2875 = vmatpush1.msra.mxu0 0.0
    %2876 = vmatprep.subr.mxu0 0.0
    %2877 = vmatpush1.msra.mxu0 0.0
    %2878 = vmatprep.subr.mxu0 0.0
    %2879 = vmatpush1.msra.mxu0 0.0
    %2880 = vmatprep.subr.mxu0 0.0
    %2881 = vmatpush1.msra.mxu0 0.0
    %2882 = vmatprep.subr.mxu0 0.0
    %2883 = vmatpush1.msra.mxu0 0.0
    %2884 = vmatprep.subr.mxu0 0.0
    %2885 = vmatpush1.msra.mxu0 0.0
    %2886 = vmatprep.subr.mxu0 0.0
    %2887 = vmatpush1.msra.mxu0 0.0
    %2888 = vmatprep.subr.mxu0 0.0
    %2889 = vmatpush1.msra.mxu0 0.0
    %2890 = vmatprep.subr.mxu0 0.0
    %2891 = vmatpush1.msra.mxu0 0.0
    %2892 = vmatprep.subr.mxu0 0.0
    %2893 = vmatpush1.msra.mxu0 0.0
    %2894 = vmatprep.subr.mxu0 0.0
    %2895 = vmatpush1.msra.mxu0 0.0
    %2896 = vmatprep.subr.mxu0 0.0
    %2897 = vmatpush1.msra.mxu0 0.0
    %2898 = vmatprep.subr.mxu0 0.0
    %2899 = vmatpush1.msra.mxu0 0.0
    %2900 = vmatprep.subr.mxu0 0.0
    %2901 = vmatpush1.msra.mxu0 0.0
    %2902 = vmatprep.mubr.f32.mxu0 0.0
    %2903 = vmatmul.mubr.f32.gmra.mrb[0].mxu0 %v2836
    %v2904 = vpop.f32.mrb[0].mxu0
    %v2905 = vadd.f32 0.0, %v2904
    %v2906 = vpop.f32.mrb[0].mxu0
    %v2907 = vadd.f32 0.0, %v2906
    %2908 = vdwg.mxu0
    %2909 = vmatprep.subr.mxu0 %v2832
    %2910 = vmatpush1.msra.mxu0 %v2831
    %2911 = vmatprep.subr.mxu0 0.0
    %2912 = vmatpush1.msra.mxu0 0.0
    %2913 = vmatprep.subr.mxu0 0.0
    %2914 = vmatpush1.msra.mxu0 0.0
    %2915 = vmatprep.subr.mxu0 0.0
    %2916 = vmatpush1.msra.mxu0 0.0
    %2917 = vmatprep.subr.mxu0 0.0
    %2918 = vmatpush1.msra.mxu0 0.0
    %2919 = vmatprep.subr.mxu0 0.0
    %2920 = vmatpush1.msra.mxu0 0.0
    %2921 = vmatprep.subr.mxu0 0.0
    %2922 = vmatpush1.msra.mxu0 0.0
    %2923 = vmatprep.subr.mxu0 0.0
    %2924 = vmatpush1.msra.mxu0 0.0
    %2925 = vmatprep.subr.mxu0 0.0
    %2926 = vmatpush1.msra.mxu0 0.0
    %2927 = vmatprep.subr.mxu0 0.0
    %2928 = vmatpush1.msra.mxu0 0.0
    %2929 = vmatprep.subr.mxu0 0.0
    %2930 = vmatpush1.msra.mxu0 0.0
    %2931 = vmatprep.subr.mxu0 0.0
    %2932 = vmatpush1.msra.mxu0 0.0
    %2933 = vmatprep.subr.mxu0 0.0
    %2934 = vmatpush1.msra.mxu0 0.0
    %2935 = vmatprep.subr.mxu0 0.0
    %2936 = vmatpush1.msra.mxu0 0.0
    %2937 = vmatprep.subr.mxu0 0.0
    %2938 = vmatpush1.msra.mxu0 0.0
    %2939 = vmatprep.subr.mxu0 0.0
    %2940 = vmatpush1.msra.mxu0 0.0
    %2941 = vmatprep.subr.mxu0 0.0
    %2942 = vmatpush1.msra.mxu0 0.0
    %2943 = vmatprep.subr.mxu0 0.0
    %2944 = vmatpush1.msra.mxu0 0.0
    %2945 = vmatprep.subr.mxu0 0.0
    %2946 = vmatpush1.msra.mxu0 0.0
    %2947 = vmatprep.subr.mxu0 0.0
    %2948 = vmatpush1.msra.mxu0 0.0
    %2949 = vmatprep.subr.mxu0 0.0
    %2950 = vmatpush1.msra.mxu0 0.0
    %2951 = vmatprep.subr.mxu0 0.0
    %2952 = vmatpush1.msra.mxu0 0.0
    %2953 = vmatprep.subr.mxu0 0.0
    %2954 = vmatpush1.msra.mxu0 0.0
    %2955 = vmatprep.subr.mxu0 0.0
    %2956 = vmatpush1.msra.mxu0 0.0
    %2957 = vmatprep.subr.mxu0 0.0
    %2958 = vmatpush1.msra.mxu0 0.0
    %2959 = vmatprep.subr.mxu0 0.0
    %2960 = vmatpush1.msra.mxu0 0.0
    %2961 = vmatprep.subr.mxu0 0.0
    %2962 = vmatpush1.msra.mxu0 0.0
    %2963 = vmatprep.subr.mxu0 0.0
    %2964 = vmatpush1.msra.mxu0 0.0
    %2965 = vmatprep.subr.mxu0 0.0
    %2966 = vmatpush1.msra.mxu0 0.0
    %2967 = vmatprep.subr.mxu0 0.0
    %2968 = vmatpush1.msra.mxu0 0.0
    %2969 = vmatprep.subr.mxu0 0.0
    %2970 = vmatpush1.msra.mxu0 0.0
    %2971 = vmatprep.subr.mxu0 0.0
    %2972 = vmatpush1.msra.mxu0 0.0
    %2973 = vmatprep.mubr.f32.mxu0 0.0
    %2974 = vmatmul.mubr.f32.gmra.mrb[0].mxu0 %v2836
    %v2975 = vpop.f32.mrb[0].mxu0
    %v2976 = vadd.f32 0.0, %v2975
    %v2977 = vpop.f32.mrb[0].mxu0
    %v2978 = vadd.f32 0.0, %v2977
    %2979 = vdwg.mxu0
    %v2980 = vadd.f32 %v2813, %v2905
    %v2981 = vadd.f32 %v2814, %v2907
    %v2982 = vadd.f32 %v2815, %v2976
    %v2983 = vadd.f32 %v2816, %v2978
    %2984 = vrot.lane.b32.xlu0 %v1669, 111
    %v2985 = vpop.permute.xlu0 %2984
    %2986 = vrot.lane.b32.xlu0 %v1670, 111
    %v2987 = vpop.permute.xlu0 %2986
    %2988 = vrot.lane.b32.xlu0 %v1671, 111
    %v2989 = vpop.permute.xlu0 %2988
    %2990 = vrot.lane.b32.xlu0 %v1672, 111
    %v2991 = vpop.permute.xlu0 %2990
    %v2992 = vsel %vm1455, %v2989, %v2991
    %v2993 = vsel %vm1455, %v2987, %v2989
    %v2994 = vsel %vm1455, %v2985, %v2987
    %v2995 = vsel %vm1455, %v2991, %v2985
    %v2996 = vsel %vm1464, %v2994, 0.0
    %v2997 = vsel %vm1465, %v2993, 0.0
    %v2998 = vsel %vm1466, %v2992, 0.0
    %v2999 = vsel %vm1467, %v2995, 0.0
    %s3000 = scalar_lea.vmem %s2, 64
    %v3001 = vld [vmem:[%s3000] sm:$0xff]
    %v3003 = vsel %vm125, %v3001, 0
    %3005 = vmatprep.subr.mxu0 %v2997
    %3006 = vmatpush1.msra.mxu0 %v2996
    %3007 = vmatprep.subr.mxu0 0.0
    %3008 = vmatpush1.msra.mxu0 0.0
    %3009 = vmatprep.subr.mxu0 0.0
    %3010 = vmatpush1.msra.mxu0 0.0
    %3011 = vmatprep.subr.mxu0 0.0
    %3012 = vmatpush1.msra.mxu0 0.0
    %3013 = vmatprep.subr.mxu0 0.0
    %3014 = vmatpush1.msra.mxu0 0.0
    %3015 = vmatprep.subr.mxu0 0.0
    %3016 = vmatpush1.msra.mxu0 0.0
    %3017 = vmatprep.subr.mxu0 0.0
    %3018 = vmatpush1.msra.mxu0 0.0
    %3019 = vmatprep.subr.mxu0 0.0
    %3020 = vmatpush1.msra.mxu0 0.0
    %3021 = vmatprep.subr.mxu0 0.0
    %3022 = vmatpush1.msra.mxu0 0.0
    %3023 = vmatprep.subr.mxu0 0.0
    %3024 = vmatpush1.msra.mxu0 0.0
    %3025 = vmatprep.subr.mxu0 0.0
    %3026 = vmatpush1.msra.mxu0 0.0
    %3027 = vmatprep.subr.mxu0 0.0
    %3028 = vmatpush1.msra.mxu0 0.0
    %3029 = vmatprep.subr.mxu0 0.0
    %3030 = vmatpush1.msra.mxu0 0.0
    %3031 = vmatprep.subr.mxu0 0.0
    %3032 = vmatpush1.msra.mxu0 0.0
    %3033 = vmatprep.subr.mxu0 0.0
    %3034 = vmatpush1.msra.mxu0 0.0
    %3035 = vmatprep.subr.mxu0 0.0
    %3036 = vmatpush1.msra.mxu0 0.0
    %3037 = vmatprep.subr.mxu0 0.0
    %3038 = vmatpush1.msra.mxu0 0.0
    %3039 = vmatprep.subr.mxu0 0.0
    %3040 = vmatpush1.msra.mxu0 0.0
    %3041 = vmatprep.subr.mxu0 0.0
    %3042 = vmatpush1.msra.mxu0 0.0
    %3043 = vmatprep.subr.mxu0 0.0
    %3044 = vmatpush1.msra.mxu0 0.0
    %3045 = vmatprep.subr.mxu0 0.0
    %3046 = vmatpush1.msra.mxu0 0.0
    %3047 = vmatprep.subr.mxu0 0.0
    %3048 = vmatpush1.msra.mxu0 0.0
    %3049 = vmatprep.subr.mxu0 0.0
    %3050 = vmatpush1.msra.mxu0 0.0
    %3051 = vmatprep.subr.mxu0 0.0
    %3052 = vmatpush1.msra.mxu0 0.0
    %3053 = vmatprep.subr.mxu0 0.0
    %3054 = vmatpush1.msra.mxu0 0.0
    %3055 = vmatprep.subr.mxu0 0.0
    %3056 = vmatpush1.msra.mxu0 0.0
    %3057 = vmatprep.subr.mxu0 0.0
    %3058 = vmatpush1.msra.mxu0 0.0
    %3059 = vmatprep.subr.mxu0 0.0
    %3060 = vmatpush1.msra.mxu0 0.0
    %3061 = vmatprep.subr.mxu0 0.0
    %3062 = vmatpush1.msra.mxu0 0.0
    %3063 = vmatprep.subr.mxu0 0.0
    %3064 = vmatpush1.msra.mxu0 0.0
    %3065 = vmatprep.subr.mxu0 0.0
    %3066 = vmatpush1.msra.mxu0 0.0
    %3067 = vmatprep.subr.mxu0 0.0
    %3068 = vmatpush1.msra.mxu0 0.0
    %3069 = vmatprep.mubr.f32.mxu0 0.0
    %3070 = vmatmul.mubr.f32.gmra.mrb[0].mxu0 %v3003
    %v3071 = vpop.f32.mrb[0].mxu0
    %v3072 = vadd.f32 0.0, %v3071
    %v3073 = vpop.f32.mrb[0].mxu0
    %v3074 = vadd.f32 0.0, %v3073
    %3075 = vdwg.mxu0
    %3076 = vmatprep.subr.mxu0 %v2999
    %3077 = vmatpush1.msra.mxu0 %v2998
    %3078 = vmatprep.subr.mxu0 0.0
    %3079 = vmatpush1.msra.mxu0 0.0
    %3080 = vmatprep.subr.mxu0 0.0
    %3081 = vmatpush1.msra.mxu0 0.0
    %3082 = vmatprep.subr.mxu0 0.0
    %3083 = vmatpush1.msra.mxu0 0.0
    %3084 = vmatprep.subr.mxu0 0.0
    %3085 = vmatpush1.msra.mxu0 0.0
    %3086 = vmatprep.subr.mxu0 0.0
    %3087 = vmatpush1.msra.mxu0 0.0
    %3088 = vmatprep.subr.mxu0 0.0
    %3089 = vmatpush1.msra.mxu0 0.0
    %3090 = vmatprep.subr.mxu0 0.0
    %3091 = vmatpush1.msra.mxu0 0.0
    %3092 = vmatprep.subr.mxu0 0.0
    %3093 = vmatpush1.msra.mxu0 0.0
    %3094 = vmatprep.subr.mxu0 0.0
    %3095 = vmatpush1.msra.mxu0 0.0
    %3096 = vmatprep.subr.mxu0 0.0
    %3097 = vmatpush1.msra.mxu0 0.0
    %3098 = vmatprep.subr.mxu0 0.0
    %3099 = vmatpush1.msra.mxu0 0.0
    %3100 = vmatprep.subr.mxu0 0.0
    %3101 = vmatpush1.msra.mxu0 0.0
    %3102 = vmatprep.subr.mxu0 0.0
    %3103 = vmatpush1.msra.mxu0 0.0
    %3104 = vmatprep.subr.mxu0 0.0
    %3105 = vmatpush1.msra.mxu0 0.0
    %3106 = vmatprep.subr.mxu0 0.0
    %3107 = vmatpush1.msra.mxu0 0.0
    %3108 = vmatprep.subr.mxu0 0.0
    %3109 = vmatpush1.msra.mxu0 0.0
    %3110 = vmatprep.subr.mxu0 0.0
    %3111 = vmatpush1.msra.mxu0 0.0
    %3112 = vmatprep.subr.mxu0 0.0
    %3113 = vmatpush1.msra.mxu0 0.0
    %3114 = vmatprep.subr.mxu0 0.0
    %3115 = vmatpush1.msra.mxu0 0.0
    %3116 = vmatprep.subr.mxu0 0.0
    %3117 = vmatpush1.msra.mxu0 0.0
    %3118 = vmatprep.subr.mxu0 0.0
    %3119 = vmatpush1.msra.mxu0 0.0
    %3120 = vmatprep.subr.mxu0 0.0
    %3121 = vmatpush1.msra.mxu0 0.0
    %3122 = vmatprep.subr.mxu0 0.0
    %3123 = vmatpush1.msra.mxu0 0.0
    %3124 = vmatprep.subr.mxu0 0.0
    %3125 = vmatpush1.msra.mxu0 0.0
    %3126 = vmatprep.subr.mxu0 0.0
    %3127 = vmatpush1.msra.mxu0 0.0
    %3128 = vmatprep.subr.mxu0 0.0
    %3129 = vmatpush1.msra.mxu0 0.0
    %3130 = vmatprep.subr.mxu0 0.0
    %3131 = vmatpush1.msra.mxu0 0.0
    %3132 = vmatprep.subr.mxu0 0.0
    %3133 = vmatpush1.msra.mxu0 0.0
    %3134 = vmatprep.subr.mxu0 0.0
    %3135 = vmatpush1.msra.mxu0 0.0
    %3136 = vmatprep.subr.mxu0 0.0
    %3137 = vmatpush1.msra.mxu0 0.0
    %3138 = vmatprep.subr.mxu0 0.0
    %3139 = vmatpush1.msra.mxu0 0.0
    %3140 = vmatprep.mubr.f32.mxu0 0.0
    %3141 = vmatmul.mubr.f32.gmra.mrb[0].mxu0 %v3003
    %v3142 = vpop.f32.mrb[0].mxu0
    %v3143 = vadd.f32 0.0, %v3142
    %v3144 = vpop.f32.mrb[0].mxu0
    %v3145 = vadd.f32 0.0, %v3144
    %3146 = vdwg.mxu0
    %v3147 = vadd.f32 %v2980, %v3072
    %v3148 = vadd.f32 %v2981, %v3074
    %v3149 = vadd.f32 %v2982, %v3143
    %v3150 = vadd.f32 %v2983, %v3145
    %v3151 = vadd.f32 %v3147, %v3148
    %v3152 = vadd.f32 %v3151, %v3149
    %v3153 = vadd.f32 %v3152, %v3150
    %3154 = vadd.xlane.f32.xlu0 %v3153
    %v3155 = vpop.xlane.xlu0 %3154
    %v3156 = vmul.f32 %v3155, 0.001953125
    %v3157 = vmul.f32 %v3147, %v3147
    %v3158 = vmul.f32 %v3148, %v3148
    %v3159 = vmul.f32 %v3149, %v3149
    %v3160 = vmul.f32 %v3150, %v3150
    %v3161 = vadd.f32 %v3157, %v3158
    %v3162 = vadd.f32 %v3161, %v3159
    %v3163 = vadd.f32 %v3162, %v3160
    %3164 = vadd.xlane.f32.xlu0 %v3163
    %v3165 = vpop.xlane.xlu0 %3164
    %v3166 = vmul.f32 %v3165, 0.001953125
    %v3167 = vmul.f32 %v3156, %v3156
    %v3168 = vsub.f32 %v3166, %v3167
    %v3169 = vmax.f32 %v3168, 0.0
    %v3170 = vadd.f32 %v3169, 1e-05
    %v3171 = vrsqrt.pop %v3170
    %v3172 = vmul.f32 %v3171, %v71
    %v3173 = vmul.f32 %v3156, %v3172
    %3175 = vrot.lane.b32.xlu0 %v3173, 1
    %v3176 = vpop.permute.xlu0 %3175
    %v3178 = vsub.f32 %v71, %v3176
    %3180 = vset.pattern.permute.xlu0 2
    %3181 = vperm.xlu0 %3180, %v3172
    %v3182 = vpop.permute.xlu0 %3181
    %v3184 = vmul.f32 %v3147, %v3182
    %v3185 = vmul.f32 %v3148, %v3182
    %v3186 = vmul.f32 %v3149, %v3182
    %v3187 = vmul.f32 %v3150, %v3182
    %3189 = vset.pattern.permute.xlu0 3
    %3190 = vperm.xlu0 %3189, %v3178
    %v3191 = vpop.permute.xlu0 %3190
    %v3193 = vadd.f32 %v3184, %v3191
    %v3194 = vadd.f32 %v3185, %v3191
    %v3195 = vadd.f32 %v3186, %v3191
    %v3196 = vadd.f32 %v3187, %v3191
    %v3197 = vadd.f32 %v3193, %v18
    %v3198 = vadd.f32 %v3194, %v19
    %v3199 = vadd.f32 %v3195, %v20
    %v3200 = vadd.f32 %v3196, %v21
    %v3201 = vmax.f32 %v3197, 0.0
    %v3202 = vmax.f32 %v3198, 0.0
    %v3203 = vmax.f32 %v3199, 0.0
    %v3204 = vmax.f32 %v3200, 0.0
    %3205 = vst [vmem:[#allocation2] sm:$0xff] %v3201
    %3206 = vst [vmem:[#allocation2 + $0x8] sm:$0xff] %v3202
    %3207 = vst [vmem:[#allocation2 + $0x10] sm:$0xff] %v3203
    %3208 = vst [vmem:[#allocation2 + $0x18] sm:$0xff] %v3204
    // Predicated region
    $region18: #{tpu_custom_call.1} parent=1 // pred_check
      _
    $region19: #{tpu_custom_call.1} parent=1 // pred_check_branch
      %3210 = sbr.rel (0) target = $region21
    $region20: #{tpu_custom_call.1} parent=1 // pred_region
      %s3212 = ssub.s32 512, 512
      %3213 = vsyncadd [#allocation3], %s3212
      %s3215 = sshll.u32 [#allocation2], 4
      %s3216 = int_to_ptr.vmem [resolvable:$true] %s3215
      %3218 = dma.vmem_to_hbm [thread:$0]  %s3216, 512, %s4, [#allocation3]
    $region21: #{tpu_custom_call.1} parent=1 // pred_fallthru
      _
    // Predicated region
    $region22: #{tpu_custom_call.1} parent=1 // pred_check
      _
    $region23: #{tpu_custom_call.1} parent=1 // pred_check_branch
      %3220 = sbr.rel (0) target = $region25
    $region24: #{tpu_custom_call.1} parent=1 // pred_region
      %3221 = dma.done [#allocation3], 512
    $region25: #{tpu_custom_call.1} parent=1 // pred_fallthru
      _
    %3222 = vsyncpa [#allocation3], 1

</llo_original>
